<compile_context>
chip_gen: v6e
topology: v6e:2x2x1
jax: 0.10.0
libtpu: 0.0.40
codegen_flags: <defaults>
</compile_context>

<pallas_src>
import functools
import math

import jax
import jax.numpy as jnp
from jax.experimental import pallas as pl
from jax.experimental.pallas import tpu as pltpu


# ----------------------------------------------------------------------------
# Fused forward kernel. One grid step = (one batch block, one encoder layer).
# ----------------------------------------------------------------------------
def _tst_kernel(
    x_ref, pos_ref,
    c1w_ref, c1s_ref, c1b_ref,
    c2w_ref, c2s_ref, c2b_ref,
    c3w_ref, c3s_ref, c3b_ref,
    wqkv_ref, bqkv_ref, wo_ref, bo_ref,
    ln1g_ref, ln1b_ref,
    w1_ref, b1_ref, w2_ref, b2_ref,
    ln2g_ref, ln2b_ref,
    clsw_ref, clsb_ref,
    o_ref,
    h_scratch,                         # VMEM (TB*L, D) f32, persists across layers
    *, nhead,
):
    layer = pl.program_id(1)
    num_layers = pl.num_programs(1)
    TB, L, _ = x_ref.shape
    D = pos_ref.shape[-1]
    hd = D // nhead
    inv_sqrt = 1.0 / math.sqrt(hd)

    # --- Conv1d (stride 1, "same" zero padding) + folded eval BN + ReLU ------
    # K shifted-tap matmuls accumulated in f32; shifts are per-sequence
    # (done on the (TB, L, C) view) so no cross-sequence leakage.
    def conv_bn_relu(h3, w_ref, s_ref, b_ref):
        K, cin, cout = w_ref.shape
        pad = (K - 1) // 2
        hb = h3.astype(jnp.bfloat16)
        acc = jnp.zeros((TB * L, cout), jnp.float32)
        for k in range(K):                              # static taps
            off = k - pad
            if off == 0:
                sh = hb
            elif off > 0:
                sh = jnp.concatenate(
                    [hb[:, off:, :],
                     jnp.zeros((TB, off, cin), jnp.bfloat16)], axis=1)
            else:
                sh = jnp.concatenate(
                    [jnp.zeros((TB, -off, cin), jnp.bfloat16),
                     hb[:, :off, :]], axis=1)
            acc = acc + jnp.dot(sh.reshape(TB * L, cin), w_ref[k],
                                preferred_element_type=jnp.float32)
        y = acc * s_ref[...] + b_ref[...]               # folded eval-mode BN
        return jnp.maximum(y, 0.0).reshape(TB, L, cout)

    # --- conv stack + positional encoding: only on the first layer step ------
    @pl.when(layer == 0)
    def _():
        h3 = x_ref[...].astype(jnp.float32)             # (TB, L, Cin)
        h3 = conv_bn_relu(h3, c1w_ref, c1s_ref, c1b_ref)
        h3 = conv_bn_relu(h3, c2w_ref, c2s_ref, c2b_ref)
        h3 = conv_bn_relu(h3, c3w_ref, c3s_ref, c3b_ref)
        h3 = h3 + pos_ref[...]                          # (TB, L, D)
        h_scratch[...] = h3.reshape(TB * L, D)

    # --- one TransformerEncoder layer (post-norm, ReLU FFN, no dropout) ------
    h = h_scratch[...]                                  # (TB*L, D) f32

    # fused QKV: one (TB*L, D) x (D, 3D) bf16 matmul
    qkv = (jnp.dot(h.astype(jnp.bfloat16), wqkv_ref[0],
                   preferred_element_type=jnp.float32) + bqkv_ref[0])

    # per-sequence / per-head attention (scores are per-sequence); head
    # contexts are concatenated so W_O is applied once with full K = D.
    # TODO(synk): at large D, pre-permute wqkv so head slices are 128-lane
    # aligned; irrelevant at D=32 test shapes.
    ctx_rows = []
    for b in range(TB):
        r0 = b * L
        heads = []
        for hh in range(nhead):
            lo = hh * hd
            qh = qkv[r0:r0 + L, lo:lo + hd].astype(jnp.bfloat16)
            kh = qkv[r0:r0 + L, D + lo:D + lo + hd].astype(jnp.bfloat16)
            vh = qkv[r0:r0 + L, 2 * D + lo:2 * D + lo + hd].astype(jnp.bfloat16)
            s = jnp.dot(qh, kh.T, preferred_element_type=jnp.float32) * inv_sqrt
            s = s - jnp.max(s, axis=-1, keepdims=True)
            p = jnp.exp(s)
            p = p * pl.reciprocal(jnp.sum(p, axis=-1, keepdims=True), approx=True)
            heads.append(jnp.dot(p.astype(jnp.bfloat16), vh,
                                 preferred_element_type=jnp.float32))
        ctx_rows.append(jnp.concatenate(heads, axis=-1))    # (L, D)
    ctx = jnp.concatenate(ctx_rows, axis=0)                 # (TB*L, D)

    attn = (jnp.dot(ctx.astype(jnp.bfloat16), wo_ref[0],
                    preferred_element_type=jnp.float32) + bo_ref[0])

    # residual + LayerNorm 1
    h1 = h + attn
    mu = jnp.mean(h1, axis=-1, keepdims=True)
    var = jnp.mean((h1 - mu) ** 2, axis=-1, keepdims=True)
    h1 = (h1 - mu) * jax.lax.rsqrt(var + 1e-5) * ln1g_ref[0] + ln1b_ref[0]

    # feed-forward (Linear -> ReLU -> Linear), bf16 operands / f32 accumulate
    f = (jnp.dot(h1.astype(jnp.bfloat16), w1_ref[0],
                 preferred_element_type=jnp.float32) + b1_ref[0])
    f = jnp.maximum(f, 0.0)
    f = (jnp.dot(f.astype(jnp.bfloat16), w2_ref[0],
                 preferred_element_type=jnp.float32) + b2_ref[0])

    # residual + LayerNorm 2
    h2 = h1 + f
    mu2 = jnp.mean(h2, axis=-1, keepdims=True)
    var2 = jnp.mean((h2 - mu2) ** 2, axis=-1, keepdims=True)
    h_out = (h2 - mu2) * jax.lax.rsqrt(var2 + 1e-5) * ln2g_ref[0] + ln2b_ref[0]
    h_scratch[...] = h_out

    # --- AdaptiveAvgPool1d(1) + classifier: only on the last layer step ------
    @pl.when(layer == num_layers - 1)
    def _():
        pooled = jnp.mean(h_out.reshape(TB, L, D), axis=1)       # (TB, D)
        o_ref[...] = (jnp.dot(pooled.astype(jnp.bfloat16), clsw_ref[...],
                              preferred_element_type=jnp.float32)
                      + clsb_ref[...])


# ----------------------------------------------------------------------------
# Wrapper: one fused pallas_call over (batch blocks, layers)
# ----------------------------------------------------------------------------
def tst_forward(x, params):
    B, L, Cin = x.shape
    nhead = params["nhead"]
    D = params["pos_enc"].shape[-1]
    num_layers = params["wqkv"].shape[0]
    num_classes = params["cls_w"].shape[-1]

    # batch tile: fill the MXU M dim (TB*L rows) while dividing B evenly
    TB = 1
    for cand in (16, 8, 4, 2):
        if B % cand == 0:
            TB = cand
            break

    args = (
        x, params["pos_enc"],
        params["conv1_w"], params["conv1_scale"], params["conv1_bias"],
        params["conv2_w"], params["conv2_scale"], params["conv2_bias"],
        params["conv3_w"], params["conv3_scale"], params["conv3_bias"],
        params["wqkv"], params["bqkv"], params["wo"], params["bo"],
        params["ln1_g"], params["ln1_b"],
        params["w1"], params["b1"], params["w2"], params["b2"],
        params["ln2_g"], params["ln2_b"],
        params["cls_w"], params["cls_b"],
    )

    def _const_map(ndim):
        def im(b, l):
            return (0,) * ndim
        return im

    def _layer_map(ndim):
        def im(b, l):
            return (l,) + (0,) * (ndim - 1)
        return im

    def const_spec(a):
        return pl.BlockSpec(a.shape, _const_map(a.ndim))

    def layer_spec(a):                       # stacked (num_layers, ...) weights
        return pl.BlockSpec((1,) + a.shape[1:], _layer_map(a.ndim))

    in_specs = [pl.BlockSpec((TB, L, Cin), lambda b, l: (b, 0, 0))]
    in_specs += [const_spec(a) for a in args[1:11]]     # pos-enc + conv params
    in_specs += [layer_spec(a) for a in args[11:23]]    # per-layer weights (streamed)
    in_specs += [const_spec(a) for a in args[23:25]]    # classifier

    kern = functools.partial(_tst_kernel, nhead=nhead)
    out = pl.pallas_call(
        kern,
        out_shape=jax.ShapeDtypeStruct((B, num_classes), jnp.float32),
        grid=(B // TB, num_layers),
        in_specs=in_specs,
        out_specs=pl.BlockSpec((TB, num_classes), lambda b, l: (b, 0)),
        scratch_shapes=[pltpu.VMEM((TB * L, D), jnp.float32)],
        compiler_params=pltpu.CompilerParams(
            dimension_semantics=("parallel", "arbitrary"),
            vmem_limit_bytes=64 * 1024 * 1024),
    )(*args)
    return out


# ----------------------------------------------------------------------------
# Deterministic synthetic parameter initialization
# ----------------------------------------------------------------------------
def init_params(key, input_dim, num_classes, seq_len, d_model, nhead,
                num_layers, dim_feedforward):
    def nrm(k, shape, scale=0.1):
        return (jax.random.normal(k, shape) * scale).astype(jnp.float32)

    keys = iter(jax.random.split(key, 16 + 12 * num_layers))
    p = {"nhead": nhead}

    # Conv stack with eval-mode BatchNorm folded into per-channel scale/bias.
    # General fold for real checkpoints:
    #   scale = gamma / sqrt(running_var + eps)
    #   bias  = beta - running_mean * scale + conv_bias * scale
    # Synthetic init here: running_mean=0, running_var=1, gamma=1, beta=0.
    bn_scale = 1.0 / math.sqrt(1.0 + 1e-5)
    chans = [(input_dim, d_model // 4, 5), (d_model // 4, d_model // 2, 3),
             (d_model // 2, d_model, 3)]
    for i, (cin, cout, kk) in enumerate(chans, start=1):
        w = nrm(next(keys), (kk, cin, cout))              # (K, C_in, C_out) tap layout
        b = nrm(next(keys), (cout,))
        p[f"conv{i}_w"] = w.astype(jnp.bfloat16)
        p[f"conv{i}_scale"] = jnp.full((1, cout), bn_scale, jnp.float32)
        p[f"conv{i}_bias"] = (b * bn_scale).reshape(1, cout).astype(jnp.float32)
    p["pos_enc"] = nrm(next(keys), (1, seq_len, d_model), scale=1.0)

    layers = []
    for _ in range(num_layers):
        lp = dict(
            wqkv=jnp.concatenate(
                [nrm(next(keys), (d_model, d_model)) for _ in range(3)],
                axis=1).astype(jnp.bfloat16),
            bqkv=jnp.concatenate(
                [nrm(next(keys), (1, d_model)) for _ in range(3)], axis=1),
            wo=nrm(next(keys), (d_model, d_model)).astype(jnp.bfloat16),
            bo=nrm(next(keys), (1, d_model)),
            ln1_g=jnp.ones((1, d_model), jnp.float32),
            ln1_b=jnp.zeros((1, d_model), jnp.float32),
            w1=nrm(next(keys), (d_model, dim_feedforward)).astype(jnp.bfloat16),
            b1=nrm(next(keys), (1, dim_feedforward)),
            w2=nrm(next(keys), (dim_feedforward, d_model)).astype(jnp.bfloat16),
            b2=nrm(next(keys), (1, d_model)),
            ln2_g=jnp.ones((1, d_model), jnp.float32),
            ln2_b=jnp.zeros((1, d_model), jnp.float32),
        )
        layers.append(lp)
    # stack per-layer params into (num_layers, ...) so they stream via the grid
    for name in layers[0]:
        p[name] = jnp.stack([lp[name] for lp in layers], axis=0)

    p["cls_w"] = nrm(next(keys), (d_model, num_classes)).astype(jnp.bfloat16)
    p["cls_b"] = nrm(next(keys), (1, num_classes))
    return p
    # TODO(synk): training-mode BatchNorm (batch statistics) and dropout are not
    # implemented; this kernel follows eval/inference semantics of the module.


if __name__ == "__main__":
    B, INPUT_DIM, NUM_CLASSES = 2, 4, 5
    SEQ_LEN, D_MODEL, NHEAD = 16, 32, 4
    NUM_LAYERS, DIM_FF = 2, 64

    key = jax.random.PRNGKey(0)
    kx, kp = jax.random.split(key)
    x = jax.random.normal(kx, (B, SEQ_LEN, INPUT_DIM), dtype=jnp.float32)
    params = init_params(kp, INPUT_DIM, NUM_CLASSES, SEQ_LEN, D_MODEL, NHEAD,
                         NUM_LAYERS, DIM_FF)

    logits = tst_forward(x, params)
    logits = jax.block_until_ready(logits)
    assert logits.shape == (B, NUM_CLASSES)
    assert bool(jnp.all(jnp.isfinite(logits)))
    print("KERNEL_OK")
</pallas_src>

<mosaic_0001>
module attributes {stable_mosaic.version = 11 : i64} {
  func.func @_tst_kernel(%arg0: i32, %arg1: i32, %arg2: memref<2x16x4xf32, #tpu.memory_space<vmem>>, %arg3: memref<1x16x32xf32, #tpu.memory_space<vmem>>, %arg4: memref<5x4x8xbf16, #tpu.memory_space<vmem>>, %arg5: memref<1x8xf32, #tpu.memory_space<vmem>>, %arg6: memref<1x8xf32, #tpu.memory_space<vmem>>, %arg7: memref<3x8x16xbf16, #tpu.memory_space<vmem>>, %arg8: memref<1x16xf32, #tpu.memory_space<vmem>>, %arg9: memref<1x16xf32, #tpu.memory_space<vmem>>, %arg10: memref<3x16x32xbf16, #tpu.memory_space<vmem>>, %arg11: memref<1x32xf32, #tpu.memory_space<vmem>>, %arg12: memref<1x32xf32, #tpu.memory_space<vmem>>, %arg13: memref<1x32x96xbf16, #tpu.memory_space<vmem>>, %arg14: memref<1x1x96xf32, #tpu.memory_space<vmem>>, %arg15: memref<1x32x32xbf16, #tpu.memory_space<vmem>>, %arg16: memref<1x1x32xf32, #tpu.memory_space<vmem>>, %arg17: memref<1x1x32xf32, #tpu.memory_space<vmem>>, %arg18: memref<1x1x32xf32, #tpu.memory_space<vmem>>, %arg19: memref<1x32x64xbf16, #tpu.memory_space<vmem>>, %arg20: memref<1x1x64xf32, #tpu.memory_space<vmem>>, %arg21: memref<1x64x32xbf16, #tpu.memory_space<vmem>>, %arg22: memref<1x1x32xf32, #tpu.memory_space<vmem>>, %arg23: memref<1x1x32xf32, #tpu.memory_space<vmem>>, %arg24: memref<1x1x32xf32, #tpu.memory_space<vmem>>, %arg25: memref<32x5xbf16, #tpu.memory_space<vmem>>, %arg26: memref<1x5xf32, #tpu.memory_space<vmem>>, %arg27: memref<2x5xf32, #tpu.memory_space<vmem>>, %arg28: memref<32x32xf32, #tpu.memory_space<vmem>>) attributes {dimension_semantics = [#tpu.dimension_semantics<parallel>, #tpu.dimension_semantics<arbitrary>], iteration_bounds = array<i64: 1, 2>, scalar_prefetch = 0 : i64, scratch_operands = 1 : i64, tpu.core_type = #tpu.core_type<tc>, window_params = [{transform_indices = @transform_0, window_bounds = array<i64: 2, 16, 4>}, {pipeline_mode = #tpu.pipeline_mode<synchronous>, transform_indices = @transform_1, window_bounds = array<i64: 1, 16, 32>}, {pipeline_mode = #tpu.pipeline_mode<synchronous>, transform_indices = @transform_2, window_bounds = array<i64: 5, 4, 8>}, {pipeline_mode = #tpu.pipeline_mode<synchronous>, transform_indices = @transform_3, window_bounds = array<i64: 1, 8>}, {pipeline_mode = #tpu.pipeline_mode<synchronous>, transform_indices = @transform_4, window_bounds = array<i64: 1, 8>}, {pipeline_mode = #tpu.pipeline_mode<synchronous>, transform_indices = @transform_5, window_bounds = array<i64: 3, 8, 16>}, {pipeline_mode = #tpu.pipeline_mode<synchronous>, transform_indices = @transform_6, window_bounds = array<i64: 1, 16>}, {pipeline_mode = #tpu.pipeline_mode<synchronous>, transform_indices = @transform_7, window_bounds = array<i64: 1, 16>}, {pipeline_mode = #tpu.pipeline_mode<synchronous>, transform_indices = @transform_8, window_bounds = array<i64: 3, 16, 32>}, {pipeline_mode = #tpu.pipeline_mode<synchronous>, transform_indices = @transform_9, window_bounds = array<i64: 1, 32>}, {pipeline_mode = #tpu.pipeline_mode<synchronous>, transform_indices = @transform_10, window_bounds = array<i64: 1, 32>}, {transform_indices = @transform_11, window_bounds = array<i64: 1, 32, 96>}, {transform_indices = @transform_12, window_bounds = array<i64: 1, 1, 96>}, {transform_indices = @transform_13, window_bounds = array<i64: 1, 32, 32>}, {transform_indices = @transform_14, window_bounds = array<i64: 1, 1, 32>}, {transform_indices = @transform_15, window_bounds = array<i64: 1, 1, 32>}, {transform_indices = @transform_16, window_bounds = array<i64: 1, 1, 32>}, {transform_indices = @transform_17, window_bounds = array<i64: 1, 32, 64>}, {transform_indices = @transform_18, window_bounds = array<i64: 1, 1, 64>}, {transform_indices = @transform_19, window_bounds = array<i64: 1, 64, 32>}, {transform_indices = @transform_20, window_bounds = array<i64: 1, 1, 32>}, {transform_indices = @transform_21, window_bounds = array<i64: 1, 1, 32>}, {transform_indices = @transform_22, window_bounds = array<i64: 1, 1, 32>}, {pipeline_mode = #tpu.pipeline_mode<synchronous>, transform_indices = @transform_23, window_bounds = array<i64: 32, 5>}, {pipeline_mode = #tpu.pipeline_mode<synchronous>, transform_indices = @transform_24, window_bounds = array<i64: 1, 5>}, {transform_indices = @transform_25, window_bounds = array<i64: 2, 5>}]} {
    %c0_i32 = arith.constant 0 : i32
    %0 = arith.cmpi eq, %arg1, %c0_i32 : i32
    %1 = arith.extui %0 : i1 to i32
    %c0_i32_0 = arith.constant 0 : i32
    %2 = arith.cmpi ne, %1, %c0_i32_0 : i32
    scf.if %2 {
      %c0_95 = arith.constant 0 : index
      %c0_96 = arith.constant 0 : index
      %c0_97 = arith.constant 0 : index
      %275 = vector.load %arg2[%c0_95, %c0_96, %c0_97] : memref<2x16x4xf32, #tpu.memory_space<vmem>>, vector<2x16x4xf32>
      %276 = arith.truncf %275 : vector<2x16x4xf32> to vector<2x16x4xbf16>
      %cst_98 = arith.constant 0.000000e+00 : f32
      %277 = vector.broadcast %cst_98 : f32 to vector<32x8xf32>
      %cst_99 = arith.constant 0.000000e+00 : bf16
      %278 = vector.broadcast %cst_99 : bf16 to vector<2x2x4xbf16>
      %279 = vector.extract_strided_slice %276 {offsets = [0, 0, 0], sizes = [2, 14, 4], strides = [1, 1, 1]} : vector<2x16x4xbf16> to vector<2x14x4xbf16>
      %280 = tpu.concatenate %278, %279 in 1 : vector<2x2x4xbf16>, vector<2x14x4xbf16> -> vector<2x16x4xbf16>
      %281 = vector.shape_cast %280 : vector<2x16x4xbf16> to vector<32x4xbf16>
      %c0_100 = arith.constant 0 : index
      %c0_101 = arith.constant 0 : index
      %c0_102 = arith.constant 0 : index
      %282 = vector.load %arg4[%c0_100, %c0_101, %c0_102] : memref<5x4x8xbf16, #tpu.memory_space<vmem>>, vector<1x4x8xbf16>
      %283 = vector.shape_cast %282 : vector<1x4x8xbf16> to vector<4x8xbf16>
      %cst_103 = arith.constant dense<0.000000e+00> : vector<32x8xf32>
      %284 = tpu.matmul %281, %283, %cst_103 {dimension_numbers = #tpu.dot_dimension_numbers<[1], [0], [0], [1], [0, 0, 1, 1], [], []>} : vector<32x4xbf16>, vector<4x8xbf16>, vector<32x8xf32> -> vector<32x8xf32>
      %285 = arith.addf %277, %284 : vector<32x8xf32>
      %cst_104 = arith.constant 0.000000e+00 : bf16
      %286 = vector.broadcast %cst_104 : bf16 to vector<2x1x4xbf16>
      %287 = vector.extract_strided_slice %276 {offsets = [0, 0, 0], sizes = [2, 15, 4], strides = [1, 1, 1]} : vector<2x16x4xbf16> to vector<2x15x4xbf16>
      %288 = tpu.concatenate %286, %287 in 1 : vector<2x1x4xbf16>, vector<2x15x4xbf16> -> vector<2x16x4xbf16>
      %289 = vector.shape_cast %288 : vector<2x16x4xbf16> to vector<32x4xbf16>
      %c1 = arith.constant 1 : index
      %c0_105 = arith.constant 0 : index
      %c0_106 = arith.constant 0 : index
      %290 = vector.load %arg4[%c1, %c0_105, %c0_106] : memref<5x4x8xbf16, #tpu.memory_space<vmem>>, vector<1x4x8xbf16>
      %291 = vector.shape_cast %290 : vector<1x4x8xbf16> to vector<4x8xbf16>
      %cst_107 = arith.constant dense<0.000000e+00> : vector<32x8xf32>
      %292 = tpu.matmul %289, %291, %cst_107 {dimension_numbers = #tpu.dot_dimension_numbers<[1], [0], [0], [1], [0, 0, 1, 1], [], []>} : vector<32x4xbf16>, vector<4x8xbf16>, vector<32x8xf32> -> vector<32x8xf32>
      %293 = arith.addf %285, %292 : vector<32x8xf32>
      %294 = vector.shape_cast %276 : vector<2x16x4xbf16> to vector<32x4xbf16>
      %c2 = arith.constant 2 : index
      %c0_108 = arith.constant 0 : index
      %c0_109 = arith.constant 0 : index
      %295 = vector.load %arg4[%c2, %c0_108, %c0_109] : memref<5x4x8xbf16, #tpu.memory_space<vmem>>, vector<1x4x8xbf16>
      %296 = vector.shape_cast %295 : vector<1x4x8xbf16> to vector<4x8xbf16>
      %cst_110 = arith.constant dense<0.000000e+00> : vector<32x8xf32>
      %297 = tpu.matmul %294, %296, %cst_110 {dimension_numbers = #tpu.dot_dimension_numbers<[1], [0], [0], [1], [0, 0, 1, 1], [], []>} : vector<32x4xbf16>, vector<4x8xbf16>, vector<32x8xf32> -> vector<32x8xf32>
      %298 = arith.addf %293, %297 : vector<32x8xf32>
      %299 = vector.extract_strided_slice %276 {offsets = [0, 1, 0], sizes = [2, 15, 4], strides = [1, 1, 1]} : vector<2x16x4xbf16> to vector<2x15x4xbf16>
      %cst_111 = arith.constant 0.000000e+00 : bf16
      %300 = vector.broadcast %cst_111 : bf16 to vector<2x1x4xbf16>
      %301 = tpu.concatenate %299, %300 in 1 : vector<2x15x4xbf16>, vector<2x1x4xbf16> -> vector<2x16x4xbf16>
      %302 = vector.shape_cast %301 : vector<2x16x4xbf16> to vector<32x4xbf16>
      %c3 = arith.constant 3 : index
      %c0_112 = arith.constant 0 : index
      %c0_113 = arith.constant 0 : index
      %303 = vector.load %arg4[%c3, %c0_112, %c0_113] : memref<5x4x8xbf16, #tpu.memory_space<vmem>>, vector<1x4x8xbf16>
      %304 = vector.shape_cast %303 : vector<1x4x8xbf16> to vector<4x8xbf16>
      %cst_114 = arith.constant dense<0.000000e+00> : vector<32x8xf32>
      %305 = tpu.matmul %302, %304, %cst_114 {dimension_numbers = #tpu.dot_dimension_numbers<[1], [0], [0], [1], [0, 0, 1, 1], [], []>} : vector<32x4xbf16>, vector<4x8xbf16>, vector<32x8xf32> -> vector<32x8xf32>
      %306 = arith.addf %298, %305 : vector<32x8xf32>
      %307 = vector.extract_strided_slice %276 {offsets = [0, 2, 0], sizes = [2, 14, 4], strides = [1, 1, 1]} : vector<2x16x4xbf16> to vector<2x14x4xbf16>
      %cst_115 = arith.constant 0.000000e+00 : bf16
      %308 = vector.broadcast %cst_115 : bf16 to vector<2x2x4xbf16>
      %309 = tpu.concatenate %307, %308 in 1 : vector<2x14x4xbf16>, vector<2x2x4xbf16> -> vector<2x16x4xbf16>
      %310 = vector.shape_cast %309 : vector<2x16x4xbf16> to vector<32x4xbf16>
      %c4 = arith.constant 4 : index
      %c0_116 = arith.constant 0 : index
      %c0_117 = arith.constant 0 : index
      %311 = vector.load %arg4[%c4, %c0_116, %c0_117] : memref<5x4x8xbf16, #tpu.memory_space<vmem>>, vector<1x4x8xbf16>
      %312 = vector.shape_cast %311 : vector<1x4x8xbf16> to vector<4x8xbf16>
      %cst_118 = arith.constant dense<0.000000e+00> : vector<32x8xf32>
      %313 = tpu.matmul %310, %312, %cst_118 {dimension_numbers = #tpu.dot_dimension_numbers<[1], [0], [0], [1], [0, 0, 1, 1], [], []>} : vector<32x4xbf16>, vector<4x8xbf16>, vector<32x8xf32> -> vector<32x8xf32>
      %314 = arith.addf %306, %313 : vector<32x8xf32>
      %c0_119 = arith.constant 0 : index
      %c0_120 = arith.constant 0 : index
      %315 = vector.load %arg5[%c0_119, %c0_120] : memref<1x8xf32, #tpu.memory_space<vmem>>, vector<1x8xf32>
      %316 = vector.broadcast %315 : vector<1x8xf32> to vector<32x8xf32>
      %317 = arith.mulf %314, %316 : vector<32x8xf32>
      %c0_121 = arith.constant 0 : index
      %c0_122 = arith.constant 0 : index
      %318 = vector.load %arg6[%c0_121, %c0_122] : memref<1x8xf32, #tpu.memory_space<vmem>>, vector<1x8xf32>
      %319 = vector.broadcast %318 : vector<1x8xf32> to vector<32x8xf32>
      %320 = arith.addf %317, %319 : vector<32x8xf32>
      %cst_123 = arith.constant 0.000000e+00 : f32
      %321 = vector.broadcast %cst_123 : f32 to vector<32x8xf32>
      %322 = arith.maximumf %320, %321 : vector<32x8xf32>
      %323 = vector.shape_cast %322 : vector<32x8xf32> to vector<2x16x8xf32>
      %324 = arith.truncf %323 : vector<2x16x8xf32> to vector<2x16x8xbf16>
      %cst_124 = arith.constant 0.000000e+00 : f32
      %325 = vector.broadcast %cst_124 : f32 to vector<32x16xf32>
      %cst_125 = arith.constant 0.000000e+00 : bf16
      %326 = vector.broadcast %cst_125 : bf16 to vector<2x1x8xbf16>
      %327 = vector.extract_strided_slice %324 {offsets = [0, 0, 0], sizes = [2, 15, 8], strides = [1, 1, 1]} : vector<2x16x8xbf16> to vector<2x15x8xbf16>
      %328 = tpu.concatenate %326, %327 in 1 : vector<2x1x8xbf16>, vector<2x15x8xbf16> -> vector<2x16x8xbf16>
      %329 = vector.shape_cast %328 : vector<2x16x8xbf16> to vector<32x8xbf16>
      %c0_126 = arith.constant 0 : index
      %c0_127 = arith.constant 0 : index
      %c0_128 = arith.constant 0 : index
      %330 = vector.load %arg7[%c0_126, %c0_127, %c0_128] : memref<3x8x16xbf16, #tpu.memory_space<vmem>>, vector<1x8x16xbf16>
      %331 = vector.shape_cast %330 : vector<1x8x16xbf16> to vector<8x16xbf16>
      %cst_129 = arith.constant dense<0.000000e+00> : vector<32x16xf32>
      %332 = tpu.matmul %329, %331, %cst_129 {dimension_numbers = #tpu.dot_dimension_numbers<[1], [0], [0], [1], [0, 0, 1, 1], [], []>} : vector<32x8xbf16>, vector<8x16xbf16>, vector<32x16xf32> -> vector<32x16xf32>
      %333 = arith.addf %325, %332 : vector<32x16xf32>
      %334 = vector.shape_cast %324 : vector<2x16x8xbf16> to vector<32x8xbf16>
      %c1_130 = arith.constant 1 : index
      %c0_131 = arith.constant 0 : index
      %c0_132 = arith.constant 0 : index
      %335 = vector.load %arg7[%c1_130, %c0_131, %c0_132] : memref<3x8x16xbf16, #tpu.memory_space<vmem>>, vector<1x8x16xbf16>
      %336 = vector.shape_cast %335 : vector<1x8x16xbf16> to vector<8x16xbf16>
      %cst_133 = arith.constant dense<0.000000e+00> : vector<32x16xf32>
      %337 = tpu.matmul %334, %336, %cst_133 {dimension_numbers = #tpu.dot_dimension_numbers<[1], [0], [0], [1], [0, 0, 1, 1], [], []>} : vector<32x8xbf16>, vector<8x16xbf16>, vector<32x16xf32> -> vector<32x16xf32>
      %338 = arith.addf %333, %337 : vector<32x16xf32>
      %339 = vector.extract_strided_slice %324 {offsets = [0, 1, 0], sizes = [2, 15, 8], strides = [1, 1, 1]} : vector<2x16x8xbf16> to vector<2x15x8xbf16>
      %cst_134 = arith.constant 0.000000e+00 : bf16
      %340 = vector.broadcast %cst_134 : bf16 to vector<2x1x8xbf16>
      %341 = tpu.concatenate %339, %340 in 1 : vector<2x15x8xbf16>, vector<2x1x8xbf16> -> vector<2x16x8xbf16>
      %342 = vector.shape_cast %341 : vector<2x16x8xbf16> to vector<32x8xbf16>
      %c2_135 = arith.constant 2 : index
      %c0_136 = arith.constant 0 : index
      %c0_137 = arith.constant 0 : index
      %343 = vector.load %arg7[%c2_135, %c0_136, %c0_137] : memref<3x8x16xbf16, #tpu.memory_space<vmem>>, vector<1x8x16xbf16>
      %344 = vector.shape_cast %343 : vector<1x8x16xbf16> to vector<8x16xbf16>
      %cst_138 = arith.constant dense<0.000000e+00> : vector<32x16xf32>
      %345 = tpu.matmul %342, %344, %cst_138 {dimension_numbers = #tpu.dot_dimension_numbers<[1], [0], [0], [1], [0, 0, 1, 1], [], []>} : vector<32x8xbf16>, vector<8x16xbf16>, vector<32x16xf32> -> vector<32x16xf32>
      %346 = arith.addf %338, %345 : vector<32x16xf32>
      %c0_139 = arith.constant 0 : index
      %c0_140 = arith.constant 0 : index
      %347 = vector.load %arg8[%c0_139, %c0_140] : memref<1x16xf32, #tpu.memory_space<vmem>>, vector<1x16xf32>
      %348 = vector.broadcast %347 : vector<1x16xf32> to vector<32x16xf32>
      %349 = arith.mulf %346, %348 : vector<32x16xf32>
      %c0_141 = arith.constant 0 : index
      %c0_142 = arith.constant 0 : index
      %350 = vector.load %arg9[%c0_141, %c0_142] : memref<1x16xf32, #tpu.memory_space<vmem>>, vector<1x16xf32>
      %351 = vector.broadcast %350 : vector<1x16xf32> to vector<32x16xf32>
      %352 = arith.addf %349, %351 : vector<32x16xf32>
      %cst_143 = arith.constant 0.000000e+00 : f32
      %353 = vector.broadcast %cst_143 : f32 to vector<32x16xf32>
      %354 = arith.maximumf %352, %353 : vector<32x16xf32>
      %355 = vector.shape_cast %354 : vector<32x16xf32> to vector<2x16x16xf32>
      %356 = arith.truncf %355 : vector<2x16x16xf32> to vector<2x16x16xbf16>
      %cst_144 = arith.constant 0.000000e+00 : f32
      %357 = vector.broadcast %cst_144 : f32 to vector<32x32xf32>
      %cst_145 = arith.constant 0.000000e+00 : bf16
      %358 = vector.broadcast %cst_145 : bf16 to vector<2x1x16xbf16>
      %359 = vector.extract_strided_slice %356 {offsets = [0, 0, 0], sizes = [2, 15, 16], strides = [1, 1, 1]} : vector<2x16x16xbf16> to vector<2x15x16xbf16>
      %360 = tpu.concatenate %358, %359 in 1 : vector<2x1x16xbf16>, vector<2x15x16xbf16> -> vector<2x16x16xbf16>
      %361 = vector.shape_cast %360 : vector<2x16x16xbf16> to vector<32x16xbf16>
      %c0_146 = arith.constant 0 : index
      %c0_147 = arith.constant 0 : index
      %c0_148 = arith.constant 0 : index
      %362 = vector.load %arg10[%c0_146, %c0_147, %c0_148] : memref<3x16x32xbf16, #tpu.memory_space<vmem>>, vector<1x16x32xbf16>
      %363 = vector.shape_cast %362 : vector<1x16x32xbf16> to vector<16x32xbf16>
      %cst_149 = arith.constant dense<0.000000e+00> : vector<32x32xf32>
      %364 = tpu.matmul %361, %363, %cst_149 {dimension_numbers = #tpu.dot_dimension_numbers<[1], [0], [0], [1], [0, 0, 1, 1], [], []>} : vector<32x16xbf16>, vector<16x32xbf16>, vector<32x32xf32> -> vector<32x32xf32>
      %365 = arith.addf %357, %364 : vector<32x32xf32>
      %366 = vector.shape_cast %356 : vector<2x16x16xbf16> to vector<32x16xbf16>
      %c1_150 = arith.constant 1 : index
      %c0_151 = arith.constant 0 : index
      %c0_152 = arith.constant 0 : index
      %367 = vector.load %arg10[%c1_150, %c0_151, %c0_152] : memref<3x16x32xbf16, #tpu.memory_space<vmem>>, vector<1x16x32xbf16>
      %368 = vector.shape_cast %367 : vector<1x16x32xbf16> to vector<16x32xbf16>
      %cst_153 = arith.constant dense<0.000000e+00> : vector<32x32xf32>
      %369 = tpu.matmul %366, %368, %cst_153 {dimension_numbers = #tpu.dot_dimension_numbers<[1], [0], [0], [1], [0, 0, 1, 1], [], []>} : vector<32x16xbf16>, vector<16x32xbf16>, vector<32x32xf32> -> vector<32x32xf32>
      %370 = arith.addf %365, %369 : vector<32x32xf32>
      %371 = vector.extract_strided_slice %356 {offsets = [0, 1, 0], sizes = [2, 15, 16], strides = [1, 1, 1]} : vector<2x16x16xbf16> to vector<2x15x16xbf16>
      %cst_154 = arith.constant 0.000000e+00 : bf16
      %372 = vector.broadcast %cst_154 : bf16 to vector<2x1x16xbf16>
      %373 = tpu.concatenate %371, %372 in 1 : vector<2x15x16xbf16>, vector<2x1x16xbf16> -> vector<2x16x16xbf16>
      %374 = vector.shape_cast %373 : vector<2x16x16xbf16> to vector<32x16xbf16>
      %c2_155 = arith.constant 2 : index
      %c0_156 = arith.constant 0 : index
      %c0_157 = arith.constant 0 : index
      %375 = vector.load %arg10[%c2_155, %c0_156, %c0_157] : memref<3x16x32xbf16, #tpu.memory_space<vmem>>, vector<1x16x32xbf16>
      %376 = vector.shape_cast %375 : vector<1x16x32xbf16> to vector<16x32xbf16>
      %cst_158 = arith.constant dense<0.000000e+00> : vector<32x32xf32>
      %377 = tpu.matmul %374, %376, %cst_158 {dimension_numbers = #tpu.dot_dimension_numbers<[1], [0], [0], [1], [0, 0, 1, 1], [], []>} : vector<32x16xbf16>, vector<16x32xbf16>, vector<32x32xf32> -> vector<32x32xf32>
      %378 = arith.addf %370, %377 : vector<32x32xf32>
      %c0_159 = arith.constant 0 : index
      %c0_160 = arith.constant 0 : index
      %379 = vector.load %arg11[%c0_159, %c0_160] : memref<1x32xf32, #tpu.memory_space<vmem>>, vector<1x32xf32>
      %380 = vector.broadcast %379 : vector<1x32xf32> to vector<32x32xf32>
      %381 = arith.mulf %378, %380 : vector<32x32xf32>
      %c0_161 = arith.constant 0 : index
      %c0_162 = arith.constant 0 : index
      %382 = vector.load %arg12[%c0_161, %c0_162] : memref<1x32xf32, #tpu.memory_space<vmem>>, vector<1x32xf32>
      %383 = vector.broadcast %382 : vector<1x32xf32> to vector<32x32xf32>
      %384 = arith.addf %381, %383 : vector<32x32xf32>
      %cst_163 = arith.constant 0.000000e+00 : f32
      %385 = vector.broadcast %cst_163 : f32 to vector<32x32xf32>
      %386 = arith.maximumf %384, %385 : vector<32x32xf32>
      %387 = vector.shape_cast %386 : vector<32x32xf32> to vector<2x16x32xf32>
      %c0_164 = arith.constant 0 : index
      %c0_165 = arith.constant 0 : index
      %c0_166 = arith.constant 0 : index
      %388 = vector.load %arg3[%c0_164, %c0_165, %c0_166] : memref<1x16x32xf32, #tpu.memory_space<vmem>>, vector<1x16x32xf32>
      %389 = vector.broadcast %388 : vector<1x16x32xf32> to vector<2x16x32xf32>
      %390 = arith.addf %387, %389 : vector<2x16x32xf32>
      %391 = vector.shape_cast %390 : vector<2x16x32xf32> to vector<32x32xf32>
      %c0_167 = arith.constant 0 : index
      %c0_168 = arith.constant 0 : index
      %392 = vector.load %arg28[%c0_167, %c0_168] : memref<32x32xf32, #tpu.memory_space<vmem>>, vector<32x32xf32>
      tpu.vector_store %arg28[%c0_167, %c0_168], %391 {strides = array<i32>} : memref<32x32xf32, #tpu.memory_space<vmem>>, vector<32x32xf32>,
    } else {
    }
    %c0 = arith.constant 0 : index
    %c0_1 = arith.constant 0 : index
    %3 = vector.load %arg28[%c0, %c0_1] : memref<32x32xf32, #tpu.memory_space<vmem>>, vector<32x32xf32>
    %4 = arith.truncf %3 : vector<32x32xf32> to vector<32x32xbf16>
    %c0_2 = arith.constant 0 : index
    %c0_3 = arith.constant 0 : index
    %c0_4 = arith.constant 0 : index
    %5 = vector.load %arg13[%c0_2, %c0_3, %c0_4] : memref<1x32x96xbf16, #tpu.memory_space<vmem>>, vector<1x32x96xbf16>
    %6 = vector.shape_cast %5 : vector<1x32x96xbf16> to vector<32x96xbf16>
    %cst = arith.constant dense<0.000000e+00> : vector<32x96xf32>
    %7 = tpu.matmul %4, %6, %cst {dimension_numbers = #tpu.dot_dimension_numbers<[1], [0], [0], [1], [0, 0, 1, 1], [], []>} : vector<32x32xbf16>, vector<32x96xbf16>, vector<32x96xf32> -> vector<32x96xf32>
    %c0_5 = arith.constant 0 : index
    %c0_6 = arith.constant 0 : index
    %c0_7 = arith.constant 0 : index
    %8 = vector.load %arg14[%c0_5, %c0_6, %c0_7] : memref<1x1x96xf32, #tpu.memory_space<vmem>>, vector<1x1x96xf32>
    %9 = vector.shape_cast %8 : vector<1x1x96xf32> to vector<1x96xf32>
    %10 = vector.broadcast %9 : vector<1x96xf32> to vector<32x96xf32>
    %11 = arith.addf %7, %10 : vector<32x96xf32>
    %12 = vector.extract_strided_slice %11 {offsets = [0, 0], sizes = [16, 8], strides = [1, 1]} : vector<32x96xf32> to vector<16x8xf32>
    %13 = arith.truncf %12 : vector<16x8xf32> to vector<16x8xbf16>
    %14 = vector.extract_strided_slice %11 {offsets = [0, 32], sizes = [16, 8], strides = [1, 1]} : vector<32x96xf32> to vector<16x8xf32>
    %15 = arith.truncf %14 : vector<16x8xf32> to vector<16x8xbf16>
    %16 = vector.extract_strided_slice %11 {offsets = [0, 64], sizes = [16, 8], strides = [1, 1]} : vector<32x96xf32> to vector<16x8xf32>
    %17 = arith.truncf %16 : vector<16x8xf32> to vector<16x8xbf16>
    %18 = tpu.transpose %15, [1, 0] : vector<16x8xbf16> -> vector<8x16xbf16>
    %cst_8 = arith.constant dense<0.000000e+00> : vector<16x16xf32>
    %19 = tpu.matmul %13, %18, %cst_8 {dimension_numbers = #tpu.dot_dimension_numbers<[1], [0], [0], [1], [0, 0, 1, 1], [], []>} : vector<16x8xbf16>, vector<8x16xbf16>, vector<16x16xf32> -> vector<16x16xf32>
    %cst_9 = arith.constant 0.353553385 : f32
    %20 = vector.broadcast %cst_9 : f32 to vector<16x16xf32>
    %21 = arith.mulf %19, %20 : vector<16x16xf32>
    %cst_10 = arith.constant dense<0xFF800000> : vector<16xf32>
    %22 = vector.multi_reduction <maximumf>, %21, %cst_10 [1] : vector<16x16xf32> to vector<16xf32>
    %23 = vector.shape_cast %22 : vector<16xf32> to vector<16x1xf32>
    %24 = vector.broadcast %23 : vector<16x1xf32> to vector<16x16xf32>
    %25 = arith.subf %21, %24 : vector<16x16xf32>
    %26 = math.exp %25 : vector<16x16xf32>
    %cst_11 = arith.constant dense<0.000000e+00> : vector<16xf32>
    %27 = vector.multi_reduction <add>, %26, %cst_11 [1] : vector<16x16xf32> to vector<16xf32>
    %28 = vector.shape_cast %27 : vector<16xf32> to vector<16x1xf32>
    %29 = tpu.reciprocal %28 {approx = true} : vector<16x1xf32> -> vector<16x1xf32>
    %30 = vector.broadcast %29 : vector<16x1xf32> to vector<16x16xf32>
    %31 = arith.mulf %26, %30 : vector<16x16xf32>
    %32 = arith.truncf %31 : vector<16x16xf32> to vector<16x16xbf16>
    %cst_12 = arith.constant dense<0.000000e+00> : vector<16x8xf32>
    %33 = tpu.matmul %32, %17, %cst_12 {dimension_numbers = #tpu.dot_dimension_numbers<[1], [0], [0], [1], [0, 0, 1, 1], [], []>} : vector<16x16xbf16>, vector<16x8xbf16>, vector<16x8xf32> -> vector<16x8xf32>
    %34 = vector.extract_strided_slice %11 {offsets = [0, 8], sizes = [16, 8], strides = [1, 1]} : vector<32x96xf32> to vector<16x8xf32>
    %35 = arith.truncf %34 : vector<16x8xf32> to vector<16x8xbf16>
    %36 = vector.extract_strided_slice %11 {offsets = [0, 40], sizes = [16, 8], strides = [1, 1]} : vector<32x96xf32> to vector<16x8xf32>
    %37 = arith.truncf %36 : vector<16x8xf32> to vector<16x8xbf16>
    %38 = vector.extract_strided_slice %11 {offsets = [0, 72], sizes = [16, 8], strides = [1, 1]} : vector<32x96xf32> to vector<16x8xf32>
    %39 = arith.truncf %38 : vector<16x8xf32> to vector<16x8xbf16>
    %40 = tpu.transpose %37, [1, 0] : vector<16x8xbf16> -> vector<8x16xbf16>
    %cst_13 = arith.constant dense<0.000000e+00> : vector<16x16xf32>
    %41 = tpu.matmul %35, %40, %cst_13 {dimension_numbers = #tpu.dot_dimension_numbers<[1], [0], [0], [1], [0, 0, 1, 1], [], []>} : vector<16x8xbf16>, vector<8x16xbf16>, vector<16x16xf32> -> vector<16x16xf32>
    %cst_14 = arith.constant 0.353553385 : f32
    %42 = vector.broadcast %cst_14 : f32 to vector<16x16xf32>
    %43 = arith.mulf %41, %42 : vector<16x16xf32>
    %cst_15 = arith.constant dense<0xFF800000> : vector<16xf32>
    %44 = vector.multi_reduction <maximumf>, %43, %cst_15 [1] : vector<16x16xf32> to vector<16xf32>
    %45 = vector.shape_cast %44 : vector<16xf32> to vector<16x1xf32>
    %46 = vector.broadcast %45 : vector<16x1xf32> to vector<16x16xf32>
    %47 = arith.subf %43, %46 : vector<16x16xf32>
    %48 = math.exp %47 : vector<16x16xf32>
    %cst_16 = arith.constant dense<0.000000e+00> : vector<16xf32>
    %49 = vector.multi_reduction <add>, %48, %cst_16 [1] : vector<16x16xf32> to vector<16xf32>
    %50 = vector.shape_cast %49 : vector<16xf32> to vector<16x1xf32>
    %51 = tpu.reciprocal %50 {approx = true} : vector<16x1xf32> -> vector<16x1xf32>
    %52 = vector.broadcast %51 : vector<16x1xf32> to vector<16x16xf32>
    %53 = arith.mulf %48, %52 : vector<16x16xf32>
    %54 = arith.truncf %53 : vector<16x16xf32> to vector<16x16xbf16>
    %cst_17 = arith.constant dense<0.000000e+00> : vector<16x8xf32>
    %55 = tpu.matmul %54, %39, %cst_17 {dimension_numbers = #tpu.dot_dimension_numbers<[1], [0], [0], [1], [0, 0, 1, 1], [], []>} : vector<16x16xbf16>, vector<16x8xbf16>, vector<16x8xf32> -> vector<16x8xf32>
    %56 = vector.extract_strided_slice %11 {offsets = [0, 16], sizes = [16, 8], strides = [1, 1]} : vector<32x96xf32> to vector<16x8xf32>
    %57 = arith.truncf %56 : vector<16x8xf32> to vector<16x8xbf16>
    %58 = vector.extract_strided_slice %11 {offsets = [0, 48], sizes = [16, 8], strides = [1, 1]} : vector<32x96xf32> to vector<16x8xf32>
    %59 = arith.truncf %58 : vector<16x8xf32> to vector<16x8xbf16>
    %60 = vector.extract_strided_slice %11 {offsets = [0, 80], sizes = [16, 8], strides = [1, 1]} : vector<32x96xf32> to vector<16x8xf32>
    %61 = arith.truncf %60 : vector<16x8xf32> to vector<16x8xbf16>
    %62 = tpu.transpose %59, [1, 0] : vector<16x8xbf16> -> vector<8x16xbf16>
    %cst_18 = arith.constant dense<0.000000e+00> : vector<16x16xf32>
    %63 = tpu.matmul %57, %62, %cst_18 {dimension_numbers = #tpu.dot_dimension_numbers<[1], [0], [0], [1], [0, 0, 1, 1], [], []>} : vector<16x8xbf16>, vector<8x16xbf16>, vector<16x16xf32> -> vector<16x16xf32>
    %cst_19 = arith.constant 0.353553385 : f32
    %64 = vector.broadcast %cst_19 : f32 to vector<16x16xf32>
    %65 = arith.mulf %63, %64 : vector<16x16xf32>
    %cst_20 = arith.constant dense<0xFF800000> : vector<16xf32>
    %66 = vector.multi_reduction <maximumf>, %65, %cst_20 [1] : vector<16x16xf32> to vector<16xf32>
    %67 = vector.shape_cast %66 : vector<16xf32> to vector<16x1xf32>
    %68 = vector.broadcast %67 : vector<16x1xf32> to vector<16x16xf32>
    %69 = arith.subf %65, %68 : vector<16x16xf32>
    %70 = math.exp %69 : vector<16x16xf32>
    %cst_21 = arith.constant dense<0.000000e+00> : vector<16xf32>
    %71 = vector.multi_reduction <add>, %70, %cst_21 [1] : vector<16x16xf32> to vector<16xf32>
    %72 = vector.shape_cast %71 : vector<16xf32> to vector<16x1xf32>
    %73 = tpu.reciprocal %72 {approx = true} : vector<16x1xf32> -> vector<16x1xf32>
    %74 = vector.broadcast %73 : vector<16x1xf32> to vector<16x16xf32>
    %75 = arith.mulf %70, %74 : vector<16x16xf32>
    %76 = arith.truncf %75 : vector<16x16xf32> to vector<16x16xbf16>
    %cst_22 = arith.constant dense<0.000000e+00> : vector<16x8xf32>
    %77 = tpu.matmul %76, %61, %cst_22 {dimension_numbers = #tpu.dot_dimension_numbers<[1], [0], [0], [1], [0, 0, 1, 1], [], []>} : vector<16x16xbf16>, vector<16x8xbf16>, vector<16x8xf32> -> vector<16x8xf32>
    %78 = vector.extract_strided_slice %11 {offsets = [0, 24], sizes = [16, 8], strides = [1, 1]} : vector<32x96xf32> to vector<16x8xf32>
    %79 = arith.truncf %78 : vector<16x8xf32> to vector<16x8xbf16>
    %80 = vector.extract_strided_slice %11 {offsets = [0, 56], sizes = [16, 8], strides = [1, 1]} : vector<32x96xf32> to vector<16x8xf32>
    %81 = arith.truncf %80 : vector<16x8xf32> to vector<16x8xbf16>
    %82 = vector.extract_strided_slice %11 {offsets = [0, 88], sizes = [16, 8], strides = [1, 1]} : vector<32x96xf32> to vector<16x8xf32>
    %83 = arith.truncf %82 : vector<16x8xf32> to vector<16x8xbf16>
    %84 = tpu.transpose %81, [1, 0] : vector<16x8xbf16> -> vector<8x16xbf16>
    %cst_23 = arith.constant dense<0.000000e+00> : vector<16x16xf32>
    %85 = tpu.matmul %79, %84, %cst_23 {dimension_numbers = #tpu.dot_dimension_numbers<[1], [0], [0], [1], [0, 0, 1, 1], [], []>} : vector<16x8xbf16>, vector<8x16xbf16>, vector<16x16xf32> -> vector<16x16xf32>
    %cst_24 = arith.constant 0.353553385 : f32
    %86 = vector.broadcast %cst_24 : f32 to vector<16x16xf32>
    %87 = arith.mulf %85, %86 : vector<16x16xf32>
    %cst_25 = arith.constant dense<0xFF800000> : vector<16xf32>
    %88 = vector.multi_reduction <maximumf>, %87, %cst_25 [1] : vector<16x16xf32> to vector<16xf32>
    %89 = vector.shape_cast %88 : vector<16xf32> to vector<16x1xf32>
    %90 = vector.broadcast %89 : vector<16x1xf32> to vector<16x16xf32>
    %91 = arith.subf %87, %90 : vector<16x16xf32>
    %92 = math.exp %91 : vector<16x16xf32>
    %cst_26 = arith.constant dense<0.000000e+00> : vector<16xf32>
    %93 = vector.multi_reduction <add>, %92, %cst_26 [1] : vector<16x16xf32> to vector<16xf32>
    %94 = vector.shape_cast %93 : vector<16xf32> to vector<16x1xf32>
    %95 = tpu.reciprocal %94 {approx = true} : vector<16x1xf32> -> vector<16x1xf32>
    %96 = vector.broadcast %95 : vector<16x1xf32> to vector<16x16xf32>
    %97 = arith.mulf %92, %96 : vector<16x16xf32>
    %98 = arith.truncf %97 : vector<16x16xf32> to vector<16x16xbf16>
    %cst_27 = arith.constant dense<0.000000e+00> : vector<16x8xf32>
    %99 = tpu.matmul %98, %83, %cst_27 {dimension_numbers = #tpu.dot_dimension_numbers<[1], [0], [0], [1], [0, 0, 1, 1], [], []>} : vector<16x16xbf16>, vector<16x8xbf16>, vector<16x8xf32> -> vector<16x8xf32>
    %100 = tpu.concatenate %33, %55, %77, %99 in 1 : vector<16x8xf32>, vector<16x8xf32>, vector<16x8xf32>, vector<16x8xf32> -> vector<16x32xf32>
    %101 = vector.extract_strided_slice %11 {offsets = [16, 0], sizes = [16, 8], strides = [1, 1]} : vector<32x96xf32> to vector<16x8xf32>
    %102 = arith.truncf %101 : vector<16x8xf32> to vector<16x8xbf16>
    %103 = vector.extract_strided_slice %11 {offsets = [16, 32], sizes = [16, 8], strides = [1, 1]} : vector<32x96xf32> to vector<16x8xf32>
    %104 = arith.truncf %103 : vector<16x8xf32> to vector<16x8xbf16>
    %105 = vector.extract_strided_slice %11 {offsets = [16, 64], sizes = [16, 8], strides = [1, 1]} : vector<32x96xf32> to vector<16x8xf32>
    %106 = arith.truncf %105 : vector<16x8xf32> to vector<16x8xbf16>
    %107 = tpu.transpose %104, [1, 0] : vector<16x8xbf16> -> vector<8x16xbf16>
    %cst_28 = arith.constant dense<0.000000e+00> : vector<16x16xf32>
    %108 = tpu.matmul %102, %107, %cst_28 {dimension_numbers = #tpu.dot_dimension_numbers<[1], [0], [0], [1], [0, 0, 1, 1], [], []>} : vector<16x8xbf16>, vector<8x16xbf16>, vector<16x16xf32> -> vector<16x16xf32>
    %cst_29 = arith.constant 0.353553385 : f32
    %109 = vector.broadcast %cst_29 : f32 to vector<16x16xf32>
    %110 = arith.mulf %108, %109 : vector<16x16xf32>
    %cst_30 = arith.constant dense<0xFF800000> : vector<16xf32>
    %111 = vector.multi_reduction <maximumf>, %110, %cst_30 [1] : vector<16x16xf32> to vector<16xf32>
    %112 = vector.shape_cast %111 : vector<16xf32> to vector<16x1xf32>
    %113 = vector.broadcast %112 : vector<16x1xf32> to vector<16x16xf32>
    %114 = arith.subf %110, %113 : vector<16x16xf32>
    %115 = math.exp %114 : vector<16x16xf32>
    %cst_31 = arith.constant dense<0.000000e+00> : vector<16xf32>
    %116 = vector.multi_reduction <add>, %115, %cst_31 [1] : vector<16x16xf32> to vector<16xf32>
    %117 = vector.shape_cast %116 : vector<16xf32> to vector<16x1xf32>
    %118 = tpu.reciprocal %117 {approx = true} : vector<16x1xf32> -> vector<16x1xf32>
    %119 = vector.broadcast %118 : vector<16x1xf32> to vector<16x16xf32>
    %120 = arith.mulf %115, %119 : vector<16x16xf32>
    %121 = arith.truncf %120 : vector<16x16xf32> to vector<16x16xbf16>
    %cst_32 = arith.constant dense<0.000000e+00> : vector<16x8xf32>
    %122 = tpu.matmul %121, %106, %cst_32 {dimension_numbers = #tpu.dot_dimension_numbers<[1], [0], [0], [1], [0, 0, 1, 1], [], []>} : vector<16x16xbf16>, vector<16x8xbf16>, vector<16x8xf32> -> vector<16x8xf32>
    %123 = vector.extract_strided_slice %11 {offsets = [16, 8], sizes = [16, 8], strides = [1, 1]} : vector<32x96xf32> to vector<16x8xf32>
    %124 = arith.truncf %123 : vector<16x8xf32> to vector<16x8xbf16>
    %125 = vector.extract_strided_slice %11 {offsets = [16, 40], sizes = [16, 8], strides = [1, 1]} : vector<32x96xf32> to vector<16x8xf32>
    %126 = arith.truncf %125 : vector<16x8xf32> to vector<16x8xbf16>
    %127 = vector.extract_strided_slice %11 {offsets = [16, 72], sizes = [16, 8], strides = [1, 1]} : vector<32x96xf32> to vector<16x8xf32>
    %128 = arith.truncf %127 : vector<16x8xf32> to vector<16x8xbf16>
    %129 = tpu.transpose %126, [1, 0] : vector<16x8xbf16> -> vector<8x16xbf16>
    %cst_33 = arith.constant dense<0.000000e+00> : vector<16x16xf32>
    %130 = tpu.matmul %124, %129, %cst_33 {dimension_numbers = #tpu.dot_dimension_numbers<[1], [0], [0], [1], [0, 0, 1, 1], [], []>} : vector<16x8xbf16>, vector<8x16xbf16>, vector<16x16xf32> -> vector<16x16xf32>
    %cst_34 = arith.constant 0.353553385 : f32
    %131 = vector.broadcast %cst_34 : f32 to vector<16x16xf32>
    %132 = arith.mulf %130, %131 : vector<16x16xf32>
    %cst_35 = arith.constant dense<0xFF800000> : vector<16xf32>
    %133 = vector.multi_reduction <maximumf>, %132, %cst_35 [1] : vector<16x16xf32> to vector<16xf32>
    %134 = vector.shape_cast %133 : vector<16xf32> to vector<16x1xf32>
    %135 = vector.broadcast %134 : vector<16x1xf32> to vector<16x16xf32>
    %136 = arith.subf %132, %135 : vector<16x16xf32>
    %137 = math.exp %136 : vector<16x16xf32>
    %cst_36 = arith.constant dense<0.000000e+00> : vector<16xf32>
    %138 = vector.multi_reduction <add>, %137, %cst_36 [1] : vector<16x16xf32> to vector<16xf32>
    %139 = vector.shape_cast %138 : vector<16xf32> to vector<16x1xf32>
    %140 = tpu.reciprocal %139 {approx = true} : vector<16x1xf32> -> vector<16x1xf32>
    %141 = vector.broadcast %140 : vector<16x1xf32> to vector<16x16xf32>
    %142 = arith.mulf %137, %141 : vector<16x16xf32>
    %143 = arith.truncf %142 : vector<16x16xf32> to vector<16x16xbf16>
    %cst_37 = arith.constant dense<0.000000e+00> : vector<16x8xf32>
    %144 = tpu.matmul %143, %128, %cst_37 {dimension_numbers = #tpu.dot_dimension_numbers<[1], [0], [0], [1], [0, 0, 1, 1], [], []>} : vector<16x16xbf16>, vector<16x8xbf16>, vector<16x8xf32> -> vector<16x8xf32>
    %145 = vector.extract_strided_slice %11 {offsets = [16, 16], sizes = [16, 8], strides = [1, 1]} : vector<32x96xf32> to vector<16x8xf32>
    %146 = arith.truncf %145 : vector<16x8xf32> to vector<16x8xbf16>
    %147 = vector.extract_strided_slice %11 {offsets = [16, 48], sizes = [16, 8], strides = [1, 1]} : vector<32x96xf32> to vector<16x8xf32>
    %148 = arith.truncf %147 : vector<16x8xf32> to vector<16x8xbf16>
    %149 = vector.extract_strided_slice %11 {offsets = [16, 80], sizes = [16, 8], strides = [1, 1]} : vector<32x96xf32> to vector<16x8xf32>
    %150 = arith.truncf %149 : vector<16x8xf32> to vector<16x8xbf16>
    %151 = tpu.transpose %148, [1, 0] : vector<16x8xbf16> -> vector<8x16xbf16>
    %cst_38 = arith.constant dense<0.000000e+00> : vector<16x16xf32>
    %152 = tpu.matmul %146, %151, %cst_38 {dimension_numbers = #tpu.dot_dimension_numbers<[1], [0], [0], [1], [0, 0, 1, 1], [], []>} : vector<16x8xbf16>, vector<8x16xbf16>, vector<16x16xf32> -> vector<16x16xf32>
    %cst_39 = arith.constant 0.353553385 : f32
    %153 = vector.broadcast %cst_39 : f32 to vector<16x16xf32>
    %154 = arith.mulf %152, %153 : vector<16x16xf32>
    %cst_40 = arith.constant dense<0xFF800000> : vector<16xf32>
    %155 = vector.multi_reduction <maximumf>, %154, %cst_40 [1] : vector<16x16xf32> to vector<16xf32>
    %156 = vector.shape_cast %155 : vector<16xf32> to vector<16x1xf32>
    %157 = vector.broadcast %156 : vector<16x1xf32> to vector<16x16xf32>
    %158 = arith.subf %154, %157 : vector<16x16xf32>
    %159 = math.exp %158 : vector<16x16xf32>
    %cst_41 = arith.constant dense<0.000000e+00> : vector<16xf32>
    %160 = vector.multi_reduction <add>, %159, %cst_41 [1] : vector<16x16xf32> to vector<16xf32>
    %161 = vector.shape_cast %160 : vector<16xf32> to vector<16x1xf32>
    %162 = tpu.reciprocal %161 {approx = true} : vector<16x1xf32> -> vector<16x1xf32>
    %163 = vector.broadcast %162 : vector<16x1xf32> to vector<16x16xf32>
    %164 = arith.mulf %159, %163 : vector<16x16xf32>
    %165 = arith.truncf %164 : vector<16x16xf32> to vector<16x16xbf16>
    %cst_42 = arith.constant dense<0.000000e+00> : vector<16x8xf32>
    %166 = tpu.matmul %165, %150, %cst_42 {dimension_numbers = #tpu.dot_dimension_numbers<[1], [0], [0], [1], [0, 0, 1, 1], [], []>} : vector<16x16xbf16>, vector<16x8xbf16>, vector<16x8xf32> -> vector<16x8xf32>
    %167 = vector.extract_strided_slice %11 {offsets = [16, 24], sizes = [16, 8], strides = [1, 1]} : vector<32x96xf32> to vector<16x8xf32>
    %168 = arith.truncf %167 : vector<16x8xf32> to vector<16x8xbf16>
    %169 = vector.extract_strided_slice %11 {offsets = [16, 56], sizes = [16, 8], strides = [1, 1]} : vector<32x96xf32> to vector<16x8xf32>
    %170 = arith.truncf %169 : vector<16x8xf32> to vector<16x8xbf16>
    %171 = vector.extract_strided_slice %11 {offsets = [16, 88], sizes = [16, 8], strides = [1, 1]} : vector<32x96xf32> to vector<16x8xf32>
    %172 = arith.truncf %171 : vector<16x8xf32> to vector<16x8xbf16>
    %173 = tpu.transpose %170, [1, 0] : vector<16x8xbf16> -> vector<8x16xbf16>
    %cst_43 = arith.constant dense<0.000000e+00> : vector<16x16xf32>
    %174 = tpu.matmul %168, %173, %cst_43 {dimension_numbers = #tpu.dot_dimension_numbers<[1], [0], [0], [1], [0, 0, 1, 1], [], []>} : vector<16x8xbf16>, vector<8x16xbf16>, vector<16x16xf32> -> vector<16x16xf32>
    %cst_44 = arith.constant 0.353553385 : f32
    %175 = vector.broadcast %cst_44 : f32 to vector<16x16xf32>
    %176 = arith.mulf %174, %175 : vector<16x16xf32>
    %cst_45 = arith.constant dense<0xFF800000> : vector<16xf32>
    %177 = vector.multi_reduction <maximumf>, %176, %cst_45 [1] : vector<16x16xf32> to vector<16xf32>
    %178 = vector.shape_cast %177 : vector<16xf32> to vector<16x1xf32>
    %179 = vector.broadcast %178 : vector<16x1xf32> to vector<16x16xf32>
    %180 = arith.subf %176, %179 : vector<16x16xf32>
    %181 = math.exp %180 : vector<16x16xf32>
    %cst_46 = arith.constant dense<0.000000e+00> : vector<16xf32>
    %182 = vector.multi_reduction <add>, %181, %cst_46 [1] : vector<16x16xf32> to vector<16xf32>
    %183 = vector.shape_cast %182 : vector<16xf32> to vector<16x1xf32>
    %184 = tpu.reciprocal %183 {approx = true} : vector<16x1xf32> -> vector<16x1xf32>
    %185 = vector.broadcast %184 : vector<16x1xf32> to vector<16x16xf32>
    %186 = arith.mulf %181, %185 : vector<16x16xf32>
    %187 = arith.truncf %186 : vector<16x16xf32> to vector<16x16xbf16>
    %cst_47 = arith.constant dense<0.000000e+00> : vector<16x8xf32>
    %188 = tpu.matmul %187, %172, %cst_47 {dimension_numbers = #tpu.dot_dimension_numbers<[1], [0], [0], [1], [0, 0, 1, 1], [], []>} : vector<16x16xbf16>, vector<16x8xbf16>, vector<16x8xf32> -> vector<16x8xf32>
    %189 = tpu.concatenate %122, %144, %166, %188 in 1 : vector<16x8xf32>, vector<16x8xf32>, vector<16x8xf32>, vector<16x8xf32> -> vector<16x32xf32>
    %190 = tpu.concatenate %100, %189 in 0 : vector<16x32xf32>, vector<16x32xf32> -> vector<32x32xf32>
    %191 = arith.truncf %190 : vector<32x32xf32> to vector<32x32xbf16>
    %c0_48 = arith.constant 0 : index
    %c0_49 = arith.constant 0 : index
    %c0_50 = arith.constant 0 : index
    %192 = vector.load %arg15[%c0_48, %c0_49, %c0_50] : memref<1x32x32xbf16, #tpu.memory_space<vmem>>, vector<1x32x32xbf16>
    %193 = vector.shape_cast %192 : vector<1x32x32xbf16> to vector<32x32xbf16>
    %cst_51 = arith.constant dense<0.000000e+00> : vector<32x32xf32>
    %194 = tpu.matmul %191, %193, %cst_51 {dimension_numbers = #tpu.dot_dimension_numbers<[1], [0], [0], [1], [0, 0, 1, 1], [], []>} : vector<32x32xbf16>, vector<32x32xbf16>, vector<32x32xf32> -> vector<32x32xf32>
    %c0_52 = arith.constant 0 : index
    %c0_53 = arith.constant 0 : index
    %c0_54 = arith.constant 0 : index
    %195 = vector.load %arg16[%c0_52, %c0_53, %c0_54] : memref<1x1x32xf32, #tpu.memory_space<vmem>>, vector<1x1x32xf32>
    %196 = vector.shape_cast %195 : vector<1x1x32xf32> to vector<1x32xf32>
    %197 = vector.broadcast %196 : vector<1x32xf32> to vector<32x32xf32>
    %198 = arith.addf %194, %197 : vector<32x32xf32>
    %199 = arith.addf %3, %198 : vector<32x32xf32>
    %cst_55 = arith.constant dense<0.000000e+00> : vector<32xf32>
    %200 = vector.multi_reduction <add>, %199, %cst_55 [1] : vector<32x32xf32> to vector<32xf32>
    %201 = vector.shape_cast %200 : vector<32xf32> to vector<32x1xf32>
    %cst_56 = arith.constant 3.200000e+01 : f32
    %202 = vector.broadcast %cst_56 : f32 to vector<32x1xf32>
    %203 = arith.divf %201, %202 : vector<32x1xf32>
    %204 = vector.broadcast %203 : vector<32x1xf32> to vector<32x32xf32>
    %205 = arith.subf %199, %204 : vector<32x32xf32>
    %206 = arith.mulf %205, %205 : vector<32x32xf32>
    %cst_57 = arith.constant dense<0.000000e+00> : vector<32xf32>
    %207 = vector.multi_reduction <add>, %206, %cst_57 [1] : vector<32x32xf32> to vector<32xf32>
    %208 = vector.shape_cast %207 : vector<32xf32> to vector<32x1xf32>
    %cst_58 = arith.constant 3.200000e+01 : f32
    %209 = vector.broadcast %cst_58 : f32 to vector<32x1xf32>
    %210 = arith.divf %208, %209 : vector<32x1xf32>
    %211 = vector.broadcast %203 : vector<32x1xf32> to vector<32x32xf32>
    %212 = arith.subf %199, %211 : vector<32x32xf32>
    %cst_59 = arith.constant 9.99999974E-6 : f32
    %213 = vector.broadcast %cst_59 : f32 to vector<32x1xf32>
    %214 = arith.addf %210, %213 : vector<32x1xf32>
    %215 = math.rsqrt %214 : vector<32x1xf32>
    %216 = vector.broadcast %215 : vector<32x1xf32> to vector<32x32xf32>
    %217 = arith.mulf %212, %216 : vector<32x32xf32>
    %c0_60 = arith.constant 0 : index
    %c0_61 = arith.constant 0 : index
    %c0_62 = arith.constant 0 : index
    %218 = vector.load %arg17[%c0_60, %c0_61, %c0_62] : memref<1x1x32xf32, #tpu.memory_space<vmem>>, vector<1x1x32xf32>
    %219 = vector.shape_cast %218 : vector<1x1x32xf32> to vector<1x32xf32>
    %220 = vector.broadcast %219 : vector<1x32xf32> to vector<32x32xf32>
    %221 = arith.mulf %217, %220 : vector<32x32xf32>
    %c0_63 = arith.constant 0 : index
    %c0_64 = arith.constant 0 : index
    %c0_65 = arith.constant 0 : index
    %222 = vector.load %arg18[%c0_63, %c0_64, %c0_65] : memref<1x1x32xf32, #tpu.memory_space<vmem>>, vector<1x1x32xf32>
    %223 = vector.shape_cast %222 : vector<1x1x32xf32> to vector<1x32xf32>
    %224 = vector.broadcast %223 : vector<1x32xf32> to vector<32x32xf32>
    %225 = arith.addf %221, %224 : vector<32x32xf32>
    %226 = arith.truncf %225 : vector<32x32xf32> to vector<32x32xbf16>
    %c0_66 = arith.constant 0 : index
    %c0_67 = arith.constant 0 : index
    %c0_68 = arith.constant 0 : index
    %227 = vector.load %arg19[%c0_66, %c0_67, %c0_68] : memref<1x32x64xbf16, #tpu.memory_space<vmem>>, vector<1x32x64xbf16>
    %228 = vector.shape_cast %227 : vector<1x32x64xbf16> to vector<32x64xbf16>
    %cst_69 = arith.constant dense<0.000000e+00> : vector<32x64xf32>
    %229 = tpu.matmul %226, %228, %cst_69 {dimension_numbers = #tpu.dot_dimension_numbers<[1], [0], [0], [1], [0, 0, 1, 1], [], []>} : vector<32x32xbf16>, vector<32x64xbf16>, vector<32x64xf32> -> vector<32x64xf32>
    %c0_70 = arith.constant 0 : index
    %c0_71 = arith.constant 0 : index
    %c0_72 = arith.constant 0 : index
    %230 = vector.load %arg20[%c0_70, %c0_71, %c0_72] : memref<1x1x64xf32, #tpu.memory_space<vmem>>, vector<1x1x64xf32>
    %231 = vector.shape_cast %230 : vector<1x1x64xf32> to vector<1x64xf32>
    %232 = vector.broadcast %231 : vector<1x64xf32> to vector<32x64xf32>
    %233 = arith.addf %229, %232 : vector<32x64xf32>
    %cst_73 = arith.constant 0.000000e+00 : f32
    %234 = vector.broadcast %cst_73 : f32 to vector<32x64xf32>
    %235 = arith.maximumf %233, %234 : vector<32x64xf32>
    %236 = arith.truncf %235 : vector<32x64xf32> to vector<32x64xbf16>
    %c0_74 = arith.constant 0 : index
    %c0_75 = arith.constant 0 : index
    %c0_76 = arith.constant 0 : index
    %237 = vector.load %arg21[%c0_74, %c0_75, %c0_76] : memref<1x64x32xbf16, #tpu.memory_space<vmem>>, vector<1x64x32xbf16>
    %238 = vector.shape_cast %237 : vector<1x64x32xbf16> to vector<64x32xbf16>
    %cst_77 = arith.constant dense<0.000000e+00> : vector<32x32xf32>
    %239 = tpu.matmul %236, %238, %cst_77 {dimension_numbers = #tpu.dot_dimension_numbers<[1], [0], [0], [1], [0, 0, 1, 1], [], []>} : vector<32x64xbf16>, vector<64x32xbf16>, vector<32x32xf32> -> vector<32x32xf32>
    %c0_78 = arith.constant 0 : index
    %c0_79 = arith.constant 0 : index
    %c0_80 = arith.constant 0 : index
    %240 = vector.load %arg22[%c0_78, %c0_79, %c0_80] : memref<1x1x32xf32, #tpu.memory_space<vmem>>, vector<1x1x32xf32>
    %241 = vector.shape_cast %240 : vector<1x1x32xf32> to vector<1x32xf32>
    %242 = vector.broadcast %241 : vector<1x32xf32> to vector<32x32xf32>
    %243 = arith.addf %239, %242 : vector<32x32xf32>
    %244 = arith.addf %225, %243 : vector<32x32xf32>
    %cst_81 = arith.constant dense<0.000000e+00> : vector<32xf32>
    %245 = vector.multi_reduction <add>, %244, %cst_81 [1] : vector<32x32xf32> to vector<32xf32>
    %246 = vector.shape_cast %245 : vector<32xf32> to vector<32x1xf32>
    %cst_82 = arith.constant 3.200000e+01 : f32
    %247 = vector.broadcast %cst_82 : f32 to vector<32x1xf32>
    %248 = arith.divf %246, %247 : vector<32x1xf32>
    %249 = vector.broadcast %248 : vector<32x1xf32> to vector<32x32xf32>
    %250 = arith.subf %244, %249 : vector<32x32xf32>
    %251 = arith.mulf %250, %250 : vector<32x32xf32>
    %cst_83 = arith.constant dense<0.000000e+00> : vector<32xf32>
    %252 = vector.multi_reduction <add>, %251, %cst_83 [1] : vector<32x32xf32> to vector<32xf32>
    %253 = vector.shape_cast %252 : vector<32xf32> to vector<32x1xf32>
    %cst_84 = arith.constant 3.200000e+01 : f32
    %254 = vector.broadcast %cst_84 : f32 to vector<32x1xf32>
    %255 = arith.divf %253, %254 : vector<32x1xf32>
    %256 = vector.broadcast %248 : vector<32x1xf32> to vector<32x32xf32>
    %257 = arith.subf %244, %256 : vector<32x32xf32>
    %cst_85 = arith.constant 9.99999974E-6 : f32
    %258 = vector.broadcast %cst_85 : f32 to vector<32x1xf32>
    %259 = arith.addf %255, %258 : vector<32x1xf32>
    %260 = math.rsqrt %259 : vector<32x1xf32>
    %261 = vector.broadcast %260 : vector<32x1xf32> to vector<32x32xf32>
    %262 = arith.mulf %257, %261 : vector<32x32xf32>
    %c0_86 = arith.constant 0 : index
    %c0_87 = arith.constant 0 : index
    %c0_88 = arith.constant 0 : index
    %263 = vector.load %arg23[%c0_86, %c0_87, %c0_88] : memref<1x1x32xf32, #tpu.memory_space<vmem>>, vector<1x1x32xf32>
    %264 = vector.shape_cast %263 : vector<1x1x32xf32> to vector<1x32xf32>
    %265 = vector.broadcast %264 : vector<1x32xf32> to vector<32x32xf32>
    %266 = arith.mulf %262, %265 : vector<32x32xf32>
    %c0_89 = arith.constant 0 : index
    %c0_90 = arith.constant 0 : index
    %c0_91 = arith.constant 0 : index
    %267 = vector.load %arg24[%c0_89, %c0_90, %c0_91] : memref<1x1x32xf32, #tpu.memory_space<vmem>>, vector<1x1x32xf32>
    %268 = vector.shape_cast %267 : vector<1x1x32xf32> to vector<1x32xf32>
    %269 = vector.broadcast %268 : vector<1x32xf32> to vector<32x32xf32>
    %270 = arith.addf %266, %269 : vector<32x32xf32>
    %c0_92 = arith.constant 0 : index
    %c0_93 = arith.constant 0 : index
    %271 = vector.load %arg28[%c0_92, %c0_93] : memref<32x32xf32, #tpu.memory_space<vmem>>, vector<32x32xf32>
    tpu.vector_store %arg28[%c0_92, %c0_93], %270 {strides = array<i32>} : memref<32x32xf32, #tpu.memory_space<vmem>>, vector<32x32xf32>,
    %c1_i32 = arith.constant 1 : i32
    %272 = arith.cmpi eq, %arg1, %c1_i32 : i32
    %273 = arith.extui %272 : i1 to i32
    %c0_i32_94 = arith.constant 0 : i32
    %274 = arith.cmpi ne, %273, %c0_i32_94 : i32
    scf.if %274 {
      %275 = vector.shape_cast %270 : vector<32x32xf32> to vector<2x16x32xf32>
      %cst_95 = arith.constant dense<0.000000e+00> : vector<2x32xf32>
      %276 = vector.multi_reduction <add>, %275, %cst_95 [1] : vector<2x16x32xf32> to vector<2x32xf32>
      %cst_96 = arith.constant 1.600000e+01 : f32
      %277 = vector.broadcast %cst_96 : f32 to vector<2x32xf32>
      %278 = arith.divf %276, %277 : vector<2x32xf32>
      %279 = arith.truncf %278 : vector<2x32xf32> to vector<2x32xbf16>
      %c0_97 = arith.constant 0 : index
      %c0_98 = arith.constant 0 : index
      %280 = vector.load %arg25[%c0_97, %c0_98] : memref<32x5xbf16, #tpu.memory_space<vmem>>, vector<32x5xbf16>
      %cst_99 = arith.constant dense<0.000000e+00> : vector<2x5xf32>
      %281 = tpu.matmul %279, %280, %cst_99 {dimension_numbers = #tpu.dot_dimension_numbers<[1], [0], [0], [1], [0, 0, 1, 1], [], []>} : vector<2x32xbf16>, vector<32x5xbf16>, vector<2x5xf32> -> vector<2x5xf32>
      %c0_100 = arith.constant 0 : index
      %c0_101 = arith.constant 0 : index
      %282 = vector.load %arg26[%c0_100, %c0_101] : memref<1x5xf32, #tpu.memory_space<vmem>>, vector<1x5xf32>
      %283 = vector.broadcast %282 : vector<1x5xf32> to vector<2x5xf32>
      %284 = arith.addf %281, %283 : vector<2x5xf32>
      %c0_102 = arith.constant 0 : index
      %c0_103 = arith.constant 0 : index
      %285 = vector.load %arg27[%c0_102, %c0_103] : memref<2x5xf32, #tpu.memory_space<vmem>>, vector<2x5xf32>
      tpu.vector_store %arg27[%c0_102, %c0_103], %284 {strides = array<i32>} : memref<2x5xf32, #tpu.memory_space<vmem>>, vector<2x5xf32>,
    } else {
    }
    return
  }
  func.func @transform_0(%arg0: i32, %arg1: i32) -> (i32, i32, i32) {
    %c0_i32 = arith.constant 0 : i32
    %c0_i32_0 = arith.constant 0 : i32
    %c0_i32_1 = arith.constant 0 : i32
    return %arg0, %c0_i32, %c0_i32_0 : i32, i32, i32
  }
  func.func @transform_1(%arg0: i32, %arg1: i32) -> (i32, i32, i32) {
    %c0_i32 = arith.constant 0 : i32
    %c0_i32_0 = arith.constant 0 : i32
    %c0_i32_1 = arith.constant 0 : i32
    %c0_i32_2 = arith.constant 0 : i32
    return %c0_i32, %c0_i32_0, %c0_i32_1 : i32, i32, i32
  }
  func.func @transform_2(%arg0: i32, %arg1: i32) -> (i32, i32, i32) {
    %c0_i32 = arith.constant 0 : i32
    %c0_i32_0 = arith.constant 0 : i32
    %c0_i32_1 = arith.constant 0 : i32
    %c0_i32_2 = arith.constant 0 : i32
    return %c0_i32, %c0_i32_0, %c0_i32_1 : i32, i32, i32
  }
  func.func @transform_3(%arg0: i32, %arg1: i32) -> (i32, i32) {
    %c0_i32 = arith.constant 0 : i32
    %c0_i32_0 = arith.constant 0 : i32
    %c0_i32_1 = arith.constant 0 : i32
    return %c0_i32, %c0_i32_0 : i32, i32
  }
  func.func @transform_4(%arg0: i32, %arg1: i32) -> (i32, i32) {
    %c0_i32 = arith.constant 0 : i32
    %c0_i32_0 = arith.constant 0 : i32
    %c0_i32_1 = arith.constant 0 : i32
    return %c0_i32, %c0_i32_0 : i32, i32
  }
  func.func @transform_5(%arg0: i32, %arg1: i32) -> (i32, i32, i32) {
    %c0_i32 = arith.constant 0 : i32
    %c0_i32_0 = arith.constant 0 : i32
    %c0_i32_1 = arith.constant 0 : i32
    %c0_i32_2 = arith.constant 0 : i32
    return %c0_i32, %c0_i32_0, %c0_i32_1 : i32, i32, i32
  }
  func.func @transform_6(%arg0: i32, %arg1: i32) -> (i32, i32) {
    %c0_i32 = arith.constant 0 : i32
    %c0_i32_0 = arith.constant 0 : i32
    %c0_i32_1 = arith.constant 0 : i32
    return %c0_i32, %c0_i32_0 : i32, i32
  }
  func.func @transform_7(%arg0: i32, %arg1: i32) -> (i32, i32) {
    %c0_i32 = arith.constant 0 : i32
    %c0_i32_0 = arith.constant 0 : i32
    %c0_i32_1 = arith.constant 0 : i32
    return %c0_i32, %c0_i32_0 : i32, i32
  }
  func.func @transform_8(%arg0: i32, %arg1: i32) -> (i32, i32, i32) {
    %c0_i32 = arith.constant 0 : i32
    %c0_i32_0 = arith.constant 0 : i32
    %c0_i32_1 = arith.constant 0 : i32
    %c0_i32_2 = arith.constant 0 : i32
    return %c0_i32, %c0_i32_0, %c0_i32_1 : i32, i32, i32
  }
  func.func @transform_9(%arg0: i32, %arg1: i32) -> (i32, i32) {
    %c0_i32 = arith.constant 0 : i32
    %c0_i32_0 = arith.constant 0 : i32
    %c0_i32_1 = arith.constant 0 : i32
    return %c0_i32, %c0_i32_0 : i32, i32
  }
  func.func @transform_10(%arg0: i32, %arg1: i32) -> (i32, i32) {
    %c0_i32 = arith.constant 0 : i32
    %c0_i32_0 = arith.constant 0 : i32
    %c0_i32_1 = arith.constant 0 : i32
    return %c0_i32, %c0_i32_0 : i32, i32
  }
  func.func @transform_11(%arg0: i32, %arg1: i32) -> (i32, i32, i32) {
    %c0_i32 = arith.constant 0 : i32
    %c0_i32_0 = arith.constant 0 : i32
    %c0_i32_1 = arith.constant 0 : i32
    return %arg1, %c0_i32, %c0_i32_0 : i32, i32, i32
  }
  func.func @transform_12(%arg0: i32, %arg1: i32) -> (i32, i32, i32) {
    %c0_i32 = arith.constant 0 : i32
    %c0_i32_0 = arith.constant 0 : i32
    %c0_i32_1 = arith.constant 0 : i32
    return %arg1, %c0_i32, %c0_i32_0 : i32, i32, i32
  }
  func.func @transform_13(%arg0: i32, %arg1: i32) -> (i32, i32, i32) {
    %c0_i32 = arith.constant 0 : i32
    %c0_i32_0 = arith.constant 0 : i32
    %c0_i32_1 = arith.constant 0 : i32
    return %arg1, %c0_i32, %c0_i32_0 : i32, i32, i32
  }
  func.func @transform_14(%arg0: i32, %arg1: i32) -> (i32, i32, i32) {
    %c0_i32 = arith.constant 0 : i32
    %c0_i32_0 = arith.constant 0 : i32
    %c0_i32_1 = arith.constant 0 : i32
    return %arg1, %c0_i32, %c0_i32_0 : i32, i32, i32
  }
  func.func @transform_15(%arg0: i32, %arg1: i32) -> (i32, i32, i32) {
    %c0_i32 = arith.constant 0 : i32
    %c0_i32_0 = arith.constant 0 : i32
    %c0_i32_1 = arith.constant 0 : i32
    return %arg1, %c0_i32, %c0_i32_0 : i32, i32, i32
  }
  func.func @transform_16(%arg0: i32, %arg1: i32) -> (i32, i32, i32) {
    %c0_i32 = arith.constant 0 : i32
    %c0_i32_0 = arith.constant 0 : i32
    %c0_i32_1 = arith.constant 0 : i32
    return %arg1, %c0_i32, %c0_i32_0 : i32, i32, i32
  }
  func.func @transform_17(%arg0: i32, %arg1: i32) -> (i32, i32, i32) {
    %c0_i32 = arith.constant 0 : i32
    %c0_i32_0 = arith.constant 0 : i32
    %c0_i32_1 = arith.constant 0 : i32
    return %arg1, %c0_i32, %c0_i32_0 : i32, i32, i32
  }
  func.func @transform_18(%arg0: i32, %arg1: i32) -> (i32, i32, i32) {
    %c0_i32 = arith.constant 0 : i32
    %c0_i32_0 = arith.constant 0 : i32
    %c0_i32_1 = arith.constant 0 : i32
    return %arg1, %c0_i32, %c0_i32_0 : i32, i32, i32
  }
  func.func @transform_19(%arg0: i32, %arg1: i32) -> (i32, i32, i32) {
    %c0_i32 = arith.constant 0 : i32
    %c0_i32_0 = arith.constant 0 : i32
    %c0_i32_1 = arith.constant 0 : i32
    return %arg1, %c0_i32, %c0_i32_0 : i32, i32, i32
  }
  func.func @transform_20(%arg0: i32, %arg1: i32) -> (i32, i32, i32) {
    %c0_i32 = arith.constant 0 : i32
    %c0_i32_0 = arith.constant 0 : i32
    %c0_i32_1 = arith.constant 0 : i32
    return %arg1, %c0_i32, %c0_i32_0 : i32, i32, i32
  }
  func.func @transform_21(%arg0: i32, %arg1: i32) -> (i32, i32, i32) {
    %c0_i32 = arith.constant 0 : i32
    %c0_i32_0 = arith.constant 0 : i32
    %c0_i32_1 = arith.constant 0 : i32
    return %arg1, %c0_i32, %c0_i32_0 : i32, i32, i32
  }
  func.func @transform_22(%arg0: i32, %arg1: i32) -> (i32, i32, i32) {
    %c0_i32 = arith.constant 0 : i32
    %c0_i32_0 = arith.constant 0 : i32
    %c0_i32_1 = arith.constant 0 : i32
    return %arg1, %c0_i32, %c0_i32_0 : i32, i32, i32
  }
  func.func @transform_23(%arg0: i32, %arg1: i32) -> (i32, i32) {
    %c0_i32 = arith.constant 0 : i32
    %c0_i32_0 = arith.constant 0 : i32
    %c0_i32_1 = arith.constant 0 : i32
    return %c0_i32, %c0_i32_0 : i32, i32
  }
  func.func @transform_24(%arg0: i32, %arg1: i32) -> (i32, i32) {
    %c0_i32 = arith.constant 0 : i32
    %c0_i32_0 = arith.constant 0 : i32
    %c0_i32_1 = arith.constant 0 : i32
    return %c0_i32, %c0_i32_0 : i32, i32
  }
  func.func @transform_25(%arg0: i32, %arg1: i32) -> (i32, i32) {
    %c0_i32 = arith.constant 0 : i32
    %c0_i32_0 = arith.constant 0 : i32
    return %arg0, %c0_i32 : i32, i32
  }
}

</mosaic_0001>

<llo_original>
// kernel: tpu_custom_call.1
$region0: #{tpu_custom_call.1}
  #allocation0 [shape = 'u32[]', space=smem, size = 0x4, offset = 0x4, fixed_abs, tag = 'smem constant byte address 0x4 - core index']
  #allocation1 [shape = 'u32[144,128]{1,0:T(1,128)}', space=vmem, size = 0x12000, scoped, tag = 'internal scratch']
  #allocation2 [shape = 'f32[32,32]{1,0:T(8,128)}', space=vmem, size = 0x4000, scoped, tag = 'scratch operand']
  %s0 = inlined_call_operand.vmem [shape: f32[2,16,4], index: 0, kind: input, shape index: {}]
  %s1 = inlined_call_operand.hbm [shape: f32[1,16,32], index: 1, kind: input, shape index: {}]
  %s2 = inlined_call_operand.hbm [shape: bf16[5,4,8], index: 2, kind: input, shape index: {}]
  %s3 = inlined_call_operand.hbm [shape: f32[1,8], index: 3, kind: input, shape index: {}]
  %s4 = inlined_call_operand.hbm [shape: f32[1,8], index: 4, kind: input, shape index: {}]
  %s5 = inlined_call_operand.vmem [shape: bf16[3,8,16], index: 5, kind: input, shape index: {}]
  %s6 = inlined_call_operand.hbm [shape: f32[1,16], index: 6, kind: input, shape index: {}]
  %s7 = inlined_call_operand.hbm [shape: f32[1,16], index: 7, kind: input, shape index: {}]
  %s8 = inlined_call_operand.vmem [shape: bf16[3,16,32], index: 8, kind: input, shape index: {}]
  %s9 = inlined_call_operand.hbm [shape: f32[1,32], index: 9, kind: input, shape index: {}]
  %s10 = inlined_call_operand.hbm [shape: f32[1,32], index: 10, kind: input, shape index: {}]
  %s11 = inlined_call_operand.vmem [shape: bf16[2,32,96], index: 11, kind: input, shape index: {}]
  %s12 = inlined_call_operand.vmem [shape: f32[2,1,96], index: 12, kind: input, shape index: {}]
  %s13 = inlined_call_operand.vmem [shape: bf16[2,32,32], index: 13, kind: input, shape index: {}]
  %s14 = inlined_call_operand.vmem [shape: f32[2,1,32], index: 14, kind: input, shape index: {}]
  %s15 = inlined_call_operand.vmem [shape: f32[2,1,32], index: 15, kind: input, shape index: {}]
  %s16 = inlined_call_operand.vmem [shape: f32[2,1,32], index: 16, kind: input, shape index: {}]
  %s17 = inlined_call_operand.vmem [shape: bf16[2,32,64], index: 17, kind: input, shape index: {}]
  %s18 = inlined_call_operand.vmem [shape: f32[2,1,64], index: 18, kind: input, shape index: {}]
  %s19 = inlined_call_operand.vmem [shape: bf16[2,64,32], index: 19, kind: input, shape index: {}]
  %s20 = inlined_call_operand.vmem [shape: f32[2,1,32], index: 20, kind: input, shape index: {}]
  %s21 = inlined_call_operand.vmem [shape: f32[2,1,32], index: 21, kind: input, shape index: {}]
  %s22 = inlined_call_operand.vmem [shape: f32[2,1,32], index: 22, kind: input, shape index: {}]
  %s23 = inlined_call_operand.vmem [shape: bf16[32,5], index: 23, kind: input, shape index: {}]
  %s24 = inlined_call_operand.vmem [shape: f32[1,5], index: 24, kind: input, shape index: {}]
  %s25 = inlined_call_operand.hbm [shape: f32[2,5], index: 25, kind: output, shape index: {}]
  %s26 = sld [smem:[#allocation0]]
  $region173: #{tpu_custom_call.1} parent=0
    _
  %s28 = ssub.s32 1, %s26
  %s29 = scalar_select 0, %s28, %s26
  $region1: #{tpu_custom_call.1} parent=0
    #allocation3 [shape = 'u8[8192]{0}', space=vmem, size = 0x2000, scoped, tag = 'input window, operand 1, single buffered']
    #allocation4 [shape = 's32[2]{0}', space=sflag, size = 0x8, scoped, tag = 'scoped memory for tpu_custom_call.1']
    #allocation5 [shape = 's32[2]{0}', space=sflag, size = 0x8, scoped, tag = 'scoped memory for tpu_custom_call.1']
    #allocation6 [shape = 'u8[5120]{0}', space=vmem, size = 0x1400, scoped, tag = 'input window, operand 2, single buffered']
    #allocation7 [shape = 's32[1]{0}', space=sflag, size = 0x4, scoped, tag = 'scoped memory for tpu_custom_call.1']
    #allocation8 [shape = 'u8[512]{0}', space=vmem, size = 0x400, scoped, tag = 'input window, operand 3, single buffered']
    #allocation9 [shape = 'u8[512]{0}', space=vmem, size = 0x400, scoped, tag = 'input window, operand 4, single buffered']
    #allocation10 [shape = 's32[1]{0}', space=sflag, size = 0x4, scoped, tag = 'scoped memory for tpu_custom_call.1']
    #allocation11 [shape = 'u8[512]{0}', space=vmem, size = 0x400, scoped, tag = 'input window, operand 6, single buffered']
    #allocation12 [shape = 'u8[512]{0}', space=vmem, size = 0x400, scoped, tag = 'input window, operand 7, single buffered']
    #allocation13 [shape = 's32[1]{0}', space=sflag, size = 0x4, scoped, tag = 'scoped memory for tpu_custom_call.1']
    #allocation14 [shape = 'u8[512]{0}', space=vmem, size = 0x400, scoped, tag = 'input window, operand 9, single buffered']
    #allocation15 [shape = 'u8[512]{0}', space=vmem, size = 0x400, scoped, tag = 'input window, operand 10, single buffered']
    #allocation16 [shape = 's32[1]{0}', space=sflag, size = 0x4, scoped, tag = 'scoped memory for tpu_custom_call.1']
    #allocation17 [shape = 'u8[1024]{0}', space=vmem, size = 0x400, scoped, tag = 'output window, operand 0, single buffered']
    %30 = vsyncpa [#allocation4], 0
    %31 = vsyncpa [#allocation7], 0
    %32 = vsyncpa [#allocation10], 0
    %33 = vsyncpa [#allocation13], 0
    %34 = vsyncpa [#allocation16], 0
    %35 = vsyncpa [#allocation5], 0
    loop: start=0, step=1, limit=4
    $region2: #{tpu_custom_call.1} parent=1 // loop_pre_header
      _
    $region3: #{tpu_custom_call.1} parent=1 // loop_header
      %s37 = sphi 0, %s41
      %p38 = scmp.ge.s32.totalorder %s37, 4
      %s44 = sphi 0, %s56
      %s45 = sphi 0, %s52
      %s46 = sphi 0, %s44
      %s47 = sphi 0, %s45
      %s48 = sphi 0, %s46
      %s49 = sphi 0, %s47
      %s59 = sphi 0, %s61
      %s62 = sphi 0, %s59
      %s63 = sphi 0, %s62
      %s79 = sphi 0, %s63
      %s83 = sphi 0, %s83
      %s85 = sphi 0, %s83
      %s86 = sphi 0, %s85
      %s100 = sphi 0, %s86
      %s104 = sphi 0, %s104
      %s106 = sphi 0, %s104
      %s107 = sphi 0, %s106
      %s121 = sphi 0, %s107
      %s125 = sphi 0, %s125
      %s127 = sphi 0, %s125
      %s128 = sphi 0, %s127
      %s142 = sphi 0, %s128
      %s146 = sphi 0, %s146
      %s148 = sphi 0, %s146
      %s149 = sphi 0, %s148
      %s163 = sphi 0, %s149
      %s167 = sphi 0, %s167
      %s169 = sphi 0, %s167
      %s170 = sphi 0, %s169
      %s184 = sphi 0, %s170
      %s188 = sphi 0, %s188
      %s190 = sphi 0, %s188
      %s191 = sphi 0, %s190
      %s205 = sphi 0, %s191
      %s209 = sphi 0, %s209
      %s211 = sphi 0, %s209
      %s212 = sphi 0, %s211
      %s226 = sphi 0, %s212
      %s230 = sphi 0, %s230
      %s232 = sphi 0, %s230
      %s233 = sphi 0, %s232
      %s247 = sphi 0, %s233
      %s251 = sphi 0, %s251
      %s253 = sphi 0, %s251
      %s254 = sphi 0, %s253
      %s268 = sphi 0, %s254
      %s272 = sphi 0, %s272
      %s274 = sphi 0, %s272
      %s275 = sphi 0, %s274
      %s289 = sphi 0, %s275
      %s295 = sphi 0, %s297
      %s298 = sphi 0, %s295
      %s299 = sphi 0, %s298
      %s315 = sphi 0, %s299
      %s321 = sphi 0, %s323
      %s324 = sphi 0, %s321
      %s325 = sphi 0, %s324
      %s341 = sphi 0, %s325
      %s347 = sphi 0, %s349
      %s350 = sphi 0, %s347
      %s351 = sphi 0, %s350
      %s367 = sphi 0, %s351
      %s373 = sphi 0, %s375
      %s376 = sphi 0, %s373
      %s377 = sphi 0, %s376
      %s393 = sphi 0, %s377
      %s399 = sphi 0, %s401
      %s402 = sphi 0, %s399
      %s403 = sphi 0, %s402
      %s419 = sphi 0, %s403
      %s425 = sphi 0, %s427
      %s428 = sphi 0, %s425
      %s429 = sphi 0, %s428
      %s445 = sphi 0, %s429
      %s451 = sphi 0, %s453
      %s454 = sphi 0, %s451
      %s455 = sphi 0, %s454
      %s471 = sphi 0, %s455
      %s477 = sphi 0, %s479
      %s480 = sphi 0, %s477
      %s481 = sphi 0, %s480
      %s497 = sphi 0, %s481
      %s503 = sphi 0, %s505
      %s506 = sphi 0, %s503
      %s507 = sphi 0, %s506
      %s523 = sphi 0, %s507
      %s529 = sphi 0, %s531
      %s532 = sphi 0, %s529
      %s533 = sphi 0, %s532
      %s549 = sphi 0, %s533
      %s555 = sphi 0, %s557
      %s558 = sphi 0, %s555
      %s559 = sphi 0, %s558
      %s575 = sphi 0, %s559
      %s581 = sphi 0, %s583
      %s584 = sphi 0, %s581
      %s585 = sphi 0, %s584
      %s601 = sphi 0, %s585
      %s605 = sphi 0, %s605
      %s607 = sphi 0, %s605
      %s608 = sphi 0, %s607
      %s622 = sphi 0, %s608
      %s626 = sphi 0, %s626
      %s628 = sphi 0, %s626
      %s629 = sphi 0, %s628
      %s643 = sphi 0, %s629
      %s649 = sphi 0, %s651
      %s652 = sphi 0, %s649
      %s653 = sphi 0, %s652
      %s669 = sphi 0, %s653
    $region4: #{tpu_custom_call.1} parent=1 // loop_header_branch
      %40 = sbr.rel (%p38) target = $region8
    $region5: #{tpu_custom_call.1} parent=1 // loop_body
      %s42 = ssub.s32 %s37, 1
      %s43 = ssub.s32 %s37, 2
      %s50 = sadd.s32 1, %s45
      %p51 = scmp.ge.s32.totalorder %s50, 2
      %s52 = scalar_select %p51, 0, %s50
      %s53 = sadd.s32 1, %s44
      %s54 = scalar_select %p51, %s53, %s44
      %p55 = scmp.ge.s32.totalorder %s54, 1
      %s56 = scalar_select %p55, 0, %s54
      %s57 = ssub.s32 %s44, %s56
      %p58 = scmp.eq.s32.totalorder %s57, 0
      %s60 = sadd.s32 %s59, 1
      %s61 = scalar_select %p58, %s59, %s60
      %p64 = pneg %p58
      %p65 = scmp.eq.s32.totalorder %s37, 1
      %p66 = por %p64, %p65
      %p67 = scmp.ne.s32.totalorder %s59, %s62
      %p68 = scmp.eq.s32.totalorder %s37, 0
      %p69 = por %p67, %p68
      %p70 = scmp.ne.s32.totalorder %s59, %s62
      %p71 = scmp.eq.s32.totalorder %s42, 1
      %p72 = por %p70, %p71
      %p73 = scmp.ne.s32.totalorder %s62, %s63
      %p74 = scmp.eq.s32.totalorder %s42, 0
      %p75 = por %p73, %p74
      %p76 = scmp.ne.s32.totalorder %s62, %s63
      %p77 = scmp.eq.s32.totalorder %s43, 1
      %p78 = por %p76, %p77
      %p80 = scmp.ne.s32.totalorder %s63, %s79
      %p81 = scmp.eq.s32.totalorder %s43, 0
      %p82 = por %p80, %p81
      %s84 = sadd.s32 %s83, 1
      %p87 = scmp.eq.s32.totalorder %s37, 1
      %p88 = scmp.ne.s32.totalorder %s83, %s85
      %p89 = scmp.eq.s32.totalorder %s37, 0
      %p90 = por %p88, %p89
      %p91 = scmp.ne.s32.totalorder %s83, %s85
      %p92 = scmp.eq.s32.totalorder %s42, 1
      %p93 = por %p91, %p92
      %p94 = scmp.ne.s32.totalorder %s85, %s86
      %p95 = scmp.eq.s32.totalorder %s42, 0
      %p96 = por %p94, %p95
      %p97 = scmp.ne.s32.totalorder %s85, %s86
      %p98 = scmp.eq.s32.totalorder %s43, 1
      %p99 = por %p97, %p98
      %p101 = scmp.ne.s32.totalorder %s86, %s100
      %p102 = scmp.eq.s32.totalorder %s43, 0
      %p103 = por %p101, %p102
      %s105 = sadd.s32 %s104, 1
      %p108 = scmp.eq.s32.totalorder %s37, 1
      %p109 = scmp.ne.s32.totalorder %s104, %s106
      %p110 = scmp.eq.s32.totalorder %s37, 0
      %p111 = por %p109, %p110
      %p112 = scmp.ne.s32.totalorder %s104, %s106
      %p113 = scmp.eq.s32.totalorder %s42, 1
      %p114 = por %p112, %p113
      %p115 = scmp.ne.s32.totalorder %s106, %s107
      %p116 = scmp.eq.s32.totalorder %s42, 0
      %p117 = por %p115, %p116
      %p118 = scmp.ne.s32.totalorder %s106, %s107
      %p119 = scmp.eq.s32.totalorder %s43, 1
      %p120 = por %p118, %p119
      %p122 = scmp.ne.s32.totalorder %s107, %s121
      %p123 = scmp.eq.s32.totalorder %s43, 0
      %p124 = por %p122, %p123
      %s126 = sadd.s32 %s125, 1
      %p129 = scmp.eq.s32.totalorder %s37, 1
      %p130 = scmp.ne.s32.totalorder %s125, %s127
      %p131 = scmp.eq.s32.totalorder %s37, 0
      %p132 = por %p130, %p131
      %p133 = scmp.ne.s32.totalorder %s125, %s127
      %p134 = scmp.eq.s32.totalorder %s42, 1
      %p135 = por %p133, %p134
      %p136 = scmp.ne.s32.totalorder %s127, %s128
      %p137 = scmp.eq.s32.totalorder %s42, 0
      %p138 = por %p136, %p137
      %p139 = scmp.ne.s32.totalorder %s127, %s128
      %p140 = scmp.eq.s32.totalorder %s43, 1
      %p141 = por %p139, %p140
      %p143 = scmp.ne.s32.totalorder %s128, %s142
      %p144 = scmp.eq.s32.totalorder %s43, 0
      %p145 = por %p143, %p144
      %s147 = sadd.s32 %s146, 1
      %p150 = scmp.eq.s32.totalorder %s37, 1
      %p151 = scmp.ne.s32.totalorder %s146, %s148
      %p152 = scmp.eq.s32.totalorder %s37, 0
      %p153 = por %p151, %p152
      %p154 = scmp.ne.s32.totalorder %s146, %s148
      %p155 = scmp.eq.s32.totalorder %s42, 1
      %p156 = por %p154, %p155
      %p157 = scmp.ne.s32.totalorder %s148, %s149
      %p158 = scmp.eq.s32.totalorder %s42, 0
      %p159 = por %p157, %p158
      %p160 = scmp.ne.s32.totalorder %s148, %s149
      %p161 = scmp.eq.s32.totalorder %s43, 1
      %p162 = por %p160, %p161
      %p164 = scmp.ne.s32.totalorder %s149, %s163
      %p165 = scmp.eq.s32.totalorder %s43, 0
      %p166 = por %p164, %p165
      %s168 = sadd.s32 %s167, 1
      %p171 = scmp.eq.s32.totalorder %s37, 1
      %p172 = scmp.ne.s32.totalorder %s167, %s169
      %p173 = scmp.eq.s32.totalorder %s37, 0
      %p174 = por %p172, %p173
      %p175 = scmp.ne.s32.totalorder %s167, %s169
      %p176 = scmp.eq.s32.totalorder %s42, 1
      %p177 = por %p175, %p176
      %p178 = scmp.ne.s32.totalorder %s169, %s170
      %p179 = scmp.eq.s32.totalorder %s42, 0
      %p180 = por %p178, %p179
      %p181 = scmp.ne.s32.totalorder %s169, %s170
      %p182 = scmp.eq.s32.totalorder %s43, 1
      %p183 = por %p181, %p182
      %p185 = scmp.ne.s32.totalorder %s170, %s184
      %p186 = scmp.eq.s32.totalorder %s43, 0
      %p187 = por %p185, %p186
      %s189 = sadd.s32 %s188, 1
      %p192 = scmp.eq.s32.totalorder %s37, 1
      %p193 = scmp.ne.s32.totalorder %s188, %s190
      %p194 = scmp.eq.s32.totalorder %s37, 0
      %p195 = por %p193, %p194
      %p196 = scmp.ne.s32.totalorder %s188, %s190
      %p197 = scmp.eq.s32.totalorder %s42, 1
      %p198 = por %p196, %p197
      %p199 = scmp.ne.s32.totalorder %s190, %s191
      %p200 = scmp.eq.s32.totalorder %s42, 0
      %p201 = por %p199, %p200
      %p202 = scmp.ne.s32.totalorder %s190, %s191
      %p203 = scmp.eq.s32.totalorder %s43, 1
      %p204 = por %p202, %p203
      %p206 = scmp.ne.s32.totalorder %s191, %s205
      %p207 = scmp.eq.s32.totalorder %s43, 0
      %p208 = por %p206, %p207
      %s210 = sadd.s32 %s209, 1
      %p213 = scmp.eq.s32.totalorder %s37, 1
      %p214 = scmp.ne.s32.totalorder %s209, %s211
      %p215 = scmp.eq.s32.totalorder %s37, 0
      %p216 = por %p214, %p215
      %p217 = scmp.ne.s32.totalorder %s209, %s211
      %p218 = scmp.eq.s32.totalorder %s42, 1
      %p219 = por %p217, %p218
      %p220 = scmp.ne.s32.totalorder %s211, %s212
      %p221 = scmp.eq.s32.totalorder %s42, 0
      %p222 = por %p220, %p221
      %p223 = scmp.ne.s32.totalorder %s211, %s212
      %p224 = scmp.eq.s32.totalorder %s43, 1
      %p225 = por %p223, %p224
      %p227 = scmp.ne.s32.totalorder %s212, %s226
      %p228 = scmp.eq.s32.totalorder %s43, 0
      %p229 = por %p227, %p228
      %s231 = sadd.s32 %s230, 1
      %p234 = scmp.eq.s32.totalorder %s37, 1
      %p235 = scmp.ne.s32.totalorder %s230, %s232
      %p236 = scmp.eq.s32.totalorder %s37, 0
      %p237 = por %p235, %p236
      %p238 = scmp.ne.s32.totalorder %s230, %s232
      %p239 = scmp.eq.s32.totalorder %s42, 1
      %p240 = por %p238, %p239
      %p241 = scmp.ne.s32.totalorder %s232, %s233
      %p242 = scmp.eq.s32.totalorder %s42, 0
      %p243 = por %p241, %p242
      %p244 = scmp.ne.s32.totalorder %s232, %s233
      %p245 = scmp.eq.s32.totalorder %s43, 1
      %p246 = por %p244, %p245
      %p248 = scmp.ne.s32.totalorder %s233, %s247
      %p249 = scmp.eq.s32.totalorder %s43, 0
      %p250 = por %p248, %p249
      %s252 = sadd.s32 %s251, 1
      %p255 = scmp.eq.s32.totalorder %s37, 1
      %p256 = scmp.ne.s32.totalorder %s251, %s253
      %p257 = scmp.eq.s32.totalorder %s37, 0
      %p258 = por %p256, %p257
      %p259 = scmp.ne.s32.totalorder %s251, %s253
      %p260 = scmp.eq.s32.totalorder %s42, 1
      %p261 = por %p259, %p260
      %p262 = scmp.ne.s32.totalorder %s253, %s254
      %p263 = scmp.eq.s32.totalorder %s42, 0
      %p264 = por %p262, %p263
      %p265 = scmp.ne.s32.totalorder %s253, %s254
      %p266 = scmp.eq.s32.totalorder %s43, 1
      %p267 = por %p265, %p266
      %p269 = scmp.ne.s32.totalorder %s254, %s268
      %p270 = scmp.eq.s32.totalorder %s43, 0
      %p271 = por %p269, %p270
      %s273 = sadd.s32 %s272, 1
      %p276 = scmp.eq.s32.totalorder %s37, 1
      %p277 = scmp.ne.s32.totalorder %s272, %s274
      %p278 = scmp.eq.s32.totalorder %s37, 0
      %p279 = por %p277, %p278
      %p280 = scmp.ne.s32.totalorder %s272, %s274
      %p281 = scmp.eq.s32.totalorder %s42, 1
      %p282 = por %p280, %p281
      %p283 = scmp.ne.s32.totalorder %s274, %s275
      %p284 = scmp.eq.s32.totalorder %s42, 0
      %p285 = por %p283, %p284
      %p286 = scmp.ne.s32.totalorder %s274, %s275
      %p287 = scmp.eq.s32.totalorder %s43, 1
      %p288 = por %p286, %p287
      %p290 = scmp.ne.s32.totalorder %s275, %s289
      %p291 = scmp.eq.s32.totalorder %s43, 0
      %p292 = por %p290, %p291
      %s293 = ssub.s32 %s45, %s52
      %p294 = scmp.eq.s32.totalorder %s293, 0
      %s296 = sadd.s32 %s295, 1
      %s297 = scalar_select %p294, %s295, %s296
      %p300 = pneg %p294
      %p301 = scmp.eq.s32.totalorder %s37, 1
      %p302 = por %p300, %p301
      %p303 = scmp.ne.s32.totalorder %s295, %s298
      %p304 = scmp.eq.s32.totalorder %s37, 0
      %p305 = por %p303, %p304
      %p306 = scmp.ne.s32.totalorder %s295, %s298
      %p307 = scmp.eq.s32.totalorder %s42, 1
      %p308 = por %p306, %p307
      %p309 = scmp.ne.s32.totalorder %s298, %s299
      %p310 = scmp.eq.s32.totalorder %s42, 0
      %p311 = por %p309, %p310
      %p312 = scmp.ne.s32.totalorder %s298, %s299
      %p313 = scmp.eq.s32.totalorder %s43, 1
      %p314 = por %p312, %p313
      %p316 = scmp.ne.s32.totalorder %s299, %s315
      %p317 = scmp.eq.s32.totalorder %s43, 0
      %p318 = por %p316, %p317
      %s319 = ssub.s32 %s45, %s52
      %p320 = scmp.eq.s32.totalorder %s319, 0
      %s322 = sadd.s32 %s321, 1
      %s323 = scalar_select %p320, %s321, %s322
      %p326 = pneg %p320
      %p327 = scmp.eq.s32.totalorder %s37, 1
      %p328 = por %p326, %p327
      %p329 = scmp.ne.s32.totalorder %s321, %s324
      %p330 = scmp.eq.s32.totalorder %s37, 0
      %p331 = por %p329, %p330
      %p332 = scmp.ne.s32.totalorder %s321, %s324
      %p333 = scmp.eq.s32.totalorder %s42, 1
      %p334 = por %p332, %p333
      %p335 = scmp.ne.s32.totalorder %s324, %s325
      %p336 = scmp.eq.s32.totalorder %s42, 0
      %p337 = por %p335, %p336
      %p338 = scmp.ne.s32.totalorder %s324, %s325
      %p339 = scmp.eq.s32.totalorder %s43, 1
      %p340 = por %p338, %p339
      %p342 = scmp.ne.s32.totalorder %s325, %s341
      %p343 = scmp.eq.s32.totalorder %s43, 0
      %p344 = por %p342, %p343
      %s345 = ssub.s32 %s45, %s52
      %p346 = scmp.eq.s32.totalorder %s345, 0
      %s348 = sadd.s32 %s347, 1
      %s349 = scalar_select %p346, %s347, %s348
      %p352 = pneg %p346
      %p353 = scmp.eq.s32.totalorder %s37, 1
      %p354 = por %p352, %p353
      %p355 = scmp.ne.s32.totalorder %s347, %s350
      %p356 = scmp.eq.s32.totalorder %s37, 0
      %p357 = por %p355, %p356
      %p358 = scmp.ne.s32.totalorder %s347, %s350
      %p359 = scmp.eq.s32.totalorder %s42, 1
      %p360 = por %p358, %p359
      %p361 = scmp.ne.s32.totalorder %s350, %s351
      %p362 = scmp.eq.s32.totalorder %s42, 0
      %p363 = por %p361, %p362
      %p364 = scmp.ne.s32.totalorder %s350, %s351
      %p365 = scmp.eq.s32.totalorder %s43, 1
      %p366 = por %p364, %p365
      %p368 = scmp.ne.s32.totalorder %s351, %s367
      %p369 = scmp.eq.s32.totalorder %s43, 0
      %p370 = por %p368, %p369
      %s371 = ssub.s32 %s45, %s52
      %p372 = scmp.eq.s32.totalorder %s371, 0
      %s374 = sadd.s32 %s373, 1
      %s375 = scalar_select %p372, %s373, %s374
      %p378 = pneg %p372
      %p379 = scmp.eq.s32.totalorder %s37, 1
      %p380 = por %p378, %p379
      %p381 = scmp.ne.s32.totalorder %s373, %s376
      %p382 = scmp.eq.s32.totalorder %s37, 0
      %p383 = por %p381, %p382
      %p384 = scmp.ne.s32.totalorder %s373, %s376
      %p385 = scmp.eq.s32.totalorder %s42, 1
      %p386 = por %p384, %p385
      %p387 = scmp.ne.s32.totalorder %s376, %s377
      %p388 = scmp.eq.s32.totalorder %s42, 0
      %p389 = por %p387, %p388
      %p390 = scmp.ne.s32.totalorder %s376, %s377
      %p391 = scmp.eq.s32.totalorder %s43, 1
      %p392 = por %p390, %p391
      %p394 = scmp.ne.s32.totalorder %s377, %s393
      %p395 = scmp.eq.s32.totalorder %s43, 0
      %p396 = por %p394, %p395
      %s397 = ssub.s32 %s45, %s52
      %p398 = scmp.eq.s32.totalorder %s397, 0
      %s400 = sadd.s32 %s399, 1
      %s401 = scalar_select %p398, %s399, %s400
      %p404 = pneg %p398
      %p405 = scmp.eq.s32.totalorder %s37, 1
      %p406 = por %p404, %p405
      %p407 = scmp.ne.s32.totalorder %s399, %s402
      %p408 = scmp.eq.s32.totalorder %s37, 0
      %p409 = por %p407, %p408
      %p410 = scmp.ne.s32.totalorder %s399, %s402
      %p411 = scmp.eq.s32.totalorder %s42, 1
      %p412 = por %p410, %p411
      %p413 = scmp.ne.s32.totalorder %s402, %s403
      %p414 = scmp.eq.s32.totalorder %s42, 0
      %p415 = por %p413, %p414
      %p416 = scmp.ne.s32.totalorder %s402, %s403
      %p417 = scmp.eq.s32.totalorder %s43, 1
      %p418 = por %p416, %p417
      %p420 = scmp.ne.s32.totalorder %s403, %s419
      %p421 = scmp.eq.s32.totalorder %s43, 0
      %p422 = por %p420, %p421
      %s423 = ssub.s32 %s45, %s52
      %p424 = scmp.eq.s32.totalorder %s423, 0
      %s426 = sadd.s32 %s425, 1
      %s427 = scalar_select %p424, %s425, %s426
      %p430 = pneg %p424
      %p431 = scmp.eq.s32.totalorder %s37, 1
      %p432 = por %p430, %p431
      %p433 = scmp.ne.s32.totalorder %s425, %s428
      %p434 = scmp.eq.s32.totalorder %s37, 0
      %p435 = por %p433, %p434
      %p436 = scmp.ne.s32.totalorder %s425, %s428
      %p437 = scmp.eq.s32.totalorder %s42, 1
      %p438 = por %p436, %p437
      %p439 = scmp.ne.s32.totalorder %s428, %s429
      %p440 = scmp.eq.s32.totalorder %s42, 0
      %p441 = por %p439, %p440
      %p442 = scmp.ne.s32.totalorder %s428, %s429
      %p443 = scmp.eq.s32.totalorder %s43, 1
      %p444 = por %p442, %p443
      %p446 = scmp.ne.s32.totalorder %s429, %s445
      %p447 = scmp.eq.s32.totalorder %s43, 0
      %p448 = por %p446, %p447
      %s449 = ssub.s32 %s45, %s52
      %p450 = scmp.eq.s32.totalorder %s449, 0
      %s452 = sadd.s32 %s451, 1
      %s453 = scalar_select %p450, %s451, %s452
      %p456 = pneg %p450
      %p457 = scmp.eq.s32.totalorder %s37, 1
      %p458 = por %p456, %p457
      %p459 = scmp.ne.s32.totalorder %s451, %s454
      %p460 = scmp.eq.s32.totalorder %s37, 0
      %p461 = por %p459, %p460
      %p462 = scmp.ne.s32.totalorder %s451, %s454
      %p463 = scmp.eq.s32.totalorder %s42, 1
      %p464 = por %p462, %p463
      %p465 = scmp.ne.s32.totalorder %s454, %s455
      %p466 = scmp.eq.s32.totalorder %s42, 0
      %p467 = por %p465, %p466
      %p468 = scmp.ne.s32.totalorder %s454, %s455
      %p469 = scmp.eq.s32.totalorder %s43, 1
      %p470 = por %p468, %p469
      %p472 = scmp.ne.s32.totalorder %s455, %s471
      %p473 = scmp.eq.s32.totalorder %s43, 0
      %p474 = por %p472, %p473
      %s475 = ssub.s32 %s45, %s52
      %p476 = scmp.eq.s32.totalorder %s475, 0
      %s478 = sadd.s32 %s477, 1
      %s479 = scalar_select %p476, %s477, %s478
      %p482 = pneg %p476
      %p483 = scmp.eq.s32.totalorder %s37, 1
      %p484 = por %p482, %p483
      %p485 = scmp.ne.s32.totalorder %s477, %s480
      %p486 = scmp.eq.s32.totalorder %s37, 0
      %p487 = por %p485, %p486
      %p488 = scmp.ne.s32.totalorder %s477, %s480
      %p489 = scmp.eq.s32.totalorder %s42, 1
      %p490 = por %p488, %p489
      %p491 = scmp.ne.s32.totalorder %s480, %s481
      %p492 = scmp.eq.s32.totalorder %s42, 0
      %p493 = por %p491, %p492
      %p494 = scmp.ne.s32.totalorder %s480, %s481
      %p495 = scmp.eq.s32.totalorder %s43, 1
      %p496 = por %p494, %p495
      %p498 = scmp.ne.s32.totalorder %s481, %s497
      %p499 = scmp.eq.s32.totalorder %s43, 0
      %p500 = por %p498, %p499
      %s501 = ssub.s32 %s45, %s52
      %p502 = scmp.eq.s32.totalorder %s501, 0
      %s504 = sadd.s32 %s503, 1
      %s505 = scalar_select %p502, %s503, %s504
      %p508 = pneg %p502
      %p509 = scmp.eq.s32.totalorder %s37, 1
      %p510 = por %p508, %p509
      %p511 = scmp.ne.s32.totalorder %s503, %s506
      %p512 = scmp.eq.s32.totalorder %s37, 0
      %p513 = por %p511, %p512
      %p514 = scmp.ne.s32.totalorder %s503, %s506
      %p515 = scmp.eq.s32.totalorder %s42, 1
      %p516 = por %p514, %p515
      %p517 = scmp.ne.s32.totalorder %s506, %s507
      %p518 = scmp.eq.s32.totalorder %s42, 0
      %p519 = por %p517, %p518
      %p520 = scmp.ne.s32.totalorder %s506, %s507
      %p521 = scmp.eq.s32.totalorder %s43, 1
      %p522 = por %p520, %p521
      %p524 = scmp.ne.s32.totalorder %s507, %s523
      %p525 = scmp.eq.s32.totalorder %s43, 0
      %p526 = por %p524, %p525
      %s527 = ssub.s32 %s45, %s52
      %p528 = scmp.eq.s32.totalorder %s527, 0
      %s530 = sadd.s32 %s529, 1
      %s531 = scalar_select %p528, %s529, %s530
      %p534 = pneg %p528
      %p535 = scmp.eq.s32.totalorder %s37, 1
      %p536 = por %p534, %p535
      %p537 = scmp.ne.s32.totalorder %s529, %s532
      %p538 = scmp.eq.s32.totalorder %s37, 0
      %p539 = por %p537, %p538
      %p540 = scmp.ne.s32.totalorder %s529, %s532
      %p541 = scmp.eq.s32.totalorder %s42, 1
      %p542 = por %p540, %p541
      %p543 = scmp.ne.s32.totalorder %s532, %s533
      %p544 = scmp.eq.s32.totalorder %s42, 0
      %p545 = por %p543, %p544
      %p546 = scmp.ne.s32.totalorder %s532, %s533
      %p547 = scmp.eq.s32.totalorder %s43, 1
      %p548 = por %p546, %p547
      %p550 = scmp.ne.s32.totalorder %s533, %s549
      %p551 = scmp.eq.s32.totalorder %s43, 0
      %p552 = por %p550, %p551
      %s553 = ssub.s32 %s45, %s52
      %p554 = scmp.eq.s32.totalorder %s553, 0
      %s556 = sadd.s32 %s555, 1
      %s557 = scalar_select %p554, %s555, %s556
      %p560 = pneg %p554
      %p561 = scmp.eq.s32.totalorder %s37, 1
      %p562 = por %p560, %p561
      %p563 = scmp.ne.s32.totalorder %s555, %s558
      %p564 = scmp.eq.s32.totalorder %s37, 0
      %p565 = por %p563, %p564
      %p566 = scmp.ne.s32.totalorder %s555, %s558
      %p567 = scmp.eq.s32.totalorder %s42, 1
      %p568 = por %p566, %p567
      %p569 = scmp.ne.s32.totalorder %s558, %s559
      %p570 = scmp.eq.s32.totalorder %s42, 0
      %p571 = por %p569, %p570
      %p572 = scmp.ne.s32.totalorder %s558, %s559
      %p573 = scmp.eq.s32.totalorder %s43, 1
      %p574 = por %p572, %p573
      %p576 = scmp.ne.s32.totalorder %s559, %s575
      %p577 = scmp.eq.s32.totalorder %s43, 0
      %p578 = por %p576, %p577
      %s579 = ssub.s32 %s45, %s52
      %p580 = scmp.eq.s32.totalorder %s579, 0
      %s582 = sadd.s32 %s581, 1
      %s583 = scalar_select %p580, %s581, %s582
      %p586 = pneg %p580
      %p587 = scmp.eq.s32.totalorder %s37, 1
      %p588 = por %p586, %p587
      %p589 = scmp.ne.s32.totalorder %s581, %s584
      %p590 = scmp.eq.s32.totalorder %s37, 0
      %p591 = por %p589, %p590
      %p592 = scmp.ne.s32.totalorder %s581, %s584
      %p593 = scmp.eq.s32.totalorder %s42, 1
      %p594 = por %p592, %p593
      %p595 = scmp.ne.s32.totalorder %s584, %s585
      %p596 = scmp.eq.s32.totalorder %s42, 0
      %p597 = por %p595, %p596
      %p598 = scmp.ne.s32.totalorder %s584, %s585
      %p599 = scmp.eq.s32.totalorder %s43, 1
      %p600 = por %p598, %p599
      %p602 = scmp.ne.s32.totalorder %s585, %s601
      %p603 = scmp.eq.s32.totalorder %s43, 0
      %p604 = por %p602, %p603
      %s606 = sadd.s32 %s605, 1
      %p609 = scmp.eq.s32.totalorder %s37, 1
      %p610 = scmp.ne.s32.totalorder %s605, %s607
      %p611 = scmp.eq.s32.totalorder %s37, 0
      %p612 = por %p610, %p611
      %p613 = scmp.ne.s32.totalorder %s605, %s607
      %p614 = scmp.eq.s32.totalorder %s42, 1
      %p615 = por %p613, %p614
      %p616 = scmp.ne.s32.totalorder %s607, %s608
      %p617 = scmp.eq.s32.totalorder %s42, 0
      %p618 = por %p616, %p617
      %p619 = scmp.ne.s32.totalorder %s607, %s608
      %p620 = scmp.eq.s32.totalorder %s43, 1
      %p621 = por %p619, %p620
      %p623 = scmp.ne.s32.totalorder %s608, %s622
      %p624 = scmp.eq.s32.totalorder %s43, 0
      %p625 = por %p623, %p624
      %s627 = sadd.s32 %s626, 1
      %p630 = scmp.eq.s32.totalorder %s37, 1
      %p631 = scmp.ne.s32.totalorder %s626, %s628
      %p632 = scmp.eq.s32.totalorder %s37, 0
      %p633 = por %p631, %p632
      %p634 = scmp.ne.s32.totalorder %s626, %s628
      %p635 = scmp.eq.s32.totalorder %s42, 1
      %p636 = por %p634, %p635
      %p637 = scmp.ne.s32.totalorder %s628, %s629
      %p638 = scmp.eq.s32.totalorder %s42, 0
      %p639 = por %p637, %p638
      %p640 = scmp.ne.s32.totalorder %s628, %s629
      %p641 = scmp.eq.s32.totalorder %s43, 1
      %p642 = por %p640, %p641
      %p644 = scmp.ne.s32.totalorder %s629, %s643
      %p645 = scmp.eq.s32.totalorder %s43, 0
      %p646 = por %p644, %p645
      %s647 = ssub.s32 %s44, %s56
      %p648 = scmp.eq.s32.totalorder %s647, 0
      %s650 = sadd.s32 %s649, 1
      %s651 = scalar_select %p648, %s649, %s650
      %p654 = pneg %p648
      %p655 = scmp.eq.s32.totalorder %s37, 1
      %p656 = por %p654, %p655
      %p657 = scmp.ne.s32.totalorder %s649, %s652
      %p658 = scmp.eq.s32.totalorder %s37, 0
      %p659 = por %p657, %p658
      %p660 = scmp.ne.s32.totalorder %s649, %s652
      %p661 = scmp.eq.s32.totalorder %s42, 1
      %p662 = por %p660, %p661
      %p663 = scmp.ne.s32.totalorder %s652, %s653
      %p664 = scmp.eq.s32.totalorder %s42, 0
      %p665 = por %p663, %p664
      %p666 = scmp.ne.s32.totalorder %s652, %s653
      %p667 = scmp.eq.s32.totalorder %s43, 1
      %p668 = por %p666, %p667
      %p670 = scmp.ne.s32.totalorder %s653, %s669
      %p671 = scmp.eq.s32.totalorder %s43, 0
      %p672 = por %p670, %p671
      %p673 = scmp.le.s32.totalorder 1, %s37
      %p674 = scmp.lt.s32.totalorder %s37, 3
      %p675 = pnand %p673, %p674
      %p676 = pneg %p675
      // Predicated region
      $region9: #{tpu_custom_call.1} parent=5 // pred_check
        _
      $region10: #{tpu_custom_call.1} parent=5 // pred_check_branch
        %678 = sbr.rel (%p675) target = $region12
      $region11: #{tpu_custom_call.1} parent=5 // pred_region
        %s679 = ssub.s32 %s37, 1
        // Predicated region
        $region13: #{tpu_custom_call.1} parent=11 // pred_check
          %p680 = pneg %p75
        $region14: #{tpu_custom_call.1} parent=11 // pred_check_branch
          %682 = sbr.rel (%p680) target = $region16
        $region15: #{tpu_custom_call.1} parent=11 // pred_region
          %s683 = smul.u32 2, %s46
          %p684 = scmp.lt.s32.totalorder %s683, 1
          %s685 = scalar_select %p684, %s683, 1
          %s686 = smul.addr %s685, 2
          %s687 = smul.addr %s686, 8
          %s688 = scalar_lea.vmem %s0, %s687
          %s689 = smul.u32 2, %s46
        $region16: #{tpu_custom_call.1} parent=11 // pred_fallthru
          _
        // Predicated region
        $region17: #{tpu_custom_call.1} parent=11 // pred_check
          %p690 = pneg %p96
        $region18: #{tpu_custom_call.1} parent=11 // pred_check_branch
          %692 = sbr.rel (%p690) target = $region20
        $region19: #{tpu_custom_call.1} parent=11 // pred_region
          %s694 = ssub.s32 256, 256
          %695 = vsyncadd [#allocation4], %s694
          %s696 = sshll.u32 [#allocation3], 4
          %s697 = int_to_ptr.vmem [resolvable:$true] %s696
          %702 = dma.hbm_to_vmem [thread:$0]  %s1, 256, %s697, [#allocation4], 128, 128, 8
        $region20: #{tpu_custom_call.1} parent=11 // pred_fallthru
          _
        // Predicated region
        $region21: #{tpu_custom_call.1} parent=11 // pred_check
          %p703 = pneg %p117
        $region22: #{tpu_custom_call.1} parent=11 // pred_check_branch
          %705 = sbr.rel (%p703) target = $region24
        $region23: #{tpu_custom_call.1} parent=11 // pred_region
          %s707 = ssub.s32 160, 160
          %708 = vsyncadd [#allocation7], %s707
          %s709 = sshll.u32 [#allocation6], 4
          %s710 = int_to_ptr.vmem [resolvable:$true] %s709
          %715 = dma.hbm_to_vmem [thread:$0]  %s2, 160, %s710, [#allocation7], 32, 32, 2
        $region24: #{tpu_custom_call.1} parent=11 // pred_fallthru
          _
        // Predicated region
        $region25: #{tpu_custom_call.1} parent=11 // pred_check
          %p716 = pneg %p138
        $region26: #{tpu_custom_call.1} parent=11 // pred_check_branch
          %718 = sbr.rel (%p716) target = $region28
        $region27: #{tpu_custom_call.1} parent=11 // pred_region
          %s720 = ssub.s32 16, 16
          %721 = vsyncadd [#allocation7], %s720
          %s723 = sshll.u32 [#allocation8], 4
          %s724 = int_to_ptr.vmem [resolvable:$true] %s723
          %726 = dma.hbm_to_vmem [thread:$0]  %s3, 16, %s724, [#allocation7]
        $region28: #{tpu_custom_call.1} parent=11 // pred_fallthru
          _
        // Predicated region
        $region29: #{tpu_custom_call.1} parent=11 // pred_check
          %p727 = pneg %p159
        $region30: #{tpu_custom_call.1} parent=11 // pred_check_branch
          %729 = sbr.rel (%p727) target = $region32
        $region31: #{tpu_custom_call.1} parent=11 // pred_region
          %s731 = ssub.s32 16, 16
          %732 = vsyncadd [#allocation10], %s731
          %s734 = sshll.u32 [#allocation9], 4
          %s735 = int_to_ptr.vmem [resolvable:$true] %s734
          %737 = dma.hbm_to_vmem [thread:$0]  %s4, 16, %s735, [#allocation10]
        $region32: #{tpu_custom_call.1} parent=11 // pred_fallthru
          _
        // Predicated region
        $region33: #{tpu_custom_call.1} parent=11 // pred_check
          %p738 = pneg %p180
        $region34: #{tpu_custom_call.1} parent=11 // pred_check_branch
          %740 = sbr.rel (%p738) target = $region36
        $region35: #{tpu_custom_call.1} parent=11 // pred_region
          _
        $region36: #{tpu_custom_call.1} parent=11 // pred_fallthru
          _
        // Predicated region
        $region37: #{tpu_custom_call.1} parent=11 // pred_check
          %p741 = pneg %p201
        $region38: #{tpu_custom_call.1} parent=11 // pred_check_branch
          %743 = sbr.rel (%p741) target = $region40
        $region39: #{tpu_custom_call.1} parent=11 // pred_region
          %s745 = ssub.s32 16, 16
          %746 = vsyncadd [#allocation10], %s745
          %s748 = sshll.u32 [#allocation11], 4
          %s749 = int_to_ptr.vmem [resolvable:$true] %s748
          %751 = dma.hbm_to_vmem [thread:$0]  %s6, 16, %s749, [#allocation10]
        $region40: #{tpu_custom_call.1} parent=11 // pred_fallthru
          _
        // Predicated region
        $region41: #{tpu_custom_call.1} parent=11 // pred_check
          %p752 = pneg %p222
        $region42: #{tpu_custom_call.1} parent=11 // pred_check_branch
          %754 = sbr.rel (%p752) target = $region44
        $region43: #{tpu_custom_call.1} parent=11 // pred_region
          %s756 = ssub.s32 16, 16
          %757 = vsyncadd [#allocation13], %s756
          %s759 = sshll.u32 [#allocation12], 4
          %s760 = int_to_ptr.vmem [resolvable:$true] %s759
          %762 = dma.hbm_to_vmem [thread:$0]  %s7, 16, %s760, [#allocation13]
        $region44: #{tpu_custom_call.1} parent=11 // pred_fallthru
          _
        // Predicated region
        $region45: #{tpu_custom_call.1} parent=11 // pred_check
          %p763 = pneg %p243
        $region46: #{tpu_custom_call.1} parent=11 // pred_check_branch
          %765 = sbr.rel (%p763) target = $region48
        $region47: #{tpu_custom_call.1} parent=11 // pred_region
          _
        $region48: #{tpu_custom_call.1} parent=11 // pred_fallthru
          _
        // Predicated region
        $region49: #{tpu_custom_call.1} parent=11 // pred_check
          %p766 = pneg %p264
        $region50: #{tpu_custom_call.1} parent=11 // pred_check_branch
          %768 = sbr.rel (%p766) target = $region52
        $region51: #{tpu_custom_call.1} parent=11 // pred_region
          %s770 = ssub.s32 16, 16
          %771 = vsyncadd [#allocation13], %s770
          %s773 = sshll.u32 [#allocation14], 4
          %s774 = int_to_ptr.vmem [resolvable:$true] %s773
          %776 = dma.hbm_to_vmem [thread:$0]  %s9, 16, %s774, [#allocation13]
        $region52: #{tpu_custom_call.1} parent=11 // pred_fallthru
          _
        // Predicated region
        $region53: #{tpu_custom_call.1} parent=11 // pred_check
          %p777 = pneg %p285
        $region54: #{tpu_custom_call.1} parent=11 // pred_check_branch
          %779 = sbr.rel (%p777) target = $region56
        $region55: #{tpu_custom_call.1} parent=11 // pred_region
          %s781 = ssub.s32 16, 16
          %782 = vsyncadd [#allocation16], %s781
          %s784 = sshll.u32 [#allocation15], 4
          %s785 = int_to_ptr.vmem [resolvable:$true] %s784
          %787 = dma.hbm_to_vmem [thread:$0]  %s10, 16, %s785, [#allocation16]
        $region56: #{tpu_custom_call.1} parent=11 // pred_fallthru
          _
        // Predicated region
        $region57: #{tpu_custom_call.1} parent=11 // pred_check
          %p788 = pneg %p618
        $region58: #{tpu_custom_call.1} parent=11 // pred_check_branch
          %790 = sbr.rel (%p788) target = $region60
        $region59: #{tpu_custom_call.1} parent=11 // pred_region
          _
        $region60: #{tpu_custom_call.1} parent=11 // pred_fallthru
          _
        // Predicated region
        $region61: #{tpu_custom_call.1} parent=11 // pred_check
          %p791 = pneg %p639
        $region62: #{tpu_custom_call.1} parent=11 // pred_check_branch
          %793 = sbr.rel (%p791) target = $region64
        $region63: #{tpu_custom_call.1} parent=11 // pred_region
          _
        $region64: #{tpu_custom_call.1} parent=11 // pred_fallthru
          _
      $region12: #{tpu_custom_call.1} parent=5 // pred_fallthru
        _
      %p794 = scmp.lt.s32.totalorder %s37, 2
      // Predicated region
      $region65: #{tpu_custom_call.1} parent=5 // pred_check
        %p795 = pneg %p794
      $region66: #{tpu_custom_call.1} parent=5 // pred_check_branch
        %797 = sbr.rel (%p795) target = $region68
      $region67: #{tpu_custom_call.1} parent=5 // pred_region
        // Predicated region
        $region69: #{tpu_custom_call.1} parent=67 // pred_check
          %p798 = pneg %p305
        $region70: #{tpu_custom_call.1} parent=67 // pred_check_branch
          %800 = sbr.rel (%p798) target = $region72
        $region71: #{tpu_custom_call.1} parent=67 // pred_region
          %p801 = scmp.lt.s32.totalorder %s45, 1
          %s802 = scalar_select %p801, %s45, 1
          %s803 = smul.addr %s802, 4
          %s804 = smul.addr %s803, 4
          %s805 = scalar_lea.vmem %s11, %s804
        $region72: #{tpu_custom_call.1} parent=67 // pred_fallthru
          _
        // Predicated region
        $region73: #{tpu_custom_call.1} parent=67 // pred_check
          %p806 = pneg %p331
        $region74: #{tpu_custom_call.1} parent=67 // pred_check_branch
          %808 = sbr.rel (%p806) target = $region76
        $region75: #{tpu_custom_call.1} parent=67 // pred_region
          %p809 = scmp.lt.s32.totalorder %s45, 1
          %s810 = scalar_select %p809, %s45, 1
          %s811 = scalar_lea.vmem %s12, %s810
        $region76: #{tpu_custom_call.1} parent=67 // pred_fallthru
          _
        // Predicated region
        $region77: #{tpu_custom_call.1} parent=67 // pred_check
          %p812 = pneg %p357
        $region78: #{tpu_custom_call.1} parent=67 // pred_check_branch
          %814 = sbr.rel (%p812) target = $region80
        $region79: #{tpu_custom_call.1} parent=67 // pred_region
          %p815 = scmp.lt.s32.totalorder %s45, 1
          %s816 = scalar_select %p815, %s45, 1
          %s817 = smul.addr %s816, 4
          %s818 = smul.addr %s817, 4
          %s819 = scalar_lea.vmem %s13, %s818
        $region80: #{tpu_custom_call.1} parent=67 // pred_fallthru
          _
        // Predicated region
        $region81: #{tpu_custom_call.1} parent=67 // pred_check
          %p820 = pneg %p383
        $region82: #{tpu_custom_call.1} parent=67 // pred_check_branch
          %822 = sbr.rel (%p820) target = $region84
        $region83: #{tpu_custom_call.1} parent=67 // pred_region
          %p823 = scmp.lt.s32.totalorder %s45, 1
          %s824 = scalar_select %p823, %s45, 1
          %s825 = scalar_lea.vmem %s14, %s824
        $region84: #{tpu_custom_call.1} parent=67 // pred_fallthru
          _
        // Predicated region
        $region85: #{tpu_custom_call.1} parent=67 // pred_check
          %p826 = pneg %p409
        $region86: #{tpu_custom_call.1} parent=67 // pred_check_branch
          %828 = sbr.rel (%p826) target = $region88
        $region87: #{tpu_custom_call.1} parent=67 // pred_region
          %p829 = scmp.lt.s32.totalorder %s45, 1
          %s830 = scalar_select %p829, %s45, 1
          %s831 = scalar_lea.vmem %s15, %s830
        $region88: #{tpu_custom_call.1} parent=67 // pred_fallthru
          _
        // Predicated region
        $region89: #{tpu_custom_call.1} parent=67 // pred_check
          %p832 = pneg %p435
        $region90: #{tpu_custom_call.1} parent=67 // pred_check_branch
          %834 = sbr.rel (%p832) target = $region92
        $region91: #{tpu_custom_call.1} parent=67 // pred_region
          %p835 = scmp.lt.s32.totalorder %s45, 1
          %s836 = scalar_select %p835, %s45, 1
          %s837 = scalar_lea.vmem %s16, %s836
        $region92: #{tpu_custom_call.1} parent=67 // pred_fallthru
          _
        // Predicated region
        $region93: #{tpu_custom_call.1} parent=67 // pred_check
          %p838 = pneg %p461
        $region94: #{tpu_custom_call.1} parent=67 // pred_check_branch
          %840 = sbr.rel (%p838) target = $region96
        $region95: #{tpu_custom_call.1} parent=67 // pred_region
          %p841 = scmp.lt.s32.totalorder %s45, 1
          %s842 = scalar_select %p841, %s45, 1
          %s843 = smul.addr %s842, 4
          %s844 = smul.addr %s843, 4
          %s845 = scalar_lea.vmem %s17, %s844
        $region96: #{tpu_custom_call.1} parent=67 // pred_fallthru
          _
        // Predicated region
        $region97: #{tpu_custom_call.1} parent=67 // pred_check
          %p846 = pneg %p487
        $region98: #{tpu_custom_call.1} parent=67 // pred_check_branch
          %848 = sbr.rel (%p846) target = $region100
        $region99: #{tpu_custom_call.1} parent=67 // pred_region
          %p849 = scmp.lt.s32.totalorder %s45, 1
          %s850 = scalar_select %p849, %s45, 1
          %s851 = scalar_lea.vmem %s18, %s850
        $region100: #{tpu_custom_call.1} parent=67 // pred_fallthru
          _
        // Predicated region
        $region101: #{tpu_custom_call.1} parent=67 // pred_check
          %p852 = pneg %p513
        $region102: #{tpu_custom_call.1} parent=67 // pred_check_branch
          %854 = sbr.rel (%p852) target = $region104
        $region103: #{tpu_custom_call.1} parent=67 // pred_region
          %p855 = scmp.lt.s32.totalorder %s45, 1
          %s856 = scalar_select %p855, %s45, 1
          %s857 = smul.addr %s856, 8
          %s858 = smul.addr %s857, 4
          %s859 = scalar_lea.vmem %s19, %s858
        $region104: #{tpu_custom_call.1} parent=67 // pred_fallthru
          _
        // Predicated region
        $region105: #{tpu_custom_call.1} parent=67 // pred_check
          %p860 = pneg %p539
        $region106: #{tpu_custom_call.1} parent=67 // pred_check_branch
          %862 = sbr.rel (%p860) target = $region108
        $region107: #{tpu_custom_call.1} parent=67 // pred_region
          %p863 = scmp.lt.s32.totalorder %s45, 1
          %s864 = scalar_select %p863, %s45, 1
          %s865 = scalar_lea.vmem %s20, %s864
        $region108: #{tpu_custom_call.1} parent=67 // pred_fallthru
          _
        // Predicated region
        $region109: #{tpu_custom_call.1} parent=67 // pred_check
          %p866 = pneg %p565
        $region110: #{tpu_custom_call.1} parent=67 // pred_check_branch
          %868 = sbr.rel (%p866) target = $region112
        $region111: #{tpu_custom_call.1} parent=67 // pred_region
          %p869 = scmp.lt.s32.totalorder %s45, 1
          %s870 = scalar_select %p869, %s45, 1
          %s871 = scalar_lea.vmem %s21, %s870
        $region112: #{tpu_custom_call.1} parent=67 // pred_fallthru
          _
        // Predicated region
        $region113: #{tpu_custom_call.1} parent=67 // pred_check
          %p872 = pneg %p591
        $region114: #{tpu_custom_call.1} parent=67 // pred_check_branch
          %874 = sbr.rel (%p872) target = $region116
        $region115: #{tpu_custom_call.1} parent=67 // pred_region
          %p875 = scmp.lt.s32.totalorder %s45, 1
          %s876 = scalar_select %p875, %s45, 1
          %s877 = scalar_lea.vmem %s22, %s876
        $region116: #{tpu_custom_call.1} parent=67 // pred_fallthru
          _
      $region68: #{tpu_custom_call.1} parent=5 // pred_fallthru
        _
      %p878 = scmp.le.s32.totalorder 1, %s37
      %p879 = scmp.lt.s32.totalorder %s37, 3
      %p880 = pnand %p878, %p879
      %p881 = pneg %p880
      // Predicated region
      $region117: #{tpu_custom_call.1} parent=5 // pred_check
        _
      $region118: #{tpu_custom_call.1} parent=5 // pred_check_branch
        %883 = sbr.rel (%p880) target = $region120
      $region119: #{tpu_custom_call.1} parent=5 // pred_region
        %s884 = ssub.s32 %s37, 1
        // Predicated region
        $region121: #{tpu_custom_call.1} parent=119 // pred_check
          %p885 = pneg %p96
        $region122: #{tpu_custom_call.1} parent=119 // pred_check_branch
          %887 = sbr.rel (%p885) target = $region124
        $region123: #{tpu_custom_call.1} parent=119 // pred_region
          %888 = dma.done [#allocation4], 256
        $region124: #{tpu_custom_call.1} parent=119 // pred_fallthru
          _
        // Predicated region
        $region125: #{tpu_custom_call.1} parent=119 // pred_check
          %p889 = pneg %p117
        $region126: #{tpu_custom_call.1} parent=119 // pred_check_branch
          %891 = sbr.rel (%p889) target = $region128
        $region127: #{tpu_custom_call.1} parent=119 // pred_region
          %892 = dma.done [#allocation7], 160
        $region128: #{tpu_custom_call.1} parent=119 // pred_fallthru
          _
        // Predicated region
        $region129: #{tpu_custom_call.1} parent=119 // pred_check
          %p893 = pneg %p138
        $region130: #{tpu_custom_call.1} parent=119 // pred_check_branch
          %895 = sbr.rel (%p893) target = $region132
        $region131: #{tpu_custom_call.1} parent=119 // pred_region
          %896 = dma.done [#allocation7], 16
        $region132: #{tpu_custom_call.1} parent=119 // pred_fallthru
          _
        // Predicated region
        $region133: #{tpu_custom_call.1} parent=119 // pred_check
          %p897 = pneg %p159
        $region134: #{tpu_custom_call.1} parent=119 // pred_check_branch
          %899 = sbr.rel (%p897) target = $region136
        $region135: #{tpu_custom_call.1} parent=119 // pred_region
          %900 = dma.done [#allocation10], 16
        $region136: #{tpu_custom_call.1} parent=119 // pred_fallthru
          _
        // Predicated region
        $region137: #{tpu_custom_call.1} parent=119 // pred_check
          %p901 = pneg %p201
        $region138: #{tpu_custom_call.1} parent=119 // pred_check_branch
          %903 = sbr.rel (%p901) target = $region140
        $region139: #{tpu_custom_call.1} parent=119 // pred_region
          %904 = dma.done [#allocation10], 16
        $region140: #{tpu_custom_call.1} parent=119 // pred_fallthru
          _
        // Predicated region
        $region141: #{tpu_custom_call.1} parent=119 // pred_check
          %p905 = pneg %p222
        $region142: #{tpu_custom_call.1} parent=119 // pred_check_branch
          %907 = sbr.rel (%p905) target = $region144
        $region143: #{tpu_custom_call.1} parent=119 // pred_region
          %908 = dma.done [#allocation13], 16
        $region144: #{tpu_custom_call.1} parent=119 // pred_fallthru
          _
        // Predicated region
        $region145: #{tpu_custom_call.1} parent=119 // pred_check
          %p909 = pneg %p264
        $region146: #{tpu_custom_call.1} parent=119 // pred_check_branch
          %911 = sbr.rel (%p909) target = $region148
        $region147: #{tpu_custom_call.1} parent=119 // pred_region
          %912 = dma.done [#allocation13], 16
        $region148: #{tpu_custom_call.1} parent=119 // pred_fallthru
          _
        // Predicated region
        $region149: #{tpu_custom_call.1} parent=119 // pred_check
          %p913 = pneg %p285
        $region150: #{tpu_custom_call.1} parent=119 // pred_check_branch
          %915 = sbr.rel (%p913) target = $region152
        $region151: #{tpu_custom_call.1} parent=119 // pred_region
          %916 = dma.done [#allocation16], 16
        $region152: #{tpu_custom_call.1} parent=119 // pred_fallthru
          _
        %s917 = smul.u32 2, %s46
        %p918 = scmp.lt.s32.totalorder %s917, 1
        %s919 = scalar_select %p918, %s917, 1
        %s920 = smul.addr %s919, 2
        %s921 = smul.addr %s920, 8
        %s922 = scalar_lea.vmem %s0, %s921
        %p923 = pneg %p75
        %p924 = pneg %p72
        %p925 = pneg %p96
        %p926 = pneg %p93
        %p927 = pneg %p117
        %p928 = pneg %p114
        %p929 = pneg %p138
        %p930 = pneg %p135
        %p931 = pneg %p159
        %p932 = pneg %p156
        %p933 = pneg %p180
        %p934 = pneg %p177
        %p935 = pneg %p201
        %p936 = pneg %p198
        %p937 = pneg %p222
        %p938 = pneg %p219
        %p939 = pneg %p243
        %p940 = pneg %p240
        %p941 = pneg %p264
        %p942 = pneg %p261
        %p943 = pneg %p285
        %p944 = pneg %p282
        %p945 = scmp.lt.s32.totalorder %s47, 1
        %s946 = scalar_select %p945, %s47, 1
        %s947 = smul.addr %s946, 4
        %s948 = smul.addr %s947, 4
        %s949 = scalar_lea.vmem %s11, %s948
        %p950 = pneg %p311
        %p951 = pneg %p308
        %p952 = scmp.lt.s32.totalorder %s47, 1
        %s953 = scalar_select %p952, %s47, 1
        %s954 = scalar_lea.vmem %s12, %s953
        %p955 = pneg %p337
        %p956 = pneg %p334
        %p957 = scmp.lt.s32.totalorder %s47, 1
        %s958 = scalar_select %p957, %s47, 1
        %s959 = smul.addr %s958, 4
        %s960 = smul.addr %s959, 4
        %s961 = scalar_lea.vmem %s13, %s960
        %p962 = pneg %p363
        %p963 = pneg %p360
        %p964 = scmp.lt.s32.totalorder %s47, 1
        %s965 = scalar_select %p964, %s47, 1
        %s966 = scalar_lea.vmem %s14, %s965
        %p967 = pneg %p389
        %p968 = pneg %p386
        %p969 = scmp.lt.s32.totalorder %s47, 1
        %s970 = scalar_select %p969, %s47, 1
        %s971 = scalar_lea.vmem %s15, %s970
        %p972 = pneg %p415
        %p973 = pneg %p412
        %p974 = scmp.lt.s32.totalorder %s47, 1
        %s975 = scalar_select %p974, %s47, 1
        %s976 = scalar_lea.vmem %s16, %s975
        %p977 = pneg %p441
        %p978 = pneg %p438
        %p979 = scmp.lt.s32.totalorder %s47, 1
        %s980 = scalar_select %p979, %s47, 1
        %s981 = smul.addr %s980, 4
        %s982 = smul.addr %s981, 4
        %s983 = scalar_lea.vmem %s17, %s982
        %p984 = pneg %p467
        %p985 = pneg %p464
        %p986 = scmp.lt.s32.totalorder %s47, 1
        %s987 = scalar_select %p986, %s47, 1
        %s988 = scalar_lea.vmem %s18, %s987
        %p989 = pneg %p493
        %p990 = pneg %p490
        %p991 = scmp.lt.s32.totalorder %s47, 1
        %s992 = scalar_select %p991, %s47, 1
        %s993 = smul.addr %s992, 8
        %s994 = smul.addr %s993, 4
        %s995 = scalar_lea.vmem %s19, %s994
        %p996 = pneg %p519
        %p997 = pneg %p516
        %p998 = scmp.lt.s32.totalorder %s47, 1
        %s999 = scalar_select %p998, %s47, 1
        %s1000 = scalar_lea.vmem %s20, %s999
        %p1001 = pneg %p545
        %p1002 = pneg %p542
        %p1003 = scmp.lt.s32.totalorder %s47, 1
        %s1004 = scalar_select %p1003, %s47, 1
        %s1005 = scalar_lea.vmem %s21, %s1004
        %p1006 = pneg %p571
        %p1007 = pneg %p568
        %p1008 = scmp.lt.s32.totalorder %s47, 1
        %s1009 = scalar_select %p1008, %s47, 1
        %s1010 = scalar_lea.vmem %s22, %s1009
        %p1011 = pneg %p597
        %p1012 = pneg %p594
        %p1013 = pneg %p618
        %p1014 = pneg %p615
        %p1015 = pneg %p639
        %p1016 = pneg %p636
        %p1017 = pneg %p665
        %p1018 = pneg %p662
        %s1019 = smul.u32 2, %s46
        %p1020 = scmp.lt.s32.totalorder %s1019, 1
        %s1021 = scalar_select %p1020, %s1019, 1
        %s1022 = smul.addr %s1021, 2
        %s1023 = smul.addr %s1022, 8
        %s1024 = scalar_lea.vmem %s0, %s1023
        %s1025 = smul.u32 2, %s46
        %p1026 = scmp.lt.s32.totalorder %s47, 1
        %s1027 = scalar_select %p1026, %s47, 1
        %s1028 = smul.addr %s1027, 4
        %s1029 = smul.addr %s1028, 4
        %s1030 = scalar_lea.vmem %s11, %s1029
        %p1031 = scmp.lt.s32.totalorder %s47, 1
        %s1032 = scalar_select %p1031, %s47, 1
        %s1033 = scalar_lea.vmem %s12, %s1032
        %p1034 = scmp.lt.s32.totalorder %s47, 1
        %s1035 = scalar_select %p1034, %s47, 1
        %s1036 = smul.addr %s1035, 4
        %s1037 = smul.addr %s1036, 4
        %s1038 = scalar_lea.vmem %s13, %s1037
        %p1039 = scmp.lt.s32.totalorder %s47, 1
        %s1040 = scalar_select %p1039, %s47, 1
        %s1041 = scalar_lea.vmem %s14, %s1040
        %p1042 = scmp.lt.s32.totalorder %s47, 1
        %s1043 = scalar_select %p1042, %s47, 1
        %s1044 = scalar_lea.vmem %s15, %s1043
        %p1045 = scmp.lt.s32.totalorder %s47, 1
        %s1046 = scalar_select %p1045, %s47, 1
        %s1047 = scalar_lea.vmem %s16, %s1046
        %p1048 = scmp.lt.s32.totalorder %s47, 1
        %s1049 = scalar_select %p1048, %s47, 1
        %s1050 = smul.addr %s1049, 4
        %s1051 = smul.addr %s1050, 4
        %s1052 = scalar_lea.vmem %s17, %s1051
        %p1053 = scmp.lt.s32.totalorder %s47, 1
        %s1054 = scalar_select %p1053, %s47, 1
        %s1055 = scalar_lea.vmem %s18, %s1054
        %p1056 = scmp.lt.s32.totalorder %s47, 1
        %s1057 = scalar_select %p1056, %s47, 1
        %s1058 = smul.addr %s1057, 8
        %s1059 = smul.addr %s1058, 4
        %s1060 = scalar_lea.vmem %s19, %s1059
        %p1061 = scmp.lt.s32.totalorder %s47, 1
        %s1062 = scalar_select %p1061, %s47, 1
        %s1063 = scalar_lea.vmem %s20, %s1062
        %p1064 = scmp.lt.s32.totalorder %s47, 1
        %s1065 = scalar_select %p1064, %s47, 1
        %s1066 = scalar_lea.vmem %s21, %s1065
        %p1067 = scmp.lt.s32.totalorder %s47, 1
        %s1068 = scalar_select %p1067, %s47, 1
        %s1069 = scalar_lea.vmem %s22, %s1068
        %p1071 = scmp.eq.s32.totalorder %s47, 0
        // Predicated region
        $region153: #{tpu_custom_call.1} parent=119 // pred_check
          %p1072 = pneg %p1071
        $region154: #{tpu_custom_call.1} parent=119 // pred_check_branch
          %1074 = sbr.rel (%p1072) target = $region156
        $region155: #{tpu_custom_call.1} parent=119 // pred_region
          %v1075 = vld [vmem:[%s1024] sm:$0xff]
          %v1076 = vld [vmem:[%s1024 + $0x8] sm:$0xff]
          %v1077 = vld [vmem:[%s1024 + $0x10] sm:$0xff]
          %v1078 = vld [vmem:[%s1024 + $0x18] sm:$0xff]
          %v1079 = vpack.c.bf16 %v1076, %v1075
          %v1080 = vpack.c.bf16 %v1078, %v1077
          %v1083 = vrot.slane %v1079, 7
          %v1084 = vrot.slane %v1080, 7
          %vm1085 = vcmask 1040384
          %v1088 = vsel %vm1085, 0, %v1083
          %v1090 = vsel %vm1085, 0, %v1084
          %v1091 = vld [vmem:[#allocation6] sm:$0x3]
          %v1093 = vshrl.u32 %v1079, 16
          %v1095 = vrot.slane %v1093, 7
          %v1096 = vshll.u32 %v1079, 16
          %v1098 = vor.u32 %v1095, %v1096
          %v1100 = vshrl.u32 %v1080, 16
          %v1102 = vrot.slane %v1100, 7
          %v1103 = vshll.u32 %v1080, 16
          %v1105 = vor.u32 %v1102, %v1103
          %vm1108 = vcmask 1040384
          %vm1109 = vsmask.f32 256
          %vm1110 = vmand %vm1108, %vm1109
          %v1111 = vsel %vm1110, 0, %v1098
          %v1112 = vsel %vm1110, 0, %v1105
          %s1113 = scalar_lea.vmem [#allocation6], 2
          %v1114 = vld [vmem:[%s1113] sm:$0x3]
          %vm1115 = vcmask 31744
          %v1117 = vsel %vm1115, %v1111, 0
          %v1120 = vsel %vm1115, %v1112, 0
          %vm1122 = vcmask 1041408
          %v1124 = vsel %vm1122, %v1114, 0
          %1126 = vmatprep.subr.bf16.mxu0 0
          %1127 = vmatpush1.bf16.msra.mxu0 0
          %1128 = vmatprep.subr.bf16.mxu0 0
          %1129 = vmatpush1.bf16.msra.mxu0 0
          %1130 = vmatprep.subr.bf16.mxu0 0
          %1131 = vmatpush1.bf16.msra.mxu0 0
          %1132 = vmatprep.subr.bf16.mxu0 0
          %1133 = vmatpush1.bf16.msra.mxu0 0
          %1134 = vmatprep.subr.bf16.mxu0 0
          %1135 = vmatpush1.bf16.msra.mxu0 0
          %1136 = vmatprep.subr.bf16.mxu0 0
          %1137 = vmatpush1.bf16.msra.mxu0 0
          %1138 = vmatprep.subr.bf16.mxu0 0
          %1139 = vmatpush1.bf16.msra.mxu0 0
          %1140 = vmatprep.subr.bf16.mxu0 0
          %1141 = vmatpush1.bf16.msra.mxu0 %v1124
          %1142 = vmatprep.subr.bf16.mxu0 0
          %1143 = vmatpush2.bf16.msra.mxu0 0
          %1144 = vmatprep.subr.bf16.mxu0 0
          %1145 = vmatpush2.bf16.msra.mxu0 0
          %1146 = vmatprep.subr.bf16.mxu0 0
          %1147 = vmatpush2.bf16.msra.mxu0 0
          %1148 = vmatprep.subr.bf16.mxu0 0
          %1149 = vmatpush2.bf16.msra.mxu0 0
          %1150 = vmatprep.subr.bf16.mxu0 0
          %1151 = vmatpush2.bf16.msra.mxu0 0
          %1152 = vmatprep.subr.bf16.mxu0 0
          %1153 = vmatpush2.bf16.msra.mxu0 0
          %1154 = vmatprep.subr.bf16.mxu0 0
          %1155 = vmatpush2.bf16.msra.mxu0 0
          %1156 = vmatprep.subr.bf16.mxu0 0
          %1157 = vmatpush2.bf16.msra.mxu0 0
          %1158 = vmatprep.mubr.bf16.mxu0 0
          %1159 = vmatmul.mubr.bf16.gmra.mxu0 %v1117
          %v1160 = vpop.f32.mrf.mxu0
          %v1161 = vadd.f32 0.0, %v1160
          %v1162 = vpop.f32.mrf.mxu0
          %v1163 = vpop.f32.mrf.mxu0
          %v1164 = vadd.f32 0.0, %v1163
          %v1165 = vpop.f32.mrf.mxu0
          %1166 = vmatprep.mubr.bf16.mxu0 0
          %1167 = vmatmul.mubr.bf16.gmra.mxu0 %v1120
          %v1168 = vpop.f32.mrf.mxu0
          %v1169 = vadd.f32 0.0, %v1168
          %v1170 = vpop.f32.mrf.mxu0
          %v1171 = vpop.f32.mrf.mxu0
          %v1172 = vadd.f32 0.0, %v1171
          %v1173 = vpop.f32.mrf.mxu0
          %1174 = vdwg.mxu0
          %v1175 = vsel %vm1115, %v1088, 0
          %v1177 = vsel %vm1115, %v1090, 0
          %v1180 = vsel %vm1122, %v1091, 0
          %1182 = vmatprep.subr.bf16.mxu0 0
          %1183 = vmatpush1.bf16.msra.mxu0 0
          %1184 = vmatprep.subr.bf16.mxu0 0
          %1185 = vmatpush1.bf16.msra.mxu0 0
          %1186 = vmatprep.subr.bf16.mxu0 0
          %1187 = vmatpush1.bf16.msra.mxu0 0
          %1188 = vmatprep.subr.bf16.mxu0 0
          %1189 = vmatpush1.bf16.msra.mxu0 0
          %1190 = vmatprep.subr.bf16.mxu0 0
          %1191 = vmatpush1.bf16.msra.mxu0 0
          %1192 = vmatprep.subr.bf16.mxu0 0
          %1193 = vmatpush1.bf16.msra.mxu0 0
          %1194 = vmatprep.subr.bf16.mxu0 0
          %1195 = vmatpush1.bf16.msra.mxu0 0
          %1196 = vmatprep.subr.bf16.mxu0 0
          %1197 = vmatpush1.bf16.msra.mxu0 %v1180
          %1198 = vmatprep.subr.bf16.mxu0 0
          %1199 = vmatpush2.bf16.msra.mxu0 0
          %1200 = vmatprep.subr.bf16.mxu0 0
          %1201 = vmatpush2.bf16.msra.mxu0 0
          %1202 = vmatprep.subr.bf16.mxu0 0
          %1203 = vmatpush2.bf16.msra.mxu0 0
          %1204 = vmatprep.subr.bf16.mxu0 0
          %1205 = vmatpush2.bf16.msra.mxu0 0
          %1206 = vmatprep.subr.bf16.mxu0 0
          %1207 = vmatpush2.bf16.msra.mxu0 0
          %1208 = vmatprep.subr.bf16.mxu0 0
          %1209 = vmatpush2.bf16.msra.mxu0 0
          %1210 = vmatprep.subr.bf16.mxu0 0
          %1211 = vmatpush2.bf16.msra.mxu0 0
          %1212 = vmatprep.subr.bf16.mxu0 0
          %1213 = vmatpush2.bf16.msra.mxu0 0
          %1214 = vmatprep.mubr.bf16.mxu0 0
          %1215 = vmatmul.mubr.bf16.gmra.mxu0 %v1175
          %v1216 = vpop.f32.mrf.mxu0
          %v1217 = vadd.f32 %v1161, %v1216
          %v1218 = vpop.f32.mrf.mxu0
          %v1219 = vpop.f32.mrf.mxu0
          %v1220 = vadd.f32 %v1164, %v1219
          %v1221 = vpop.f32.mrf.mxu0
          %1222 = vmatprep.mubr.bf16.mxu0 0
          %1223 = vmatmul.mubr.bf16.gmra.mxu0 %v1177
          %v1224 = vpop.f32.mrf.mxu0
          %v1225 = vadd.f32 %v1169, %v1224
          %v1226 = vpop.f32.mrf.mxu0
          %v1227 = vpop.f32.mrf.mxu0
          %v1228 = vadd.f32 %v1172, %v1227
          %v1229 = vpop.f32.mrf.mxu0
          %1230 = vdwg.mxu0
          %s1231 = scalar_lea.vmem [#allocation6], 4
          %v1232 = vld [vmem:[%s1231] sm:$0x3]
          %v1233 = vsel %vm1115, %v1079, 0
          %v1235 = vsel %vm1115, %v1080, 0
          %v1238 = vsel %vm1122, %v1232, 0
          %1240 = vmatprep.subr.bf16.mxu0 0
          %1241 = vmatpush1.bf16.msra.mxu0 0
          %1242 = vmatprep.subr.bf16.mxu0 0
          %1243 = vmatpush1.bf16.msra.mxu0 0
          %1244 = vmatprep.subr.bf16.mxu0 0
          %1245 = vmatpush1.bf16.msra.mxu0 0
          %1246 = vmatprep.subr.bf16.mxu0 0
          %1247 = vmatpush1.bf16.msra.mxu0 0
          %1248 = vmatprep.subr.bf16.mxu0 0
          %1249 = vmatpush1.bf16.msra.mxu0 0
          %1250 = vmatprep.subr.bf16.mxu0 0
          %1251 = vmatpush1.bf16.msra.mxu0 0
          %1252 = vmatprep.subr.bf16.mxu0 0
          %1253 = vmatpush1.bf16.msra.mxu0 0
          %1254 = vmatprep.subr.bf16.mxu0 0
          %1255 = vmatpush1.bf16.msra.mxu0 %v1238
          %1256 = vmatprep.subr.bf16.mxu0 0
          %1257 = vmatpush2.bf16.msra.mxu0 0
          %1258 = vmatprep.subr.bf16.mxu0 0
          %1259 = vmatpush2.bf16.msra.mxu0 0
          %1260 = vmatprep.subr.bf16.mxu0 0
          %1261 = vmatpush2.bf16.msra.mxu0 0
          %1262 = vmatprep.subr.bf16.mxu0 0
          %1263 = vmatpush2.bf16.msra.mxu0 0
          %1264 = vmatprep.subr.bf16.mxu0 0
          %1265 = vmatpush2.bf16.msra.mxu0 0
          %1266 = vmatprep.subr.bf16.mxu0 0
          %1267 = vmatpush2.bf16.msra.mxu0 0
          %1268 = vmatprep.subr.bf16.mxu0 0
          %1269 = vmatpush2.bf16.msra.mxu0 0
          %1270 = vmatprep.subr.bf16.mxu0 0
          %1271 = vmatpush2.bf16.msra.mxu0 0
          %1272 = vmatprep.mubr.bf16.mxu0 0
          %1273 = vmatmul.mubr.bf16.gmra.mxu0 %v1233
          %v1274 = vpop.f32.mrf.mxu0
          %v1275 = vadd.f32 0.0, %v1274
          %v1276 = vpop.f32.mrf.mxu0
          %v1277 = vpop.f32.mrf.mxu0
          %v1278 = vadd.f32 0.0, %v1277
          %v1279 = vpop.f32.mrf.mxu0
          %1280 = vmatprep.mubr.bf16.mxu0 0
          %1281 = vmatmul.mubr.bf16.gmra.mxu0 %v1235
          %v1282 = vpop.f32.mrf.mxu0
          %v1283 = vadd.f32 0.0, %v1282
          %v1284 = vpop.f32.mrf.mxu0
          %v1285 = vpop.f32.mrf.mxu0
          %v1286 = vadd.f32 0.0, %v1285
          %v1287 = vpop.f32.mrf.mxu0
          %1288 = vdwg.mxu0
          %v1289 = vadd.f32 %v1217, %v1275
          %v1290 = vadd.f32 %v1220, %v1278
          %v1291 = vadd.f32 %v1225, %v1283
          %v1292 = vadd.f32 %v1228, %v1286
          %v1293 = vrot.slane %v1096, 1
          %v1294 = vor.u32 %v1093, %v1293
          %v1295 = vrot.slane %v1103, 1
          %v1296 = vor.u32 %v1100, %v1295
          %vm1299 = vcmask 1047552
          %vm1300 = vsmask.f32 7424
          %vm1301 = vmand %vm1299, %vm1300
          %v1302 = vsel %vm1301, %v1294, 0
          %v1303 = vsel %vm1301, %v1296, 0
          %s1304 = scalar_lea.vmem [#allocation6], 6
          %v1305 = vld [vmem:[%s1304] sm:$0x3]
          %v1307 = vsel %vm1115, %v1302, 0
          %v1310 = vsel %vm1115, %v1303, 0
          %v1313 = vsel %vm1122, %v1305, 0
          %1315 = vmatprep.subr.bf16.mxu0 0
          %1316 = vmatpush1.bf16.msra.mxu0 0
          %1317 = vmatprep.subr.bf16.mxu0 0
          %1318 = vmatpush1.bf16.msra.mxu0 0
          %1319 = vmatprep.subr.bf16.mxu0 0
          %1320 = vmatpush1.bf16.msra.mxu0 0
          %1321 = vmatprep.subr.bf16.mxu0 0
          %1322 = vmatpush1.bf16.msra.mxu0 0
          %1323 = vmatprep.subr.bf16.mxu0 0
          %1324 = vmatpush1.bf16.msra.mxu0 0
          %1325 = vmatprep.subr.bf16.mxu0 0
          %1326 = vmatpush1.bf16.msra.mxu0 0
          %1327 = vmatprep.subr.bf16.mxu0 0
          %1328 = vmatpush1.bf16.msra.mxu0 0
          %1329 = vmatprep.subr.bf16.mxu0 0
          %1330 = vmatpush1.bf16.msra.mxu0 %v1313
          %1331 = vmatprep.subr.bf16.mxu0 0
          %1332 = vmatpush2.bf16.msra.mxu0 0
          %1333 = vmatprep.subr.bf16.mxu0 0
          %1334 = vmatpush2.bf16.msra.mxu0 0
          %1335 = vmatprep.subr.bf16.mxu0 0
          %1336 = vmatpush2.bf16.msra.mxu0 0
          %1337 = vmatprep.subr.bf16.mxu0 0
          %1338 = vmatpush2.bf16.msra.mxu0 0
          %1339 = vmatprep.subr.bf16.mxu0 0
          %1340 = vmatpush2.bf16.msra.mxu0 0
          %1341 = vmatprep.subr.bf16.mxu0 0
          %1342 = vmatpush2.bf16.msra.mxu0 0
          %1343 = vmatprep.subr.bf16.mxu0 0
          %1344 = vmatpush2.bf16.msra.mxu0 0
          %1345 = vmatprep.subr.bf16.mxu0 0
          %1346 = vmatpush2.bf16.msra.mxu0 0
          %1347 = vmatprep.mubr.bf16.mxu0 0
          %1348 = vmatmul.mubr.bf16.gmra.mxu0 %v1307
          %v1349 = vpop.f32.mrf.mxu0
          %v1350 = vadd.f32 0.0, %v1349
          %v1351 = vpop.f32.mrf.mxu0
          %v1352 = vpop.f32.mrf.mxu0
          %v1353 = vadd.f32 0.0, %v1352
          %v1354 = vpop.f32.mrf.mxu0
          %1355 = vmatprep.mubr.bf16.mxu0 0
          %1356 = vmatmul.mubr.bf16.gmra.mxu0 %v1310
          %v1357 = vpop.f32.mrf.mxu0
          %v1358 = vadd.f32 0.0, %v1357
          %v1359 = vpop.f32.mrf.mxu0
          %v1360 = vpop.f32.mrf.mxu0
          %v1361 = vadd.f32 0.0, %v1360
          %v1362 = vpop.f32.mrf.mxu0
          %1363 = vdwg.mxu0
          %v1364 = vadd.f32 %v1289, %v1350
          %v1365 = vadd.f32 %v1290, %v1353
          %v1366 = vadd.f32 %v1291, %v1358
          %v1367 = vadd.f32 %v1292, %v1361
          %v1368 = vrot.slane %v1079, 1
          %v1369 = vrot.slane %v1080, 1
          %vm1370 = vcmask 1046528
          %v1372 = vsel %vm1370, %v1368, 0
          %v1374 = vsel %vm1370, %v1369, 0
          %s1375 = scalar_lea.vmem [#allocation6], 8
          %v1376 = vld [vmem:[%s1375] sm:$0x3]
          %v1377 = vsel %vm1115, %v1372, 0
          %v1379 = vsel %vm1115, %v1374, 0
          %v1382 = vsel %vm1122, %v1376, 0
          %1384 = vmatprep.subr.bf16.mxu0 0
          %1385 = vmatpush1.bf16.msra.mxu0 0
          %1386 = vmatprep.subr.bf16.mxu0 0
          %1387 = vmatpush1.bf16.msra.mxu0 0
          %1388 = vmatprep.subr.bf16.mxu0 0
          %1389 = vmatpush1.bf16.msra.mxu0 0
          %1390 = vmatprep.subr.bf16.mxu0 0
          %1391 = vmatpush1.bf16.msra.mxu0 0
          %1392 = vmatprep.subr.bf16.mxu0 0
          %1393 = vmatpush1.bf16.msra.mxu0 0
          %1394 = vmatprep.subr.bf16.mxu0 0
          %1395 = vmatpush1.bf16.msra.mxu0 0
          %1396 = vmatprep.subr.bf16.mxu0 0
          %1397 = vmatpush1.bf16.msra.mxu0 0
          %1398 = vmatprep.subr.bf16.mxu0 0
          %1399 = vmatpush1.bf16.msra.mxu0 %v1382
          %1400 = vmatprep.subr.bf16.mxu0 0
          %1401 = vmatpush2.bf16.msra.mxu0 0
          %1402 = vmatprep.subr.bf16.mxu0 0
          %1403 = vmatpush2.bf16.msra.mxu0 0
          %1404 = vmatprep.subr.bf16.mxu0 0
          %1405 = vmatpush2.bf16.msra.mxu0 0
          %1406 = vmatprep.subr.bf16.mxu0 0
          %1407 = vmatpush2.bf16.msra.mxu0 0
          %1408 = vmatprep.subr.bf16.mxu0 0
          %1409 = vmatpush2.bf16.msra.mxu0 0
          %1410 = vmatprep.subr.bf16.mxu0 0
          %1411 = vmatpush2.bf16.msra.mxu0 0
          %1412 = vmatprep.subr.bf16.mxu0 0
          %1413 = vmatpush2.bf16.msra.mxu0 0
          %1414 = vmatprep.subr.bf16.mxu0 0
          %1415 = vmatpush2.bf16.msra.mxu0 0
          %1416 = vmatprep.mubr.bf16.mxu0 0
          %1417 = vmatmul.mubr.bf16.gmra.mxu0 %v1377
          %v1418 = vpop.f32.mrf.mxu0
          %v1419 = vadd.f32 0.0, %v1418
          %v1420 = vpop.f32.mrf.mxu0
          %v1421 = vpop.f32.mrf.mxu0
          %v1422 = vadd.f32 0.0, %v1421
          %v1423 = vpop.f32.mrf.mxu0
          %1424 = vmatprep.mubr.bf16.mxu0 0
          %1425 = vmatmul.mubr.bf16.gmra.mxu0 %v1379
          %v1426 = vpop.f32.mrf.mxu0
          %v1427 = vadd.f32 0.0, %v1426
          %v1428 = vpop.f32.mrf.mxu0
          %v1429 = vpop.f32.mrf.mxu0
          %v1430 = vadd.f32 0.0, %v1429
          %v1431 = vpop.f32.mrf.mxu0
          %1432 = vdwg.mxu0
          %v1433 = vadd.f32 %v1364, %v1419
          %v1434 = vadd.f32 %v1365, %v1422
          %v1435 = vadd.f32 %v1366, %v1427
          %v1436 = vadd.f32 %v1367, %v1430
          %v1437 = vld [vmem:[#allocation8] sm:$0x1]
          %v1439 = vlaneseq
          %v1440 = vshrl.u32 %v1439, 7
          %v1441 = vsub.s32 0, %v1440
          %v1442 = vrot.slane %v1437, %v1441
          %v1444 = vmul.f32 %v1433, %v1442
          %v1445 = vmul.f32 %v1434, %v1442
          %v1446 = vmul.f32 %v1435, %v1442
          %v1447 = vmul.f32 %v1436, %v1442
          %v1448 = vld [vmem:[#allocation9] sm:$0x1]
          %v1450 = vlaneseq
          %v1451 = vshrl.u32 %v1450, 7
          %v1452 = vsub.s32 0, %v1451
          %v1453 = vrot.slane %v1448, %v1452
          %v1455 = vadd.f32 %v1444, %v1453
          %v1456 = vadd.f32 %v1445, %v1453
          %v1457 = vadd.f32 %v1446, %v1453
          %v1458 = vadd.f32 %v1447, %v1453
          %v1459 = vmax.f32 %v1455, 0.0
          %v1460 = vmax.f32 %v1456, 0.0
          %v1461 = vmax.f32 %v1457, 0.0
          %v1462 = vmax.f32 %v1458, 0.0
          %v1463 = vpack.c.bf16 %v1460, %v1459
          %v1464 = vpack.c.bf16 %v1462, %v1461
          %v1466 = vshrl.u32 %v1463, 16
          %v1468 = vrot.slane %v1466, 7
          %v1469 = vshll.u32 %v1463, 16
          %v1471 = vor.u32 %v1468, %v1469
          %v1473 = vshrl.u32 %v1464, 16
          %v1475 = vrot.slane %v1473, 7
          %v1476 = vshll.u32 %v1464, 16
          %v1478 = vor.u32 %v1475, %v1476
          %v1481 = vsel %vm1110, 0, %v1471
          %v1482 = vsel %vm1110, 0, %v1478
          %v1483 = vld [vmem:[%s5] sm:$0xf]
          %s1484 = scalar_lea.vmem %s5, 4
          %v1485 = vld [vmem:[%s1484] sm:$0xf]
          %vm1486 = vcmask 64512
          %v1487 = vsel %vm1486, %v1463, 0
          %v1489 = vsel %vm1486, %v1464, 0
          %vm1491 = vcmask 1043456
          %v1493 = vsel %vm1491, %v1485, 0
          %1495 = vmatprep.subr.bf16.mxu0 0
          %1496 = vmatpush1.bf16.msra.mxu0 0
          %1497 = vmatprep.subr.bf16.mxu0 0
          %1498 = vmatpush1.bf16.msra.mxu0 0
          %1499 = vmatprep.subr.bf16.mxu0 0
          %1500 = vmatpush1.bf16.msra.mxu0 0
          %1501 = vmatprep.subr.bf16.mxu0 0
          %1502 = vmatpush1.bf16.msra.mxu0 0
          %1503 = vmatprep.subr.bf16.mxu0 0
          %1504 = vmatpush1.bf16.msra.mxu0 0
          %1505 = vmatprep.subr.bf16.mxu0 0
          %1506 = vmatpush1.bf16.msra.mxu0 0
          %1507 = vmatprep.subr.bf16.mxu0 0
          %1508 = vmatpush1.bf16.msra.mxu0 0
          %1509 = vmatprep.subr.bf16.mxu0 0
          %1510 = vmatpush1.bf16.msra.mxu0 %v1493
          %1511 = vmatprep.subr.bf16.mxu0 0
          %1512 = vmatpush2.bf16.msra.mxu0 0
          %1513 = vmatprep.subr.bf16.mxu0 0
          %1514 = vmatpush2.bf16.msra.mxu0 0
          %1515 = vmatprep.subr.bf16.mxu0 0
          %1516 = vmatpush2.bf16.msra.mxu0 0
          %1517 = vmatprep.subr.bf16.mxu0 0
          %1518 = vmatpush2.bf16.msra.mxu0 0
          %1519 = vmatprep.subr.bf16.mxu0 0
          %1520 = vmatpush2.bf16.msra.mxu0 0
          %1521 = vmatprep.subr.bf16.mxu0 0
          %1522 = vmatpush2.bf16.msra.mxu0 0
          %1523 = vmatprep.subr.bf16.mxu0 0
          %1524 = vmatpush2.bf16.msra.mxu0 0
          %1525 = vmatprep.subr.bf16.mxu0 0
          %1526 = vmatpush2.bf16.msra.mxu0 0
          %1527 = vmatprep.mubr.bf16.mxu0 0
          %1528 = vmatmul.mubr.bf16.gmra.mxu0 %v1487
          %v1529 = vpop.f32.mrf.mxu0
          %v1530 = vadd.f32 0.0, %v1529
          %v1531 = vpop.f32.mrf.mxu0
          %v1532 = vpop.f32.mrf.mxu0
          %v1533 = vadd.f32 0.0, %v1532
          %v1534 = vpop.f32.mrf.mxu0
          %1535 = vmatprep.mubr.bf16.mxu0 0
          %1536 = vmatmul.mubr.bf16.gmra.mxu0 %v1489
          %v1537 = vpop.f32.mrf.mxu0
          %v1538 = vadd.f32 0.0, %v1537
          %v1539 = vpop.f32.mrf.mxu0
          %v1540 = vpop.f32.mrf.mxu0
          %v1541 = vadd.f32 0.0, %v1540
          %v1542 = vpop.f32.mrf.mxu0
          %1543 = vdwg.mxu0
          %v1545 = vsel %vm1486, %v1481, 0
          %v1548 = vsel %vm1486, %v1482, 0
          %v1551 = vsel %vm1491, %v1483, 0
          %1553 = vmatprep.subr.bf16.mxu0 0
          %1554 = vmatpush1.bf16.msra.mxu0 0
          %1555 = vmatprep.subr.bf16.mxu0 0
          %1556 = vmatpush1.bf16.msra.mxu0 0
          %1557 = vmatprep.subr.bf16.mxu0 0
          %1558 = vmatpush1.bf16.msra.mxu0 0
          %1559 = vmatprep.subr.bf16.mxu0 0
          %1560 = vmatpush1.bf16.msra.mxu0 0
          %1561 = vmatprep.subr.bf16.mxu0 0
          %1562 = vmatpush1.bf16.msra.mxu0 0
          %1563 = vmatprep.subr.bf16.mxu0 0
          %1564 = vmatpush1.bf16.msra.mxu0 0
          %1565 = vmatprep.subr.bf16.mxu0 0
          %1566 = vmatpush1.bf16.msra.mxu0 0
          %1567 = vmatprep.subr.bf16.mxu0 0
          %1568 = vmatpush1.bf16.msra.mxu0 %v1551
          %1569 = vmatprep.subr.bf16.mxu0 0
          %1570 = vmatpush2.bf16.msra.mxu0 0
          %1571 = vmatprep.subr.bf16.mxu0 0
          %1572 = vmatpush2.bf16.msra.mxu0 0
          %1573 = vmatprep.subr.bf16.mxu0 0
          %1574 = vmatpush2.bf16.msra.mxu0 0
          %1575 = vmatprep.subr.bf16.mxu0 0
          %1576 = vmatpush2.bf16.msra.mxu0 0
          %1577 = vmatprep.subr.bf16.mxu0 0
          %1578 = vmatpush2.bf16.msra.mxu0 0
          %1579 = vmatprep.subr.bf16.mxu0 0
          %1580 = vmatpush2.bf16.msra.mxu0 0
          %1581 = vmatprep.subr.bf16.mxu0 0
          %1582 = vmatpush2.bf16.msra.mxu0 0
          %1583 = vmatprep.subr.bf16.mxu0 0
          %1584 = vmatpush2.bf16.msra.mxu0 0
          %1585 = vmatprep.mubr.bf16.mxu0 0
          %1586 = vmatmul.mubr.bf16.gmra.mxu0 %v1545
          %v1587 = vpop.f32.mrf.mxu0
          %v1588 = vadd.f32 %v1530, %v1587
          %v1589 = vpop.f32.mrf.mxu0
          %v1590 = vpop.f32.mrf.mxu0
          %v1591 = vadd.f32 %v1533, %v1590
          %v1592 = vpop.f32.mrf.mxu0
          %1593 = vmatprep.mubr.bf16.mxu0 0
          %1594 = vmatmul.mubr.bf16.gmra.mxu0 %v1548
          %v1595 = vpop.f32.mrf.mxu0
          %v1596 = vadd.f32 %v1538, %v1595
          %v1597 = vpop.f32.mrf.mxu0
          %v1598 = vpop.f32.mrf.mxu0
          %v1599 = vadd.f32 %v1541, %v1598
          %v1600 = vpop.f32.mrf.mxu0
          %1601 = vdwg.mxu0
          %v1602 = vrot.slane %v1469, 1
          %v1603 = vor.u32 %v1466, %v1602
          %v1604 = vrot.slane %v1476, 1
          %v1605 = vor.u32 %v1473, %v1604
          %v1608 = vsel %vm1301, %v1603, 0
          %v1609 = vsel %vm1301, %v1605, 0
          %s1610 = scalar_lea.vmem %s5, 8
          %v1611 = vld [vmem:[%s1610] sm:$0xf]
          %v1613 = vsel %vm1486, %v1608, 0
          %v1616 = vsel %vm1486, %v1609, 0
          %v1619 = vsel %vm1491, %v1611, 0
          %1621 = vmatprep.subr.bf16.mxu0 0
          %1622 = vmatpush1.bf16.msra.mxu0 0
          %1623 = vmatprep.subr.bf16.mxu0 0
          %1624 = vmatpush1.bf16.msra.mxu0 0
          %1625 = vmatprep.subr.bf16.mxu0 0
          %1626 = vmatpush1.bf16.msra.mxu0 0
          %1627 = vmatprep.subr.bf16.mxu0 0
          %1628 = vmatpush1.bf16.msra.mxu0 0
          %1629 = vmatprep.subr.bf16.mxu0 0
          %1630 = vmatpush1.bf16.msra.mxu0 0
          %1631 = vmatprep.subr.bf16.mxu0 0
          %1632 = vmatpush1.bf16.msra.mxu0 0
          %1633 = vmatprep.subr.bf16.mxu0 0
          %1634 = vmatpush1.bf16.msra.mxu0 0
          %1635 = vmatprep.subr.bf16.mxu0 0
          %1636 = vmatpush1.bf16.msra.mxu0 %v1619
          %1637 = vmatprep.subr.bf16.mxu0 0
          %1638 = vmatpush2.bf16.msra.mxu0 0
          %1639 = vmatprep.subr.bf16.mxu0 0
          %1640 = vmatpush2.bf16.msra.mxu0 0
          %1641 = vmatprep.subr.bf16.mxu0 0
          %1642 = vmatpush2.bf16.msra.mxu0 0
          %1643 = vmatprep.subr.bf16.mxu0 0
          %1644 = vmatpush2.bf16.msra.mxu0 0
          %1645 = vmatprep.subr.bf16.mxu0 0
          %1646 = vmatpush2.bf16.msra.mxu0 0
          %1647 = vmatprep.subr.bf16.mxu0 0
          %1648 = vmatpush2.bf16.msra.mxu0 0
          %1649 = vmatprep.subr.bf16.mxu0 0
          %1650 = vmatpush2.bf16.msra.mxu0 0
          %1651 = vmatprep.subr.bf16.mxu0 0
          %1652 = vmatpush2.bf16.msra.mxu0 0
          %1653 = vmatprep.mubr.bf16.mxu0 0
          %1654 = vmatmul.mubr.bf16.gmra.mxu0 %v1613
          %v1655 = vpop.f32.mrf.mxu0
          %v1656 = vadd.f32 0.0, %v1655
          %v1657 = vpop.f32.mrf.mxu0
          %v1658 = vpop.f32.mrf.mxu0
          %v1659 = vadd.f32 0.0, %v1658
          %v1660 = vpop.f32.mrf.mxu0
          %1661 = vmatprep.mubr.bf16.mxu0 0
          %1662 = vmatmul.mubr.bf16.gmra.mxu0 %v1616
          %v1663 = vpop.f32.mrf.mxu0
          %v1664 = vadd.f32 0.0, %v1663
          %v1665 = vpop.f32.mrf.mxu0
          %v1666 = vpop.f32.mrf.mxu0
          %v1667 = vadd.f32 0.0, %v1666
          %v1668 = vpop.f32.mrf.mxu0
          %1669 = vdwg.mxu0
          %v1670 = vadd.f32 %v1588, %v1656
          %v1671 = vadd.f32 %v1591, %v1659
          %v1672 = vadd.f32 %v1596, %v1664
          %v1673 = vadd.f32 %v1599, %v1667
          %v1674 = vld [vmem:[#allocation11] sm:$0x1]
          %v1676 = vlaneseq
          %v1677 = vshrl.u32 %v1676, 7
          %v1678 = vsub.s32 0, %v1677
          %v1679 = vrot.slane %v1674, %v1678
          %v1681 = vmul.f32 %v1670, %v1679
          %v1682 = vmul.f32 %v1671, %v1679
          %v1683 = vmul.f32 %v1672, %v1679
          %v1684 = vmul.f32 %v1673, %v1679
          %v1685 = vld [vmem:[#allocation12] sm:$0x1]
          %v1687 = vlaneseq
          %v1688 = vshrl.u32 %v1687, 7
          %v1689 = vsub.s32 0, %v1688
          %v1690 = vrot.slane %v1685, %v1689
          %v1692 = vadd.f32 %v1681, %v1690
          %v1693 = vadd.f32 %v1682, %v1690
          %v1694 = vadd.f32 %v1683, %v1690
          %v1695 = vadd.f32 %v1684, %v1690
          %v1696 = vmax.f32 %v1692, 0.0
          %v1697 = vmax.f32 %v1693, 0.0
          %v1698 = vmax.f32 %v1694, 0.0
          %v1699 = vmax.f32 %v1695, 0.0
          %v1700 = vpack.c.bf16 %v1697, %v1696
          %v1701 = vpack.c.bf16 %v1699, %v1698
          %v1703 = vshrl.u32 %v1700, 16
          %v1705 = vrot.slane %v1703, 7
          %v1706 = vshll.u32 %v1700, 16
          %v1708 = vor.u32 %v1705, %v1706
          %v1710 = vshrl.u32 %v1701, 16
          %v1712 = vrot.slane %v1710, 7
          %v1713 = vshll.u32 %v1701, 16
          %v1715 = vor.u32 %v1712, %v1713
          %v1718 = vsel %vm1110, 0, %v1708
          %v1719 = vsel %vm1110, 0, %v1715
          %v1720 = vld [vmem:[%s8] sm:$0xf]
          %v1721 = vld [vmem:[%s8 + $0x4] sm:$0xf]
          %s1722 = scalar_lea.vmem %s8, 8
          %v1723 = vld [vmem:[%s1722] sm:$0xf]
          %v1724 = vld [vmem:[%s1722 + $0x4] sm:$0xf]
          %v1727 = vunpack.c.l.b16 %v1723
          %v1728 = vunpack.c.l.b16 %v1724
          %v1729 = vpack.c.b16 %v1728, %v1727
          %vm1731 = vcmask 130048
          %v1732 = vsel %vm1731, %v1700, 0
          %v1734 = vsel %vm1731, %v1701, 0
          %1736 = vmatprep.subr.bf16.mxu0 0
          %1737 = vmatpush1.bf16.msra.mxu0 0
          %1738 = vmatprep.subr.bf16.mxu0 0
          %1739 = vmatpush1.bf16.msra.mxu0 0
          %1740 = vmatprep.subr.bf16.mxu0 0
          %1741 = vmatpush1.bf16.msra.mxu0 0
          %1742 = vmatprep.subr.bf16.mxu0 0
          %1743 = vmatpush1.bf16.msra.mxu0 0
          %1744 = vmatprep.subr.bf16.mxu0 0
          %1745 = vmatpush1.bf16.msra.mxu0 0
          %1746 = vmatprep.subr.bf16.mxu0 0
          %1747 = vmatpush1.bf16.msra.mxu0 0
          %1748 = vmatprep.subr.bf16.mxu0 0
          %1749 = vmatpush1.bf16.msra.mxu0 0
          %1750 = vmatprep.subr.bf16.mxu0 0
          %1751 = vmatpush1.bf16.msra.mxu0 %v1729
          %1752 = vmatprep.subr.bf16.mxu0 0
          %1753 = vmatpush2.bf16.msra.mxu0 0
          %1754 = vmatprep.subr.bf16.mxu0 0
          %1755 = vmatpush2.bf16.msra.mxu0 0
          %1756 = vmatprep.subr.bf16.mxu0 0
          %1757 = vmatpush2.bf16.msra.mxu0 0
          %1758 = vmatprep.subr.bf16.mxu0 0
          %1759 = vmatpush2.bf16.msra.mxu0 0
          %1760 = vmatprep.subr.bf16.mxu0 0
          %1761 = vmatpush2.bf16.msra.mxu0 0
          %1762 = vmatprep.subr.bf16.mxu0 0
          %1763 = vmatpush2.bf16.msra.mxu0 0
          %1764 = vmatprep.subr.bf16.mxu0 0
          %1765 = vmatpush2.bf16.msra.mxu0 0
          %1766 = vmatprep.subr.bf16.mxu0 0
          %1767 = vmatpush2.bf16.msra.mxu0 0
          %1768 = vmatprep.mubr.bf16.mxu0 0
          %1769 = vmatmul.mubr.bf16.gmra.mxu0 %v1732
          %v1770 = vpop.f32.mrf.mxu0
          %v1771 = vadd.f32 0.0, %v1770
          %v1772 = vpop.f32.mrf.mxu0
          %v1773 = vpop.f32.mrf.mxu0
          %v1774 = vadd.f32 0.0, %v1773
          %v1775 = vpop.f32.mrf.mxu0
          %1776 = vmatprep.mubr.bf16.mxu0 0
          %1777 = vmatmul.mubr.bf16.gmra.mxu0 %v1734
          %v1778 = vpop.f32.mrf.mxu0
          %v1779 = vadd.f32 0.0, %v1778
          %v1780 = vpop.f32.mrf.mxu0
          %v1781 = vpop.f32.mrf.mxu0
          %v1782 = vadd.f32 0.0, %v1781
          %v1783 = vpop.f32.mrf.mxu0
          %1784 = vdwg.mxu0
          %v1787 = vunpack.c.l.b16 %v1720
          %v1788 = vunpack.c.l.b16 %v1721
          %v1789 = vpack.c.b16 %v1788, %v1787
          %v1792 = vsel %vm1731, %v1718, 0
          %v1795 = vsel %vm1731, %v1719, 0
          %1797 = vmatprep.subr.bf16.mxu0 0
          %1798 = vmatpush1.bf16.msra.mxu0 0
          %1799 = vmatprep.subr.bf16.mxu0 0
          %1800 = vmatpush1.bf16.msra.mxu0 0
          %1801 = vmatprep.subr.bf16.mxu0 0
          %1802 = vmatpush1.bf16.msra.mxu0 0
          %1803 = vmatprep.subr.bf16.mxu0 0
          %1804 = vmatpush1.bf16.msra.mxu0 0
          %1805 = vmatprep.subr.bf16.mxu0 0
          %1806 = vmatpush1.bf16.msra.mxu0 0
          %1807 = vmatprep.subr.bf16.mxu0 0
          %1808 = vmatpush1.bf16.msra.mxu0 0
          %1809 = vmatprep.subr.bf16.mxu0 0
          %1810 = vmatpush1.bf16.msra.mxu0 0
          %1811 = vmatprep.subr.bf16.mxu0 0
          %1812 = vmatpush1.bf16.msra.mxu0 %v1789
          %1813 = vmatprep.subr.bf16.mxu0 0
          %1814 = vmatpush2.bf16.msra.mxu0 0
          %1815 = vmatprep.subr.bf16.mxu0 0
          %1816 = vmatpush2.bf16.msra.mxu0 0
          %1817 = vmatprep.subr.bf16.mxu0 0
          %1818 = vmatpush2.bf16.msra.mxu0 0
          %1819 = vmatprep.subr.bf16.mxu0 0
          %1820 = vmatpush2.bf16.msra.mxu0 0
          %1821 = vmatprep.subr.bf16.mxu0 0
          %1822 = vmatpush2.bf16.msra.mxu0 0
          %1823 = vmatprep.subr.bf16.mxu0 0
          %1824 = vmatpush2.bf16.msra.mxu0 0
          %1825 = vmatprep.subr.bf16.mxu0 0
          %1826 = vmatpush2.bf16.msra.mxu0 0
          %1827 = vmatprep.subr.bf16.mxu0 0
          %1828 = vmatpush2.bf16.msra.mxu0 0
          %1829 = vmatprep.mubr.bf16.mxu0 0
          %1830 = vmatmul.mubr.bf16.gmra.mxu0 %v1792
          %v1831 = vpop.f32.mrf.mxu0
          %v1832 = vadd.f32 %v1771, %v1831
          %v1833 = vpop.f32.mrf.mxu0
          %v1834 = vpop.f32.mrf.mxu0
          %v1835 = vadd.f32 %v1774, %v1834
          %v1836 = vpop.f32.mrf.mxu0
          %1837 = vmatprep.mubr.bf16.mxu0 0
          %1838 = vmatmul.mubr.bf16.gmra.mxu0 %v1795
          %v1839 = vpop.f32.mrf.mxu0
          %v1840 = vadd.f32 %v1779, %v1839
          %v1841 = vpop.f32.mrf.mxu0
          %v1842 = vpop.f32.mrf.mxu0
          %v1843 = vadd.f32 %v1782, %v1842
          %v1844 = vpop.f32.mrf.mxu0
          %1845 = vdwg.mxu0
          %v1846 = vrot.slane %v1706, 1
          %v1847 = vor.u32 %v1703, %v1846
          %v1848 = vrot.slane %v1713, 1
          %v1849 = vor.u32 %v1710, %v1848
          %v1852 = vsel %vm1301, %v1847, 0
          %v1853 = vsel %vm1301, %v1849, 0
          %s1854 = scalar_lea.vmem %s8, 16
          %v1855 = vld [vmem:[%s1854] sm:$0xf]
          %v1856 = vld [vmem:[%s1854 + $0x4] sm:$0xf]
          %v1859 = vunpack.c.l.b16 %v1855
          %v1860 = vunpack.c.l.b16 %v1856
          %v1861 = vpack.c.b16 %v1860, %v1859
          %v1864 = vsel %vm1731, %v1852, 0
          %v1867 = vsel %vm1731, %v1853, 0
          %1869 = vmatprep.subr.bf16.mxu0 0
          %1870 = vmatpush1.bf16.msra.mxu0 0
          %1871 = vmatprep.subr.bf16.mxu0 0
          %1872 = vmatpush1.bf16.msra.mxu0 0
          %1873 = vmatprep.subr.bf16.mxu0 0
          %1874 = vmatpush1.bf16.msra.mxu0 0
          %1875 = vmatprep.subr.bf16.mxu0 0
          %1876 = vmatpush1.bf16.msra.mxu0 0
          %1877 = vmatprep.subr.bf16.mxu0 0
          %1878 = vmatpush1.bf16.msra.mxu0 0
          %1879 = vmatprep.subr.bf16.mxu0 0
          %1880 = vmatpush1.bf16.msra.mxu0 0
          %1881 = vmatprep.subr.bf16.mxu0 0
          %1882 = vmatpush1.bf16.msra.mxu0 0
          %1883 = vmatprep.subr.bf16.mxu0 0
          %1884 = vmatpush1.bf16.msra.mxu0 %v1861
          %1885 = vmatprep.subr.bf16.mxu0 0
          %1886 = vmatpush2.bf16.msra.mxu0 0
          %1887 = vmatprep.subr.bf16.mxu0 0
          %1888 = vmatpush2.bf16.msra.mxu0 0
          %1889 = vmatprep.subr.bf16.mxu0 0
          %1890 = vmatpush2.bf16.msra.mxu0 0
          %1891 = vmatprep.subr.bf16.mxu0 0
          %1892 = vmatpush2.bf16.msra.mxu0 0
          %1893 = vmatprep.subr.bf16.mxu0 0
          %1894 = vmatpush2.bf16.msra.mxu0 0
          %1895 = vmatprep.subr.bf16.mxu0 0
          %1896 = vmatpush2.bf16.msra.mxu0 0
          %1897 = vmatprep.subr.bf16.mxu0 0
          %1898 = vmatpush2.bf16.msra.mxu0 0
          %1899 = vmatprep.subr.bf16.mxu0 0
          %1900 = vmatpush2.bf16.msra.mxu0 0
          %1901 = vmatprep.mubr.bf16.mxu0 0
          %1902 = vmatmul.mubr.bf16.gmra.mxu0 %v1864
          %v1903 = vpop.f32.mrf.mxu0
          %v1904 = vadd.f32 0.0, %v1903
          %v1905 = vpop.f32.mrf.mxu0
          %v1906 = vpop.f32.mrf.mxu0
          %v1907 = vadd.f32 0.0, %v1906
          %v1908 = vpop.f32.mrf.mxu0
          %1909 = vmatprep.mubr.bf16.mxu0 0
          %1910 = vmatmul.mubr.bf16.gmra.mxu0 %v1867
          %v1911 = vpop.f32.mrf.mxu0
          %v1912 = vadd.f32 0.0, %v1911
          %v1913 = vpop.f32.mrf.mxu0
          %v1914 = vpop.f32.mrf.mxu0
          %v1915 = vadd.f32 0.0, %v1914
          %v1916 = vpop.f32.mrf.mxu0
          %1917 = vdwg.mxu0
          %v1918 = vadd.f32 %v1832, %v1904
          %v1919 = vadd.f32 %v1835, %v1907
          %v1920 = vadd.f32 %v1840, %v1912
          %v1921 = vadd.f32 %v1843, %v1915
          %v1922 = vld [vmem:[#allocation14] sm:$0x1]
          %v1924 = vlaneseq
          %v1925 = vshrl.u32 %v1924, 7
          %v1926 = vsub.s32 0, %v1925
          %v1927 = vrot.slane %v1922, %v1926
          %v1929 = vmul.f32 %v1918, %v1927
          %v1930 = vmul.f32 %v1919, %v1927
          %v1931 = vmul.f32 %v1920, %v1927
          %v1932 = vmul.f32 %v1921, %v1927
          %v1933 = vld [vmem:[#allocation15] sm:$0x1]
          %v1935 = vlaneseq
          %v1936 = vshrl.u32 %v1935, 7
          %v1937 = vsub.s32 0, %v1936
          %v1938 = vrot.slane %v1933, %v1937
          %v1940 = vadd.f32 %v1929, %v1938
          %v1941 = vadd.f32 %v1930, %v1938
          %v1942 = vadd.f32 %v1931, %v1938
          %v1943 = vadd.f32 %v1932, %v1938
          %v1944 = vmax.f32 %v1940, 0.0
          %v1945 = vmax.f32 %v1941, 0.0
          %v1946 = vmax.f32 %v1942, 0.0
          %v1947 = vmax.f32 %v1943, 0.0
          %v1948 = vld [vmem:[#allocation3] sm:$0xff]
          %v1949 = vld [vmem:[#allocation3 + $0x8] sm:$0xff]
          %v1950 = vadd.f32 %v1944, %v1948
          %v1951 = vadd.f32 %v1945, %v1949
          %v1952 = vadd.f32 %v1946, %v1948
          %v1953 = vadd.f32 %v1947, %v1949
          %vm1954 = vcmask 261120
          %1955 = vst.msk [vmem:[#allocation2] sm:$0xff] %vm1954, %v1950
          %1956 = vst.msk [vmem:[#allocation2 + $0x8] sm:$0xff] %vm1954, %v1951
          %1957 = vst.msk [vmem:[#allocation2 + $0x10] sm:$0xff] %vm1954, %v1952
          %1958 = vst.msk [vmem:[#allocation2 + $0x18] sm:$0xff] %vm1954, %v1953
        $region156: #{tpu_custom_call.1} parent=119 // pred_fallthru
          _
        %v1959 = vld [vmem:[#allocation2] sm:$0xff]
        %v1960 = vld [vmem:[#allocation2 + $0x8] sm:$0xff]
        %v1961 = vld [vmem:[#allocation2 + $0x10] sm:$0xff]
        %v1962 = vld [vmem:[#allocation2 + $0x18] sm:$0xff]
        %v1963 = vpack.c.bf16 %v1960, %v1959
        %v1964 = vpack.c.bf16 %v1962, %v1961
        %v1965 = vld [vmem:[%s1030] sm:$0xf]
        %v1966 = vld [vmem:[%s1030 + $0x4] sm:$0xf]
        %v1967 = vld [vmem:[%s1030 + $0x8] sm:$0xf]
        %v1968 = vld [vmem:[%s1030 + $0xc] sm:$0xf]
        %v1969 = vld [vmem:[%s1033] sm:$0x1]
        %v1971 = vlaneseq
        %v1972 = vshrl.u32 %v1971, 7
        %v1973 = vsub.s32 0, %v1972
        %v1974 = vrot.slane %v1969, %v1973
        %v1980 = vunpack.c.l.b16 %v1965
        %v1981 = vunpack.c.l.b16 %v1966
        %v1982 = vunpack.c.l.b16 %v1967
        %v1983 = vunpack.c.l.b16 %v1968
        %v1984 = vpack.c.b16 %v1981, %v1980
        %v1985 = vpack.c.b16 %v1983, %v1982
        %vm1988 = vcmask 261120
        %v1990 = vsel %vm1988, %v1963, 0
        %v1993 = vsel %vm1988, %v1964, 0
        %1995 = vmatprep.subr.bf16.mxu0 0
        %1996 = vmatpush1.bf16.msra.mxu0 0
        %1997 = vmatprep.subr.bf16.mxu0 0
        %1998 = vmatpush1.bf16.msra.mxu0 0
        %1999 = vmatprep.subr.bf16.mxu0 0
        %2000 = vmatpush1.bf16.msra.mxu0 0
        %2001 = vmatprep.subr.bf16.mxu0 0
        %2002 = vmatpush1.bf16.msra.mxu0 0
        %2003 = vmatprep.subr.bf16.mxu0 0
        %2004 = vmatpush1.bf16.msra.mxu0 0
        %2005 = vmatprep.subr.bf16.mxu0 0
        %2006 = vmatpush1.bf16.msra.mxu0 0
        %2007 = vmatprep.subr.bf16.mxu0 0
        %2008 = vmatpush1.bf16.msra.mxu0 %v1985
        %2009 = vmatprep.subr.bf16.mxu0 0
        %2010 = vmatpush1.bf16.msra.mxu0 %v1984
        %2011 = vmatprep.subr.bf16.mxu0 0
        %2012 = vmatpush2.bf16.msra.mxu0 0
        %2013 = vmatprep.subr.bf16.mxu0 0
        %2014 = vmatpush2.bf16.msra.mxu0 0
        %2015 = vmatprep.subr.bf16.mxu0 0
        %2016 = vmatpush2.bf16.msra.mxu0 0
        %2017 = vmatprep.subr.bf16.mxu0 0
        %2018 = vmatpush2.bf16.msra.mxu0 0
        %2019 = vmatprep.subr.bf16.mxu0 0
        %2020 = vmatpush2.bf16.msra.mxu0 0
        %2021 = vmatprep.subr.bf16.mxu0 0
        %2022 = vmatpush2.bf16.msra.mxu0 0
        %2023 = vmatprep.subr.bf16.mxu0 0
        %2024 = vmatpush2.bf16.msra.mxu0 0
        %2025 = vmatprep.subr.bf16.mxu0 0
        %2026 = vmatpush2.bf16.msra.mxu0 0
        %2027 = vmatprep.mubr.bf16.mxu0 0
        %2028 = vmatmul.mubr.bf16.gmra.mxu0 %v1990
        %v2029 = vpop.f32.mrf.mxu0
        %v2030 = vadd.f32 %v1974, %v2029
        %v2031 = vpop.f32.mrf.mxu0
        %v2032 = vpop.f32.mrf.mxu0
        %v2033 = vadd.f32 %v1974, %v2032
        %v2034 = vpop.f32.mrf.mxu0
        %2035 = vmatprep.mubr.bf16.mxu0 0
        %2036 = vmatmul.mubr.bf16.gmra.mxu0 %v1993
        %v2037 = vpop.f32.mrf.mxu0
        %v2038 = vadd.f32 %v1974, %v2037
        %v2039 = vpop.f32.mrf.mxu0
        %v2040 = vpop.f32.mrf.mxu0
        %v2041 = vadd.f32 %v1974, %v2040
        %v2042 = vpop.f32.mrf.mxu0
        %2043 = vdwg.mxu0
        %v2044 = vpack.c.bf16 %v2033, %v2030
        %2046 = vrot.lane.b32.xlu0 %v2044, 96
        %v2047 = vpop.permute.xlu0 %2046
        %vm2048 = vcmask 64512
        %v2050 = vsel %vm2048, %v2044, 0
        %v2053 = vsel %vm2048, %v2047, 0
        %2055 = vmatprep.subr.bf16.mxu0 0
        %2056 = vmatpush1.bf16.xpose.msra.mxu0 0
        %2057 = vmatprep.subr.bf16.mxu0 0
        %2058 = vmatpush1.bf16.xpose.msra.mxu0 0
        %2059 = vmatprep.subr.bf16.mxu0 0
        %2060 = vmatpush1.bf16.xpose.msra.mxu0 0
        %2061 = vmatprep.subr.bf16.mxu0 0
        %2062 = vmatpush1.bf16.xpose.msra.mxu0 0
        %2063 = vmatprep.subr.bf16.mxu0 0
        %2064 = vmatpush1.bf16.xpose.msra.mxu0 0
        %2065 = vmatprep.subr.bf16.mxu0 0
        %2066 = vmatpush1.bf16.xpose.msra.mxu0 0
        %2067 = vmatprep.subr.bf16.mxu0 0
        %2068 = vmatpush1.bf16.xpose.msra.mxu0 0
        %2069 = vmatprep.subr.bf16.mxu0 0
        %2070 = vmatpush1.bf16.xpose.msra.mxu0 %v2053
        %2071 = vmatprep.subr.bf16.mxu0 0
        %2072 = vmatpush2.bf16.xpose.msra.mxu0 0
        %2073 = vmatprep.subr.bf16.mxu0 0
        %2074 = vmatpush2.bf16.xpose.msra.mxu0 0
        %2075 = vmatprep.subr.bf16.mxu0 0
        %2076 = vmatpush2.bf16.xpose.msra.mxu0 0
        %2077 = vmatprep.subr.bf16.mxu0 0
        %2078 = vmatpush2.bf16.xpose.msra.mxu0 0
        %2079 = vmatprep.subr.bf16.mxu0 0
        %2080 = vmatpush2.bf16.xpose.msra.mxu0 0
        %2081 = vmatprep.subr.bf16.mxu0 0
        %2082 = vmatpush2.bf16.xpose.msra.mxu0 0
        %2083 = vmatprep.subr.bf16.mxu0 0
        %2084 = vmatpush2.bf16.xpose.msra.mxu0 0
        %2085 = vmatprep.subr.bf16.mxu0 0
        %2086 = vmatpush2.bf16.xpose.msra.mxu0 0
        %2087 = vmatprep.mubr.bf16.mxu0 0
        %2088 = vmatmul.mubr.bf16.gmra.mxu0 %v2050
        %v2089 = vpop.f32.mrf.mxu0
        %v2090 = vadd.f32 0.0, %v2089
        %v2091 = vpop.f32.mrf.mxu0
        %v2092 = vpop.f32.mrf.mxu0
        %v2093 = vadd.f32 0.0, %v2092
        %v2094 = vpop.f32.mrf.mxu0
        %2095 = vdwg.mxu0
        %v2096 = vmul.f32 %v2090, 0.35355338
        %v2097 = vmul.f32 %v2093, 0.35355338
        %vm2098 = vcmask 130048
        %v2099 = vsel %vm2098, %v2096, -inf
        %2100 = vmax.xlane.f32.xlu0 %v2099
        %v2101 = vpop.xlane.xlu0 %2100
        %v2102 = vsel %vm2098, %v2097, -inf
        %2103 = vmax.xlane.f32.xlu0 %v2102
        %v2104 = vpop.xlane.xlu0 %2103
        %v2105 = vsub.f32 %v2096, %v2101
        %v2106 = vsub.f32 %v2097, %v2104
        %v2107 = vmul.f32 %v2105, 1.442695
        %v2108 = vpow.pop %v2107
        %v2109 = vmul.f32 %v2106, 1.442695
        %v2110 = vpow.pop %v2109
        %v2111 = vsel %vm2098, %v2108, 0.0
        %2112 = vadd.xlane.f32.xlu0 %v2111
        %v2113 = vpop.xlane.xlu0 %2112
        %v2114 = vsel %vm2098, %v2110, 0.0
        %2115 = vadd.xlane.f32.xlu0 %v2114
        %v2116 = vpop.xlane.xlu0 %2115
        %v2117 = vrcp.pop %v2113
        %v2118 = vrcp.pop %v2116
        %v2119 = vmul.f32 %v2108, %v2117
        %v2120 = vmul.f32 %v2110, %v2118
        %v2121 = vpack.c.bf16 %v2120, %v2119
        %2122 = vrot.lane.b32.xlu0 %v2044, 64
        %v2123 = vpop.permute.xlu0 %2122
        %v2126 = vsel %vm2098, %v2121, 0
        %2128 = vmatprep.subr.bf16.mxu0 0
        %2129 = vmatpush1.bf16.msra.mxu0 0
        %2130 = vmatprep.subr.bf16.mxu0 0
        %2131 = vmatpush1.bf16.msra.mxu0 0
        %2132 = vmatprep.subr.bf16.mxu0 0
        %2133 = vmatpush1.bf16.msra.mxu0 0
        %2134 = vmatprep.subr.bf16.mxu0 0
        %2135 = vmatpush1.bf16.msra.mxu0 0
        %2136 = vmatprep.subr.bf16.mxu0 0
        %2137 = vmatpush1.bf16.msra.mxu0 0
        %2138 = vmatprep.subr.bf16.mxu0 0
        %2139 = vmatpush1.bf16.msra.mxu0 0
        %2140 = vmatprep.subr.bf16.mxu0 0
        %2141 = vmatpush1.bf16.msra.mxu0 0
        %2142 = vmatprep.subr.bf16.mxu0 0
        %2143 = vmatpush1.bf16.msra.mxu0 %v2123
        %2144 = vmatprep.subr.bf16.mxu0 0
        %2145 = vmatpush2.bf16.msra.mxu0 0
        %2146 = vmatprep.subr.bf16.mxu0 0
        %2147 = vmatpush2.bf16.msra.mxu0 0
        %2148 = vmatprep.subr.bf16.mxu0 0
        %2149 = vmatpush2.bf16.msra.mxu0 0
        %2150 = vmatprep.subr.bf16.mxu0 0
        %2151 = vmatpush2.bf16.msra.mxu0 0
        %2152 = vmatprep.subr.bf16.mxu0 0
        %2153 = vmatpush2.bf16.msra.mxu0 0
        %2154 = vmatprep.subr.bf16.mxu0 0
        %2155 = vmatpush2.bf16.msra.mxu0 0
        %2156 = vmatprep.subr.bf16.mxu0 0
        %2157 = vmatpush2.bf16.msra.mxu0 0
        %2158 = vmatprep.subr.bf16.mxu0 0
        %2159 = vmatpush2.bf16.msra.mxu0 0
        %2160 = vmatprep.mubr.bf16.mxu0 0
        %2161 = vmatmul.mubr.bf16.gmra.mxu0 %v2126
        %v2162 = vpop.f32.mrf.mxu0
        %v2163 = vadd.f32 0.0, %v2162
        %v2164 = vpop.f32.mrf.mxu0
        %v2165 = vpop.f32.mrf.mxu0
        %v2166 = vadd.f32 0.0, %v2165
        %v2167 = vpop.f32.mrf.mxu0
        %2168 = vdwg.mxu0
        %2169 = vrot.lane.b32.xlu0 %v2044, 120
        %v2170 = vpop.permute.xlu0 %2169
        %2171 = vrot.lane.b32.xlu0 %v2044, 88
        %v2172 = vpop.permute.xlu0 %2171
        %v2174 = vsel %vm2048, %v2170, 0
        %v2177 = vsel %vm2048, %v2172, 0
        %2179 = vmatprep.subr.bf16.mxu0 0
        %2180 = vmatpush1.bf16.xpose.msra.mxu0 0
        %2181 = vmatprep.subr.bf16.mxu0 0
        %2182 = vmatpush1.bf16.xpose.msra.mxu0 0
        %2183 = vmatprep.subr.bf16.mxu0 0
        %2184 = vmatpush1.bf16.xpose.msra.mxu0 0
        %2185 = vmatprep.subr.bf16.mxu0 0
        %2186 = vmatpush1.bf16.xpose.msra.mxu0 0
        %2187 = vmatprep.subr.bf16.mxu0 0
        %2188 = vmatpush1.bf16.xpose.msra.mxu0 0
        %2189 = vmatprep.subr.bf16.mxu0 0
        %2190 = vmatpush1.bf16.xpose.msra.mxu0 0
        %2191 = vmatprep.subr.bf16.mxu0 0
        %2192 = vmatpush1.bf16.xpose.msra.mxu0 0
        %2193 = vmatprep.subr.bf16.mxu0 0
        %2194 = vmatpush1.bf16.xpose.msra.mxu0 %v2177
        %2195 = vmatprep.subr.bf16.mxu0 0
        %2196 = vmatpush2.bf16.xpose.msra.mxu0 0
        %2197 = vmatprep.subr.bf16.mxu0 0
        %2198 = vmatpush2.bf16.xpose.msra.mxu0 0
        %2199 = vmatprep.subr.bf16.mxu0 0
        %2200 = vmatpush2.bf16.xpose.msra.mxu0 0
        %2201 = vmatprep.subr.bf16.mxu0 0
        %2202 = vmatpush2.bf16.xpose.msra.mxu0 0
        %2203 = vmatprep.subr.bf16.mxu0 0
        %2204 = vmatpush2.bf16.xpose.msra.mxu0 0
        %2205 = vmatprep.subr.bf16.mxu0 0
        %2206 = vmatpush2.bf16.xpose.msra.mxu0 0
        %2207 = vmatprep.subr.bf16.mxu0 0
        %2208 = vmatpush2.bf16.xpose.msra.mxu0 0
        %2209 = vmatprep.subr.bf16.mxu0 0
        %2210 = vmatpush2.bf16.xpose.msra.mxu0 0
        %2211 = vmatprep.mubr.bf16.mxu0 0
        %2212 = vmatmul.mubr.bf16.gmra.mxu0 %v2174
        %v2213 = vpop.f32.mrf.mxu0
        %v2214 = vadd.f32 0.0, %v2213
        %v2215 = vpop.f32.mrf.mxu0
        %v2216 = vpop.f32.mrf.mxu0
        %v2217 = vadd.f32 0.0, %v2216
        %v2218 = vpop.f32.mrf.mxu0
        %2219 = vdwg.mxu0
        %v2220 = vmul.f32 %v2214, 0.35355338
        %v2221 = vmul.f32 %v2217, 0.35355338
        %v2222 = vsel %vm2098, %v2220, -inf
        %2223 = vmax.xlane.f32.xlu0 %v2222
        %v2224 = vpop.xlane.xlu0 %2223
        %v2225 = vsel %vm2098, %v2221, -inf
        %2226 = vmax.xlane.f32.xlu0 %v2225
        %v2227 = vpop.xlane.xlu0 %2226
        %v2228 = vsub.f32 %v2220, %v2224
        %v2229 = vsub.f32 %v2221, %v2227
        %v2230 = vmul.f32 %v2228, 1.442695
        %v2231 = vpow.pop %v2230
        %v2232 = vmul.f32 %v2229, 1.442695
        %v2233 = vpow.pop %v2232
        %v2234 = vsel %vm2098, %v2231, 0.0
        %2235 = vadd.xlane.f32.xlu0 %v2234
        %v2236 = vpop.xlane.xlu0 %2235
        %v2237 = vsel %vm2098, %v2233, 0.0
        %2238 = vadd.xlane.f32.xlu0 %v2237
        %v2239 = vpop.xlane.xlu0 %2238
        %v2240 = vrcp.pop %v2236
        %v2241 = vrcp.pop %v2239
        %v2242 = vmul.f32 %v2231, %v2240
        %v2243 = vmul.f32 %v2233, %v2241
        %v2244 = vpack.c.bf16 %v2243, %v2242
        %2245 = vrot.lane.b32.xlu0 %v2044, 56
        %v2246 = vpop.permute.xlu0 %2245
        %v2249 = vsel %vm2098, %v2244, 0
        %2251 = vmatprep.subr.bf16.mxu0 0
        %2252 = vmatpush1.bf16.msra.mxu0 0
        %2253 = vmatprep.subr.bf16.mxu0 0
        %2254 = vmatpush1.bf16.msra.mxu0 0
        %2255 = vmatprep.subr.bf16.mxu0 0
        %2256 = vmatpush1.bf16.msra.mxu0 0
        %2257 = vmatprep.subr.bf16.mxu0 0
        %2258 = vmatpush1.bf16.msra.mxu0 0
        %2259 = vmatprep.subr.bf16.mxu0 0
        %2260 = vmatpush1.bf16.msra.mxu0 0
        %2261 = vmatprep.subr.bf16.mxu0 0
        %2262 = vmatpush1.bf16.msra.mxu0 0
        %2263 = vmatprep.subr.bf16.mxu0 0
        %2264 = vmatpush1.bf16.msra.mxu0 0
        %2265 = vmatprep.subr.bf16.mxu0 0
        %2266 = vmatpush1.bf16.msra.mxu0 %v2246
        %2267 = vmatprep.subr.bf16.mxu0 0
        %2268 = vmatpush2.bf16.msra.mxu0 0
        %2269 = vmatprep.subr.bf16.mxu0 0
        %2270 = vmatpush2.bf16.msra.mxu0 0
        %2271 = vmatprep.subr.bf16.mxu0 0
        %2272 = vmatpush2.bf16.msra.mxu0 0
        %2273 = vmatprep.subr.bf16.mxu0 0
        %2274 = vmatpush2.bf16.msra.mxu0 0
        %2275 = vmatprep.subr.bf16.mxu0 0
        %2276 = vmatpush2.bf16.msra.mxu0 0
        %2277 = vmatprep.subr.bf16.mxu0 0
        %2278 = vmatpush2.bf16.msra.mxu0 0
        %2279 = vmatprep.subr.bf16.mxu0 0
        %2280 = vmatpush2.bf16.msra.mxu0 0
        %2281 = vmatprep.subr.bf16.mxu0 0
        %2282 = vmatpush2.bf16.msra.mxu0 0
        %2283 = vmatprep.mubr.bf16.mxu0 0
        %2284 = vmatmul.mubr.bf16.gmra.mxu0 %v2249
        %v2285 = vpop.f32.mrf.mxu0
        %v2286 = vadd.f32 0.0, %v2285
        %v2287 = vpop.f32.mrf.mxu0
        %v2288 = vpop.f32.mrf.mxu0
        %v2289 = vadd.f32 0.0, %v2288
        %v2290 = vpop.f32.mrf.mxu0
        %2291 = vdwg.mxu0
        %2292 = vrot.lane.b32.xlu0 %v2044, 112
        %v2293 = vpop.permute.xlu0 %2292
        %2294 = vrot.lane.b32.xlu0 %v2044, 80
        %v2295 = vpop.permute.xlu0 %2294
        %v2297 = vsel %vm2048, %v2293, 0
        %v2300 = vsel %vm2048, %v2295, 0
        %2302 = vmatprep.subr.bf16.mxu0 0
        %2303 = vmatpush1.bf16.xpose.msra.mxu0 0
        %2304 = vmatprep.subr.bf16.mxu0 0
        %2305 = vmatpush1.bf16.xpose.msra.mxu0 0
        %2306 = vmatprep.subr.bf16.mxu0 0
        %2307 = vmatpush1.bf16.xpose.msra.mxu0 0
        %2308 = vmatprep.subr.bf16.mxu0 0
        %2309 = vmatpush1.bf16.xpose.msra.mxu0 0
        %2310 = vmatprep.subr.bf16.mxu0 0
        %2311 = vmatpush1.bf16.xpose.msra.mxu0 0
        %2312 = vmatprep.subr.bf16.mxu0 0
        %2313 = vmatpush1.bf16.xpose.msra.mxu0 0
        %2314 = vmatprep.subr.bf16.mxu0 0
        %2315 = vmatpush1.bf16.xpose.msra.mxu0 0
        %2316 = vmatprep.subr.bf16.mxu0 0
        %2317 = vmatpush1.bf16.xpose.msra.mxu0 %v2300
        %2318 = vmatprep.subr.bf16.mxu0 0
        %2319 = vmatpush2.bf16.xpose.msra.mxu0 0
        %2320 = vmatprep.subr.bf16.mxu0 0
        %2321 = vmatpush2.bf16.xpose.msra.mxu0 0
        %2322 = vmatprep.subr.bf16.mxu0 0
        %2323 = vmatpush2.bf16.xpose.msra.mxu0 0
        %2324 = vmatprep.subr.bf16.mxu0 0
        %2325 = vmatpush2.bf16.xpose.msra.mxu0 0
        %2326 = vmatprep.subr.bf16.mxu0 0
        %2327 = vmatpush2.bf16.xpose.msra.mxu0 0
        %2328 = vmatprep.subr.bf16.mxu0 0
        %2329 = vmatpush2.bf16.xpose.msra.mxu0 0
        %2330 = vmatprep.subr.bf16.mxu0 0
        %2331 = vmatpush2.bf16.xpose.msra.mxu0 0
        %2332 = vmatprep.subr.bf16.mxu0 0
        %2333 = vmatpush2.bf16.xpose.msra.mxu0 0
        %2334 = vmatprep.mubr.bf16.mxu0 0
        %2335 = vmatmul.mubr.bf16.gmra.mxu0 %v2297
        %v2336 = vpop.f32.mrf.mxu0
        %v2337 = vadd.f32 0.0, %v2336
        %v2338 = vpop.f32.mrf.mxu0
        %v2339 = vpop.f32.mrf.mxu0
        %v2340 = vadd.f32 0.0, %v2339
        %v2341 = vpop.f32.mrf.mxu0
        %2342 = vdwg.mxu0
        %v2343 = vmul.f32 %v2337, 0.35355338
        %v2344 = vmul.f32 %v2340, 0.35355338
        %v2345 = vsel %vm2098, %v2343, -inf
        %2346 = vmax.xlane.f32.xlu0 %v2345
        %v2347 = vpop.xlane.xlu0 %2346
        %v2348 = vsel %vm2098, %v2344, -inf
        %2349 = vmax.xlane.f32.xlu0 %v2348
        %v2350 = vpop.xlane.xlu0 %2349
        %v2351 = vsub.f32 %v2343, %v2347
        %v2352 = vsub.f32 %v2344, %v2350
        %v2353 = vmul.f32 %v2351, 1.442695
        %v2354 = vpow.pop %v2353
        %v2355 = vmul.f32 %v2352, 1.442695
        %v2356 = vpow.pop %v2355
        %v2357 = vsel %vm2098, %v2354, 0.0
        %2358 = vadd.xlane.f32.xlu0 %v2357
        %v2359 = vpop.xlane.xlu0 %2358
        %v2360 = vsel %vm2098, %v2356, 0.0
        %2361 = vadd.xlane.f32.xlu0 %v2360
        %v2362 = vpop.xlane.xlu0 %2361
        %v2363 = vrcp.pop %v2359
        %v2364 = vrcp.pop %v2362
        %v2365 = vmul.f32 %v2354, %v2363
        %v2366 = vmul.f32 %v2356, %v2364
        %v2367 = vpack.c.bf16 %v2366, %v2365
        %2368 = vrot.lane.b32.xlu0 %v2044, 48
        %v2369 = vpop.permute.xlu0 %2368
        %v2372 = vsel %vm2098, %v2367, 0
        %2374 = vmatprep.subr.bf16.mxu0 0
        %2375 = vmatpush1.bf16.msra.mxu0 0
        %2376 = vmatprep.subr.bf16.mxu0 0
        %2377 = vmatpush1.bf16.msra.mxu0 0
        %2378 = vmatprep.subr.bf16.mxu0 0
        %2379 = vmatpush1.bf16.msra.mxu0 0
        %2380 = vmatprep.subr.bf16.mxu0 0
        %2381 = vmatpush1.bf16.msra.mxu0 0
        %2382 = vmatprep.subr.bf16.mxu0 0
        %2383 = vmatpush1.bf16.msra.mxu0 0
        %2384 = vmatprep.subr.bf16.mxu0 0
        %2385 = vmatpush1.bf16.msra.mxu0 0
        %2386 = vmatprep.subr.bf16.mxu0 0
        %2387 = vmatpush1.bf16.msra.mxu0 0
        %2388 = vmatprep.subr.bf16.mxu0 0
        %2389 = vmatpush1.bf16.msra.mxu0 %v2369
        %2390 = vmatprep.subr.bf16.mxu0 0
        %2391 = vmatpush2.bf16.msra.mxu0 0
        %2392 = vmatprep.subr.bf16.mxu0 0
        %2393 = vmatpush2.bf16.msra.mxu0 0
        %2394 = vmatprep.subr.bf16.mxu0 0
        %2395 = vmatpush2.bf16.msra.mxu0 0
        %2396 = vmatprep.subr.bf16.mxu0 0
        %2397 = vmatpush2.bf16.msra.mxu0 0
        %2398 = vmatprep.subr.bf16.mxu0 0
        %2399 = vmatpush2.bf16.msra.mxu0 0
        %2400 = vmatprep.subr.bf16.mxu0 0
        %2401 = vmatpush2.bf16.msra.mxu0 0
        %2402 = vmatprep.subr.bf16.mxu0 0
        %2403 = vmatpush2.bf16.msra.mxu0 0
        %2404 = vmatprep.subr.bf16.mxu0 0
        %2405 = vmatpush2.bf16.msra.mxu0 0
        %2406 = vmatprep.mubr.bf16.mxu0 0
        %2407 = vmatmul.mubr.bf16.gmra.mxu0 %v2372
        %v2408 = vpop.f32.mrf.mxu0
        %v2409 = vadd.f32 0.0, %v2408
        %v2410 = vpop.f32.mrf.mxu0
        %v2411 = vpop.f32.mrf.mxu0
        %v2412 = vadd.f32 0.0, %v2411
        %v2413 = vpop.f32.mrf.mxu0
        %2414 = vdwg.mxu0
        %2415 = vrot.lane.b32.xlu0 %v2044, 104
        %v2416 = vpop.permute.xlu0 %2415
        %2417 = vrot.lane.b32.xlu0 %v2044, 72
        %v2418 = vpop.permute.xlu0 %2417
        %v2420 = vsel %vm2048, %v2416, 0
        %v2423 = vsel %vm2048, %v2418, 0
        %2425 = vmatprep.subr.bf16.mxu0 0
        %2426 = vmatpush1.bf16.xpose.msra.mxu0 0
        %2427 = vmatprep.subr.bf16.mxu0 0
        %2428 = vmatpush1.bf16.xpose.msra.mxu0 0
        %2429 = vmatprep.subr.bf16.mxu0 0
        %2430 = vmatpush1.bf16.xpose.msra.mxu0 0
        %2431 = vmatprep.subr.bf16.mxu0 0
        %2432 = vmatpush1.bf16.xpose.msra.mxu0 0
        %2433 = vmatprep.subr.bf16.mxu0 0
        %2434 = vmatpush1.bf16.xpose.msra.mxu0 0
        %2435 = vmatprep.subr.bf16.mxu0 0
        %2436 = vmatpush1.bf16.xpose.msra.mxu0 0
        %2437 = vmatprep.subr.bf16.mxu0 0
        %2438 = vmatpush1.bf16.xpose.msra.mxu0 0
        %2439 = vmatprep.subr.bf16.mxu0 0
        %2440 = vmatpush1.bf16.xpose.msra.mxu0 %v2423
        %2441 = vmatprep.subr.bf16.mxu0 0
        %2442 = vmatpush2.bf16.xpose.msra.mxu0 0
        %2443 = vmatprep.subr.bf16.mxu0 0
        %2444 = vmatpush2.bf16.xpose.msra.mxu0 0
        %2445 = vmatprep.subr.bf16.mxu0 0
        %2446 = vmatpush2.bf16.xpose.msra.mxu0 0
        %2447 = vmatprep.subr.bf16.mxu0 0
        %2448 = vmatpush2.bf16.xpose.msra.mxu0 0
        %2449 = vmatprep.subr.bf16.mxu0 0
        %2450 = vmatpush2.bf16.xpose.msra.mxu0 0
        %2451 = vmatprep.subr.bf16.mxu0 0
        %2452 = vmatpush2.bf16.xpose.msra.mxu0 0
        %2453 = vmatprep.subr.bf16.mxu0 0
        %2454 = vmatpush2.bf16.xpose.msra.mxu0 0
        %2455 = vmatprep.subr.bf16.mxu0 0
        %2456 = vmatpush2.bf16.xpose.msra.mxu0 0
        %2457 = vmatprep.mubr.bf16.mxu0 0
        %2458 = vmatmul.mubr.bf16.gmra.mxu0 %v2420
        %v2459 = vpop.f32.mrf.mxu0
        %v2460 = vadd.f32 0.0, %v2459
        %v2461 = vpop.f32.mrf.mxu0
        %v2462 = vpop.f32.mrf.mxu0
        %v2463 = vadd.f32 0.0, %v2462
        %v2464 = vpop.f32.mrf.mxu0
        %2465 = vdwg.mxu0
        %v2466 = vmul.f32 %v2460, 0.35355338
        %v2467 = vmul.f32 %v2463, 0.35355338
        %v2468 = vsel %vm2098, %v2466, -inf
        %2469 = vmax.xlane.f32.xlu0 %v2468
        %v2470 = vpop.xlane.xlu0 %2469
        %v2471 = vsel %vm2098, %v2467, -inf
        %2472 = vmax.xlane.f32.xlu0 %v2471
        %v2473 = vpop.xlane.xlu0 %2472
        %v2474 = vsub.f32 %v2466, %v2470
        %v2475 = vsub.f32 %v2467, %v2473
        %v2476 = vmul.f32 %v2474, 1.442695
        %v2477 = vpow.pop %v2476
        %v2478 = vmul.f32 %v2475, 1.442695
        %v2479 = vpow.pop %v2478
        %v2480 = vsel %vm2098, %v2477, 0.0
        %2481 = vadd.xlane.f32.xlu0 %v2480
        %v2482 = vpop.xlane.xlu0 %2481
        %v2483 = vsel %vm2098, %v2479, 0.0
        %2484 = vadd.xlane.f32.xlu0 %v2483
        %v2485 = vpop.xlane.xlu0 %2484
        %v2486 = vrcp.pop %v2482
        %v2487 = vrcp.pop %v2485
        %v2488 = vmul.f32 %v2477, %v2486
        %v2489 = vmul.f32 %v2479, %v2487
        %v2490 = vpack.c.bf16 %v2489, %v2488
        %2491 = vrot.lane.b32.xlu0 %v2044, 40
        %v2492 = vpop.permute.xlu0 %2491
        %v2495 = vsel %vm2098, %v2490, 0
        %2497 = vmatprep.subr.bf16.mxu0 0
        %2498 = vmatpush1.bf16.msra.mxu0 0
        %2499 = vmatprep.subr.bf16.mxu0 0
        %2500 = vmatpush1.bf16.msra.mxu0 0
        %2501 = vmatprep.subr.bf16.mxu0 0
        %2502 = vmatpush1.bf16.msra.mxu0 0
        %2503 = vmatprep.subr.bf16.mxu0 0
        %2504 = vmatpush1.bf16.msra.mxu0 0
        %2505 = vmatprep.subr.bf16.mxu0 0
        %2506 = vmatpush1.bf16.msra.mxu0 0
        %2507 = vmatprep.subr.bf16.mxu0 0
        %2508 = vmatpush1.bf16.msra.mxu0 0
        %2509 = vmatprep.subr.bf16.mxu0 0
        %2510 = vmatpush1.bf16.msra.mxu0 0
        %2511 = vmatprep.subr.bf16.mxu0 0
        %2512 = vmatpush1.bf16.msra.mxu0 %v2492
        %2513 = vmatprep.subr.bf16.mxu0 0
        %2514 = vmatpush2.bf16.msra.mxu0 0
        %2515 = vmatprep.subr.bf16.mxu0 0
        %2516 = vmatpush2.bf16.msra.mxu0 0
        %2517 = vmatprep.subr.bf16.mxu0 0
        %2518 = vmatpush2.bf16.msra.mxu0 0
        %2519 = vmatprep.subr.bf16.mxu0 0
        %2520 = vmatpush2.bf16.msra.mxu0 0
        %2521 = vmatprep.subr.bf16.mxu0 0
        %2522 = vmatpush2.bf16.msra.mxu0 0
        %2523 = vmatprep.subr.bf16.mxu0 0
        %2524 = vmatpush2.bf16.msra.mxu0 0
        %2525 = vmatprep.subr.bf16.mxu0 0
        %2526 = vmatpush2.bf16.msra.mxu0 0
        %2527 = vmatprep.subr.bf16.mxu0 0
        %2528 = vmatpush2.bf16.msra.mxu0 0
        %2529 = vmatprep.mubr.bf16.mxu0 0
        %2530 = vmatmul.mubr.bf16.gmra.mxu0 %v2495
        %v2531 = vpop.f32.mrf.mxu0
        %v2532 = vadd.f32 0.0, %v2531
        %v2533 = vpop.f32.mrf.mxu0
        %v2534 = vpop.f32.mrf.mxu0
        %v2535 = vadd.f32 0.0, %v2534
        %v2536 = vpop.f32.mrf.mxu0
        %2537 = vdwg.mxu0
        %2540 = vrot.lane.b32.xlu0 %v2286, 8
        %v2541 = vpop.permute.xlu0 %2540
        %2542 = vrot.lane.b32.xlu0 %v2289, 8
        %v2543 = vpop.permute.xlu0 %2542
        %2548 = vrot.lane.b32.xlu0 %v2409, 16
        %v2549 = vpop.permute.xlu0 %2548
        %2550 = vrot.lane.b32.xlu0 %v2412, 16
        %v2551 = vpop.permute.xlu0 %2550
        %2556 = vrot.lane.b32.xlu0 %v2532, 24
        %v2557 = vpop.permute.xlu0 %2556
        %2558 = vrot.lane.b32.xlu0 %v2535, 24
        %v2559 = vpop.permute.xlu0 %2558
        %v2562 = vsel %vm2048, %v2163, %v2541
        %v2563 = vsel %vm2048, %v2166, %v2543
        %v2564 = vsel %vm2098, %v2562, %v2549
        %v2565 = vsel %vm2098, %v2563, %v2551
        %vm2566 = vcmask 195584
        %v2567 = vsel %vm2566, %v2564, %v2557
        %v2568 = vsel %vm2566, %v2565, %v2559
        %v2569 = vpack.c.bf16 %v2041, %v2038
        %2571 = vrot.lane.b32.xlu0 %v2569, 96
        %v2572 = vpop.permute.xlu0 %2571
        %v2574 = vsel %vm2048, %v2569, 0
        %v2577 = vsel %vm2048, %v2572, 0
        %2579 = vmatprep.subr.bf16.mxu0 0
        %2580 = vmatpush1.bf16.xpose.msra.mxu0 0
        %2581 = vmatprep.subr.bf16.mxu0 0
        %2582 = vmatpush1.bf16.xpose.msra.mxu0 0
        %2583 = vmatprep.subr.bf16.mxu0 0
        %2584 = vmatpush1.bf16.xpose.msra.mxu0 0
        %2585 = vmatprep.subr.bf16.mxu0 0
        %2586 = vmatpush1.bf16.xpose.msra.mxu0 0
        %2587 = vmatprep.subr.bf16.mxu0 0
        %2588 = vmatpush1.bf16.xpose.msra.mxu0 0
        %2589 = vmatprep.subr.bf16.mxu0 0
        %2590 = vmatpush1.bf16.xpose.msra.mxu0 0
        %2591 = vmatprep.subr.bf16.mxu0 0
        %2592 = vmatpush1.bf16.xpose.msra.mxu0 0
        %2593 = vmatprep.subr.bf16.mxu0 0
        %2594 = vmatpush1.bf16.xpose.msra.mxu0 %v2577
        %2595 = vmatprep.subr.bf16.mxu0 0
        %2596 = vmatpush2.bf16.xpose.msra.mxu0 0
        %2597 = vmatprep.subr.bf16.mxu0 0
        %2598 = vmatpush2.bf16.xpose.msra.mxu0 0
        %2599 = vmatprep.subr.bf16.mxu0 0
        %2600 = vmatpush2.bf16.xpose.msra.mxu0 0
        %2601 = vmatprep.subr.bf16.mxu0 0
        %2602 = vmatpush2.bf16.xpose.msra.mxu0 0
        %2603 = vmatprep.subr.bf16.mxu0 0
        %2604 = vmatpush2.bf16.xpose.msra.mxu0 0
        %2605 = vmatprep.subr.bf16.mxu0 0
        %2606 = vmatpush2.bf16.xpose.msra.mxu0 0
        %2607 = vmatprep.subr.bf16.mxu0 0
        %2608 = vmatpush2.bf16.xpose.msra.mxu0 0
        %2609 = vmatprep.subr.bf16.mxu0 0
        %2610 = vmatpush2.bf16.xpose.msra.mxu0 0
        %2611 = vmatprep.mubr.bf16.mxu0 0
        %2612 = vmatmul.mubr.bf16.gmra.mxu0 %v2574
        %v2613 = vpop.f32.mrf.mxu0
        %v2614 = vadd.f32 0.0, %v2613
        %v2615 = vpop.f32.mrf.mxu0
        %v2616 = vpop.f32.mrf.mxu0
        %v2617 = vadd.f32 0.0, %v2616
        %v2618 = vpop.f32.mrf.mxu0
        %2619 = vdwg.mxu0
        %v2620 = vmul.f32 %v2614, 0.35355338
        %v2621 = vmul.f32 %v2617, 0.35355338
        %v2622 = vsel %vm2098, %v2620, -inf
        %2623 = vmax.xlane.f32.xlu0 %v2622
        %v2624 = vpop.xlane.xlu0 %2623
        %v2625 = vsel %vm2098, %v2621, -inf
        %2626 = vmax.xlane.f32.xlu0 %v2625
        %v2627 = vpop.xlane.xlu0 %2626
        %v2628 = vsub.f32 %v2620, %v2624
        %v2629 = vsub.f32 %v2621, %v2627
        %v2630 = vmul.f32 %v2628, 1.442695
        %v2631 = vpow.pop %v2630
        %v2632 = vmul.f32 %v2629, 1.442695
        %v2633 = vpow.pop %v2632
        %v2634 = vsel %vm2098, %v2631, 0.0
        %2635 = vadd.xlane.f32.xlu0 %v2634
        %v2636 = vpop.xlane.xlu0 %2635
        %v2637 = vsel %vm2098, %v2633, 0.0
        %2638 = vadd.xlane.f32.xlu0 %v2637
        %v2639 = vpop.xlane.xlu0 %2638
        %v2640 = vrcp.pop %v2636
        %v2641 = vrcp.pop %v2639
        %v2642 = vmul.f32 %v2631, %v2640
        %v2643 = vmul.f32 %v2633, %v2641
        %v2644 = vpack.c.bf16 %v2643, %v2642
        %2645 = vrot.lane.b32.xlu0 %v2569, 64
        %v2646 = vpop.permute.xlu0 %2645
        %v2649 = vsel %vm2098, %v2644, 0
        %2651 = vmatprep.subr.bf16.mxu0 0
        %2652 = vmatpush1.bf16.msra.mxu0 0
        %2653 = vmatprep.subr.bf16.mxu0 0
        %2654 = vmatpush1.bf16.msra.mxu0 0
        %2655 = vmatprep.subr.bf16.mxu0 0
        %2656 = vmatpush1.bf16.msra.mxu0 0
        %2657 = vmatprep.subr.bf16.mxu0 0
        %2658 = vmatpush1.bf16.msra.mxu0 0
        %2659 = vmatprep.subr.bf16.mxu0 0
        %2660 = vmatpush1.bf16.msra.mxu0 0
        %2661 = vmatprep.subr.bf16.mxu0 0
        %2662 = vmatpush1.bf16.msra.mxu0 0
        %2663 = vmatprep.subr.bf16.mxu0 0
        %2664 = vmatpush1.bf16.msra.mxu0 0
        %2665 = vmatprep.subr.bf16.mxu0 0
        %2666 = vmatpush1.bf16.msra.mxu0 %v2646
        %2667 = vmatprep.subr.bf16.mxu0 0
        %2668 = vmatpush2.bf16.msra.mxu0 0
        %2669 = vmatprep.subr.bf16.mxu0 0
        %2670 = vmatpush2.bf16.msra.mxu0 0
        %2671 = vmatprep.subr.bf16.mxu0 0
        %2672 = vmatpush2.bf16.msra.mxu0 0
        %2673 = vmatprep.subr.bf16.mxu0 0
        %2674 = vmatpush2.bf16.msra.mxu0 0
        %2675 = vmatprep.subr.bf16.mxu0 0
        %2676 = vmatpush2.bf16.msra.mxu0 0
        %2677 = vmatprep.subr.bf16.mxu0 0
        %2678 = vmatpush2.bf16.msra.mxu0 0
        %2679 = vmatprep.subr.bf16.mxu0 0
        %2680 = vmatpush2.bf16.msra.mxu0 0
        %2681 = vmatprep.subr.bf16.mxu0 0
        %2682 = vmatpush2.bf16.msra.mxu0 0
        %2683 = vmatprep.mubr.bf16.mxu0 0
        %2684 = vmatmul.mubr.bf16.gmra.mxu0 %v2649
        %v2685 = vpop.f32.mrf.mxu0
        %v2686 = vadd.f32 0.0, %v2685
        %v2687 = vpop.f32.mrf.mxu0
        %v2688 = vpop.f32.mrf.mxu0
        %v2689 = vadd.f32 0.0, %v2688
        %v2690 = vpop.f32.mrf.mxu0
        %2691 = vdwg.mxu0
        %2692 = vrot.lane.b32.xlu0 %v2569, 120
        %v2693 = vpop.permute.xlu0 %2692
        %2694 = vrot.lane.b32.xlu0 %v2569, 88
        %v2695 = vpop.permute.xlu0 %2694
        %v2697 = vsel %vm2048, %v2693, 0
        %v2700 = vsel %vm2048, %v2695, 0
        %2702 = vmatprep.subr.bf16.mxu0 0
        %2703 = vmatpush1.bf16.xpose.msra.mxu0 0
        %2704 = vmatprep.subr.bf16.mxu0 0
        %2705 = vmatpush1.bf16.xpose.msra.mxu0 0
        %2706 = vmatprep.subr.bf16.mxu0 0
        %2707 = vmatpush1.bf16.xpose.msra.mxu0 0
        %2708 = vmatprep.subr.bf16.mxu0 0
        %2709 = vmatpush1.bf16.xpose.msra.mxu0 0
        %2710 = vmatprep.subr.bf16.mxu0 0
        %2711 = vmatpush1.bf16.xpose.msra.mxu0 0
        %2712 = vmatprep.subr.bf16.mxu0 0
        %2713 = vmatpush1.bf16.xpose.msra.mxu0 0
        %2714 = vmatprep.subr.bf16.mxu0 0
        %2715 = vmatpush1.bf16.xpose.msra.mxu0 0
        %2716 = vmatprep.subr.bf16.mxu0 0
        %2717 = vmatpush1.bf16.xpose.msra.mxu0 %v2700
        %2718 = vmatprep.subr.bf16.mxu0 0
        %2719 = vmatpush2.bf16.xpose.msra.mxu0 0
        %2720 = vmatprep.subr.bf16.mxu0 0
        %2721 = vmatpush2.bf16.xpose.msra.mxu0 0
        %2722 = vmatprep.subr.bf16.mxu0 0
        %2723 = vmatpush2.bf16.xpose.msra.mxu0 0
        %2724 = vmatprep.subr.bf16.mxu0 0
        %2725 = vmatpush2.bf16.xpose.msra.mxu0 0
        %2726 = vmatprep.subr.bf16.mxu0 0
        %2727 = vmatpush2.bf16.xpose.msra.mxu0 0
        %2728 = vmatprep.subr.bf16.mxu0 0
        %2729 = vmatpush2.bf16.xpose.msra.mxu0 0
        %2730 = vmatprep.subr.bf16.mxu0 0
        %2731 = vmatpush2.bf16.xpose.msra.mxu0 0
        %2732 = vmatprep.subr.bf16.mxu0 0
        %2733 = vmatpush2.bf16.xpose.msra.mxu0 0
        %2734 = vmatprep.mubr.bf16.mxu0 0
        %2735 = vmatmul.mubr.bf16.gmra.mxu0 %v2697
        %v2736 = vpop.f32.mrf.mxu0
        %v2737 = vadd.f32 0.0, %v2736
        %v2738 = vpop.f32.mrf.mxu0
        %v2739 = vpop.f32.mrf.mxu0
        %v2740 = vadd.f32 0.0, %v2739
        %v2741 = vpop.f32.mrf.mxu0
        %2742 = vdwg.mxu0
        %v2743 = vmul.f32 %v2737, 0.35355338
        %v2744 = vmul.f32 %v2740, 0.35355338
        %v2745 = vsel %vm2098, %v2743, -inf
        %2746 = vmax.xlane.f32.xlu0 %v2745
        %v2747 = vpop.xlane.xlu0 %2746
        %v2748 = vsel %vm2098, %v2744, -inf
        %2749 = vmax.xlane.f32.xlu0 %v2748
        %v2750 = vpop.xlane.xlu0 %2749
        %v2751 = vsub.f32 %v2743, %v2747
        %v2752 = vsub.f32 %v2744, %v2750
        %v2753 = vmul.f32 %v2751, 1.442695
        %v2754 = vpow.pop %v2753
        %v2755 = vmul.f32 %v2752, 1.442695
        %v2756 = vpow.pop %v2755
        %v2757 = vsel %vm2098, %v2754, 0.0
        %2758 = vadd.xlane.f32.xlu0 %v2757
        %v2759 = vpop.xlane.xlu0 %2758
        %v2760 = vsel %vm2098, %v2756, 0.0
        %2761 = vadd.xlane.f32.xlu0 %v2760
        %v2762 = vpop.xlane.xlu0 %2761
        %v2763 = vrcp.pop %v2759
        %v2764 = vrcp.pop %v2762
        %v2765 = vmul.f32 %v2754, %v2763
        %v2766 = vmul.f32 %v2756, %v2764
        %v2767 = vpack.c.bf16 %v2766, %v2765
        %2768 = vrot.lane.b32.xlu0 %v2569, 56
        %v2769 = vpop.permute.xlu0 %2768
        %v2772 = vsel %vm2098, %v2767, 0
        %2774 = vmatprep.subr.bf16.mxu0 0
        %2775 = vmatpush1.bf16.msra.mxu0 0
        %2776 = vmatprep.subr.bf16.mxu0 0
        %2777 = vmatpush1.bf16.msra.mxu0 0
        %2778 = vmatprep.subr.bf16.mxu0 0
        %2779 = vmatpush1.bf16.msra.mxu0 0
        %2780 = vmatprep.subr.bf16.mxu0 0
        %2781 = vmatpush1.bf16.msra.mxu0 0
        %2782 = vmatprep.subr.bf16.mxu0 0
        %2783 = vmatpush1.bf16.msra.mxu0 0
        %2784 = vmatprep.subr.bf16.mxu0 0
        %2785 = vmatpush1.bf16.msra.mxu0 0
        %2786 = vmatprep.subr.bf16.mxu0 0
        %2787 = vmatpush1.bf16.msra.mxu0 0
        %2788 = vmatprep.subr.bf16.mxu0 0
        %2789 = vmatpush1.bf16.msra.mxu0 %v2769
        %2790 = vmatprep.subr.bf16.mxu0 0
        %2791 = vmatpush2.bf16.msra.mxu0 0
        %2792 = vmatprep.subr.bf16.mxu0 0
        %2793 = vmatpush2.bf16.msra.mxu0 0
        %2794 = vmatprep.subr.bf16.mxu0 0
        %2795 = vmatpush2.bf16.msra.mxu0 0
        %2796 = vmatprep.subr.bf16.mxu0 0
        %2797 = vmatpush2.bf16.msra.mxu0 0
        %2798 = vmatprep.subr.bf16.mxu0 0
        %2799 = vmatpush2.bf16.msra.mxu0 0
        %2800 = vmatprep.subr.bf16.mxu0 0
        %2801 = vmatpush2.bf16.msra.mxu0 0
        %2802 = vmatprep.subr.bf16.mxu0 0
        %2803 = vmatpush2.bf16.msra.mxu0 0
        %2804 = vmatprep.subr.bf16.mxu0 0
        %2805 = vmatpush2.bf16.msra.mxu0 0
        %2806 = vmatprep.mubr.bf16.mxu0 0
        %2807 = vmatmul.mubr.bf16.gmra.mxu0 %v2772
        %v2808 = vpop.f32.mrf.mxu0
        %v2809 = vadd.f32 0.0, %v2808
        %v2810 = vpop.f32.mrf.mxu0
        %v2811 = vpop.f32.mrf.mxu0
        %v2812 = vadd.f32 0.0, %v2811
        %v2813 = vpop.f32.mrf.mxu0
        %2814 = vdwg.mxu0
        %2815 = vrot.lane.b32.xlu0 %v2569, 112
        %v2816 = vpop.permute.xlu0 %2815
        %2817 = vrot.lane.b32.xlu0 %v2569, 80
        %v2818 = vpop.permute.xlu0 %2817
        %v2820 = vsel %vm2048, %v2816, 0
        %v2823 = vsel %vm2048, %v2818, 0
        %2825 = vmatprep.subr.bf16.mxu0 0
        %2826 = vmatpush1.bf16.xpose.msra.mxu0 0
        %2827 = vmatprep.subr.bf16.mxu0 0
        %2828 = vmatpush1.bf16.xpose.msra.mxu0 0
        %2829 = vmatprep.subr.bf16.mxu0 0
        %2830 = vmatpush1.bf16.xpose.msra.mxu0 0
        %2831 = vmatprep.subr.bf16.mxu0 0
        %2832 = vmatpush1.bf16.xpose.msra.mxu0 0
        %2833 = vmatprep.subr.bf16.mxu0 0
        %2834 = vmatpush1.bf16.xpose.msra.mxu0 0
        %2835 = vmatprep.subr.bf16.mxu0 0
        %2836 = vmatpush1.bf16.xpose.msra.mxu0 0
        %2837 = vmatprep.subr.bf16.mxu0 0
        %2838 = vmatpush1.bf16.xpose.msra.mxu0 0
        %2839 = vmatprep.subr.bf16.mxu0 0
        %2840 = vmatpush1.bf16.xpose.msra.mxu0 %v2823
        %2841 = vmatprep.subr.bf16.mxu0 0
        %2842 = vmatpush2.bf16.xpose.msra.mxu0 0
        %2843 = vmatprep.subr.bf16.mxu0 0
        %2844 = vmatpush2.bf16.xpose.msra.mxu0 0
        %2845 = vmatprep.subr.bf16.mxu0 0
        %2846 = vmatpush2.bf16.xpose.msra.mxu0 0
        %2847 = vmatprep.subr.bf16.mxu0 0
        %2848 = vmatpush2.bf16.xpose.msra.mxu0 0
        %2849 = vmatprep.subr.bf16.mxu0 0
        %2850 = vmatpush2.bf16.xpose.msra.mxu0 0
        %2851 = vmatprep.subr.bf16.mxu0 0
        %2852 = vmatpush2.bf16.xpose.msra.mxu0 0
        %2853 = vmatprep.subr.bf16.mxu0 0
        %2854 = vmatpush2.bf16.xpose.msra.mxu0 0
        %2855 = vmatprep.subr.bf16.mxu0 0
        %2856 = vmatpush2.bf16.xpose.msra.mxu0 0
        %2857 = vmatprep.mubr.bf16.mxu0 0
        %2858 = vmatmul.mubr.bf16.gmra.mxu0 %v2820
        %v2859 = vpop.f32.mrf.mxu0
        %v2860 = vadd.f32 0.0, %v2859
        %v2861 = vpop.f32.mrf.mxu0
        %v2862 = vpop.f32.mrf.mxu0
        %v2863 = vadd.f32 0.0, %v2862
        %v2864 = vpop.f32.mrf.mxu0
        %2865 = vdwg.mxu0
        %v2866 = vmul.f32 %v2860, 0.35355338
        %v2867 = vmul.f32 %v2863, 0.35355338
        %v2868 = vsel %vm2098, %v2866, -inf
        %2869 = vmax.xlane.f32.xlu0 %v2868
        %v2870 = vpop.xlane.xlu0 %2869
        %v2871 = vsel %vm2098, %v2867, -inf
        %2872 = vmax.xlane.f32.xlu0 %v2871
        %v2873 = vpop.xlane.xlu0 %2872
        %v2874 = vsub.f32 %v2866, %v2870
        %v2875 = vsub.f32 %v2867, %v2873
        %v2876 = vmul.f32 %v2874, 1.442695
        %v2877 = vpow.pop %v2876
        %v2878 = vmul.f32 %v2875, 1.442695
        %v2879 = vpow.pop %v2878
        %v2880 = vsel %vm2098, %v2877, 0.0
        %2881 = vadd.xlane.f32.xlu0 %v2880
        %v2882 = vpop.xlane.xlu0 %2881
        %v2883 = vsel %vm2098, %v2879, 0.0
        %2884 = vadd.xlane.f32.xlu0 %v2883
        %v2885 = vpop.xlane.xlu0 %2884
        %v2886 = vrcp.pop %v2882
        %v2887 = vrcp.pop %v2885
        %v2888 = vmul.f32 %v2877, %v2886
        %v2889 = vmul.f32 %v2879, %v2887
        %v2890 = vpack.c.bf16 %v2889, %v2888
        %2891 = vrot.lane.b32.xlu0 %v2569, 48
        %v2892 = vpop.permute.xlu0 %2891
        %v2895 = vsel %vm2098, %v2890, 0
        %2897 = vmatprep.subr.bf16.mxu0 0
        %2898 = vmatpush1.bf16.msra.mxu0 0
        %2899 = vmatprep.subr.bf16.mxu0 0
        %2900 = vmatpush1.bf16.msra.mxu0 0
        %2901 = vmatprep.subr.bf16.mxu0 0
        %2902 = vmatpush1.bf16.msra.mxu0 0
        %2903 = vmatprep.subr.bf16.mxu0 0
        %2904 = vmatpush1.bf16.msra.mxu0 0
        %2905 = vmatprep.subr.bf16.mxu0 0
        %2906 = vmatpush1.bf16.msra.mxu0 0
        %2907 = vmatprep.subr.bf16.mxu0 0
        %2908 = vmatpush1.bf16.msra.mxu0 0
        %2909 = vmatprep.subr.bf16.mxu0 0
        %2910 = vmatpush1.bf16.msra.mxu0 0
        %2911 = vmatprep.subr.bf16.mxu0 0
        %2912 = vmatpush1.bf16.msra.mxu0 %v2892
        %2913 = vmatprep.subr.bf16.mxu0 0
        %2914 = vmatpush2.bf16.msra.mxu0 0
        %2915 = vmatprep.subr.bf16.mxu0 0
        %2916 = vmatpush2.bf16.msra.mxu0 0
        %2917 = vmatprep.subr.bf16.mxu0 0
        %2918 = vmatpush2.bf16.msra.mxu0 0
        %2919 = vmatprep.subr.bf16.mxu0 0
        %2920 = vmatpush2.bf16.msra.mxu0 0
        %2921 = vmatprep.subr.bf16.mxu0 0
        %2922 = vmatpush2.bf16.msra.mxu0 0
        %2923 = vmatprep.subr.bf16.mxu0 0
        %2924 = vmatpush2.bf16.msra.mxu0 0
        %2925 = vmatprep.subr.bf16.mxu0 0
        %2926 = vmatpush2.bf16.msra.mxu0 0
        %2927 = vmatprep.subr.bf16.mxu0 0
        %2928 = vmatpush2.bf16.msra.mxu0 0
        %2929 = vmatprep.mubr.bf16.mxu0 0
        %2930 = vmatmul.mubr.bf16.gmra.mxu0 %v2895
        %v2931 = vpop.f32.mrf.mxu0
        %v2932 = vadd.f32 0.0, %v2931
        %v2933 = vpop.f32.mrf.mxu0
        %v2934 = vpop.f32.mrf.mxu0
        %v2935 = vadd.f32 0.0, %v2934
        %v2936 = vpop.f32.mrf.mxu0
        %2937 = vdwg.mxu0
        %2938 = vrot.lane.b32.xlu0 %v2569, 104
        %v2939 = vpop.permute.xlu0 %2938
        %2940 = vrot.lane.b32.xlu0 %v2569, 72
        %v2941 = vpop.permute.xlu0 %2940
        %v2943 = vsel %vm2048, %v2939, 0
        %v2946 = vsel %vm2048, %v2941, 0
        %2948 = vmatprep.subr.bf16.mxu0 0
        %2949 = vmatpush1.bf16.xpose.msra.mxu0 0
        %2950 = vmatprep.subr.bf16.mxu0 0
        %2951 = vmatpush1.bf16.xpose.msra.mxu0 0
        %2952 = vmatprep.subr.bf16.mxu0 0
        %2953 = vmatpush1.bf16.xpose.msra.mxu0 0
        %2954 = vmatprep.subr.bf16.mxu0 0
        %2955 = vmatpush1.bf16.xpose.msra.mxu0 0
        %2956 = vmatprep.subr.bf16.mxu0 0
        %2957 = vmatpush1.bf16.xpose.msra.mxu0 0
        %2958 = vmatprep.subr.bf16.mxu0 0
        %2959 = vmatpush1.bf16.xpose.msra.mxu0 0
        %2960 = vmatprep.subr.bf16.mxu0 0
        %2961 = vmatpush1.bf16.xpose.msra.mxu0 0
        %2962 = vmatprep.subr.bf16.mxu0 0
        %2963 = vmatpush1.bf16.xpose.msra.mxu0 %v2946
        %2964 = vmatprep.subr.bf16.mxu0 0
        %2965 = vmatpush2.bf16.xpose.msra.mxu0 0
        %2966 = vmatprep.subr.bf16.mxu0 0
        %2967 = vmatpush2.bf16.xpose.msra.mxu0 0
        %2968 = vmatprep.subr.bf16.mxu0 0
        %2969 = vmatpush2.bf16.xpose.msra.mxu0 0
        %2970 = vmatprep.subr.bf16.mxu0 0
        %2971 = vmatpush2.bf16.xpose.msra.mxu0 0
        %2972 = vmatprep.subr.bf16.mxu0 0
        %2973 = vmatpush2.bf16.xpose.msra.mxu0 0
        %2974 = vmatprep.subr.bf16.mxu0 0
        %2975 = vmatpush2.bf16.xpose.msra.mxu0 0
        %2976 = vmatprep.subr.bf16.mxu0 0
        %2977 = vmatpush2.bf16.xpose.msra.mxu0 0
        %2978 = vmatprep.subr.bf16.mxu0 0
        %2979 = vmatpush2.bf16.xpose.msra.mxu0 0
        %2980 = vmatprep.mubr.bf16.mxu0 0
        %2981 = vmatmul.mubr.bf16.gmra.mxu0 %v2943
        %v2982 = vpop.f32.mrf.mxu0
        %v2983 = vadd.f32 0.0, %v2982
        %v2984 = vpop.f32.mrf.mxu0
        %v2985 = vpop.f32.mrf.mxu0
        %v2986 = vadd.f32 0.0, %v2985
        %v2987 = vpop.f32.mrf.mxu0
        %2988 = vdwg.mxu0
        %v2989 = vmul.f32 %v2983, 0.35355338
        %v2990 = vmul.f32 %v2986, 0.35355338
        %v2991 = vsel %vm2098, %v2989, -inf
        %2992 = vmax.xlane.f32.xlu0 %v2991
        %v2993 = vpop.xlane.xlu0 %2992
        %v2994 = vsel %vm2098, %v2990, -inf
        %2995 = vmax.xlane.f32.xlu0 %v2994
        %v2996 = vpop.xlane.xlu0 %2995
        %v2997 = vsub.f32 %v2989, %v2993
        %v2998 = vsub.f32 %v2990, %v2996
        %v2999 = vmul.f32 %v2997, 1.442695
        %v3000 = vpow.pop %v2999
        %v3001 = vmul.f32 %v2998, 1.442695
        %v3002 = vpow.pop %v3001
        %v3003 = vsel %vm2098, %v3000, 0.0
        %3004 = vadd.xlane.f32.xlu0 %v3003
        %v3005 = vpop.xlane.xlu0 %3004
        %v3006 = vsel %vm2098, %v3002, 0.0
        %3007 = vadd.xlane.f32.xlu0 %v3006
        %v3008 = vpop.xlane.xlu0 %3007
        %v3009 = vrcp.pop %v3005
        %v3010 = vrcp.pop %v3008
        %v3011 = vmul.f32 %v3000, %v3009
        %v3012 = vmul.f32 %v3002, %v3010
        %v3013 = vpack.c.bf16 %v3012, %v3011
        %3014 = vrot.lane.b32.xlu0 %v2569, 40
        %v3015 = vpop.permute.xlu0 %3014
        %v3018 = vsel %vm2098, %v3013, 0
        %3020 = vmatprep.subr.bf16.mxu0 0
        %3021 = vmatpush1.bf16.msra.mxu0 0
        %3022 = vmatprep.subr.bf16.mxu0 0
        %3023 = vmatpush1.bf16.msra.mxu0 0
        %3024 = vmatprep.subr.bf16.mxu0 0
        %3025 = vmatpush1.bf16.msra.mxu0 0
        %3026 = vmatprep.subr.bf16.mxu0 0
        %3027 = vmatpush1.bf16.msra.mxu0 0
        %3028 = vmatprep.subr.bf16.mxu0 0
        %3029 = vmatpush1.bf16.msra.mxu0 0
        %3030 = vmatprep.subr.bf16.mxu0 0
        %3031 = vmatpush1.bf16.msra.mxu0 0
        %3032 = vmatprep.subr.bf16.mxu0 0
        %3033 = vmatpush1.bf16.msra.mxu0 0
        %3034 = vmatprep.subr.bf16.mxu0 0
        %3035 = vmatpush1.bf16.msra.mxu0 %v3015
        %3036 = vmatprep.subr.bf16.mxu0 0
        %3037 = vmatpush2.bf16.msra.mxu0 0
        %3038 = vmatprep.subr.bf16.mxu0 0
        %3039 = vmatpush2.bf16.msra.mxu0 0
        %3040 = vmatprep.subr.bf16.mxu0 0
        %3041 = vmatpush2.bf16.msra.mxu0 0
        %3042 = vmatprep.subr.bf16.mxu0 0
        %3043 = vmatpush2.bf16.msra.mxu0 0
        %3044 = vmatprep.subr.bf16.mxu0 0
        %3045 = vmatpush2.bf16.msra.mxu0 0
        %3046 = vmatprep.subr.bf16.mxu0 0
        %3047 = vmatpush2.bf16.msra.mxu0 0
        %3048 = vmatprep.subr.bf16.mxu0 0
        %3049 = vmatpush2.bf16.msra.mxu0 0
        %3050 = vmatprep.subr.bf16.mxu0 0
        %3051 = vmatpush2.bf16.msra.mxu0 0
        %3052 = vmatprep.mubr.bf16.mxu0 0
        %3053 = vmatmul.mubr.bf16.gmra.mxu0 %v3018
        %v3054 = vpop.f32.mrf.mxu0
        %v3055 = vadd.f32 0.0, %v3054
        %v3056 = vpop.f32.mrf.mxu0
        %v3057 = vpop.f32.mrf.mxu0
        %v3058 = vadd.f32 0.0, %v3057
        %v3059 = vpop.f32.mrf.mxu0
        %3060 = vdwg.mxu0
        %3063 = vrot.lane.b32.xlu0 %v2809, 8
        %v3064 = vpop.permute.xlu0 %3063
        %3065 = vrot.lane.b32.xlu0 %v2812, 8
        %v3066 = vpop.permute.xlu0 %3065
        %3071 = vrot.lane.b32.xlu0 %v2932, 16
        %v3072 = vpop.permute.xlu0 %3071
        %3073 = vrot.lane.b32.xlu0 %v2935, 16
        %v3074 = vpop.permute.xlu0 %3073
        %3079 = vrot.lane.b32.xlu0 %v3055, 24
        %v3080 = vpop.permute.xlu0 %3079
        %3081 = vrot.lane.b32.xlu0 %v3058, 24
        %v3082 = vpop.permute.xlu0 %3081
        %v3085 = vsel %vm2048, %v2686, %v3064
        %v3086 = vsel %vm2048, %v2689, %v3066
        %v3087 = vsel %vm2098, %v3085, %v3072
        %v3088 = vsel %vm2098, %v3086, %v3074
        %v3089 = vsel %vm2566, %v3087, %v3080
        %v3090 = vsel %vm2566, %v3088, %v3082
        %v3091 = vpack.c.bf16 %v2568, %v2567
        %v3092 = vpack.c.bf16 %v3090, %v3089
        %v3093 = vld [vmem:[%s1038] sm:$0xf]
        %v3094 = vld [vmem:[%s1038 + $0x4] sm:$0xf]
        %v3095 = vld [vmem:[%s1038 + $0x8] sm:$0xf]
        %v3096 = vld [vmem:[%s1038 + $0xc] sm:$0xf]
        %v3097 = vld [vmem:[%s1041] sm:$0x1]
        %v3099 = vlaneseq
        %v3100 = vshrl.u32 %v3099, 7
        %v3101 = vsub.s32 0, %v3100
        %v3102 = vrot.slane %v3097, %v3101
        %v3108 = vunpack.c.l.b16 %v3093
        %v3109 = vunpack.c.l.b16 %v3094
        %v3110 = vunpack.c.l.b16 %v3095
        %v3111 = vunpack.c.l.b16 %v3096
        %v3112 = vpack.c.b16 %v3109, %v3108
        %v3113 = vpack.c.b16 %v3111, %v3110
        %v3117 = vsel %vm1988, %v3091, 0
        %v3120 = vsel %vm1988, %v3092, 0
        %3122 = vmatprep.subr.bf16.mxu0 0
        %3123 = vmatpush1.bf16.msra.mxu0 0
        %3124 = vmatprep.subr.bf16.mxu0 0
        %3125 = vmatpush1.bf16.msra.mxu0 0
        %3126 = vmatprep.subr.bf16.mxu0 0
        %3127 = vmatpush1.bf16.msra.mxu0 0
        %3128 = vmatprep.subr.bf16.mxu0 0
        %3129 = vmatpush1.bf16.msra.mxu0 0
        %3130 = vmatprep.subr.bf16.mxu0 0
        %3131 = vmatpush1.bf16.msra.mxu0 0
        %3132 = vmatprep.subr.bf16.mxu0 0
        %3133 = vmatpush1.bf16.msra.mxu0 0
        %3134 = vmatprep.subr.bf16.mxu0 0
        %3135 = vmatpush1.bf16.msra.mxu0 %v3113
        %3136 = vmatprep.subr.bf16.mxu0 0
        %3137 = vmatpush1.bf16.msra.mxu0 %v3112
        %3138 = vmatprep.subr.bf16.mxu0 0
        %3139 = vmatpush2.bf16.msra.mxu0 0
        %3140 = vmatprep.subr.bf16.mxu0 0
        %3141 = vmatpush2.bf16.msra.mxu0 0
        %3142 = vmatprep.subr.bf16.mxu0 0
        %3143 = vmatpush2.bf16.msra.mxu0 0
        %3144 = vmatprep.subr.bf16.mxu0 0
        %3145 = vmatpush2.bf16.msra.mxu0 0
        %3146 = vmatprep.subr.bf16.mxu0 0
        %3147 = vmatpush2.bf16.msra.mxu0 0
        %3148 = vmatprep.subr.bf16.mxu0 0
        %3149 = vmatpush2.bf16.msra.mxu0 0
        %3150 = vmatprep.subr.bf16.mxu0 0
        %3151 = vmatpush2.bf16.msra.mxu0 0
        %3152 = vmatprep.subr.bf16.mxu0 0
        %3153 = vmatpush2.bf16.msra.mxu0 0
        %3154 = vmatprep.mubr.bf16.mxu0 0
        %3155 = vmatmul.mubr.bf16.gmra.mxu0 %v3117
        %v3156 = vpop.f32.mrf.mxu0
        %v3157 = vadd.f32 %v3102, %v3156
        %v3158 = vpop.f32.mrf.mxu0
        %v3159 = vpop.f32.mrf.mxu0
        %v3160 = vadd.f32 %v3102, %v3159
        %v3161 = vpop.f32.mrf.mxu0
        %3162 = vmatprep.mubr.bf16.mxu0 0
        %3163 = vmatmul.mubr.bf16.gmra.mxu0 %v3120
        %v3164 = vpop.f32.mrf.mxu0
        %v3165 = vadd.f32 %v3102, %v3164
        %v3166 = vpop.f32.mrf.mxu0
        %v3167 = vpop.f32.mrf.mxu0
        %v3168 = vadd.f32 %v3102, %v3167
        %v3169 = vpop.f32.mrf.mxu0
        %3170 = vdwg.mxu0
        %v3171 = vadd.f32 %v1959, %v3157
        %v3172 = vadd.f32 %v1960, %v3160
        %v3173 = vadd.f32 %v1961, %v3165
        %v3174 = vadd.f32 %v1962, %v3168
        %v3175 = vsel %vm1988, %v3171, 0.0
        %3176 = vadd.xlane.f32.xlu0 %v3175
        %v3177 = vpop.xlane.xlu0 %3176
        %v3178 = vsel %vm1988, %v3172, 0.0
        %3179 = vadd.xlane.f32.xlu0 %v3178
        %v3180 = vpop.xlane.xlu0 %3179
        %v3181 = vsel %vm1988, %v3173, 0.0
        %3182 = vadd.xlane.f32.xlu0 %v3181
        %v3183 = vpop.xlane.xlu0 %3182
        %v3184 = vsel %vm1988, %v3174, 0.0
        %3185 = vadd.xlane.f32.xlu0 %v3184
        %v3186 = vpop.xlane.xlu0 %3185
        %v3187 = vrcp.pop 32.0
        %v3188 = vmul.f32 %v3177, %v3187
        %v3189 = vmul.f32 %v3180, %v3187
        %v3190 = vmul.f32 %v3183, %v3187
        %v3191 = vmul.f32 %v3186, %v3187
        %v3192 = vsub.f32 %v3171, %v3188
        %v3193 = vsub.f32 %v3172, %v3189
        %v3194 = vsub.f32 %v3173, %v3190
        %v3195 = vsub.f32 %v3174, %v3191
        %v3196 = vmul.f32 %v3192, %v3192
        %v3197 = vmul.f32 %v3193, %v3193
        %v3198 = vmul.f32 %v3194, %v3194
        %v3199 = vmul.f32 %v3195, %v3195
        %v3200 = vsel %vm1988, %v3196, 0.0
        %3201 = vadd.xlane.f32.xlu0 %v3200
        %v3202 = vpop.xlane.xlu0 %3201
        %v3203 = vsel %vm1988, %v3197, 0.0
        %3204 = vadd.xlane.f32.xlu0 %v3203
        %v3205 = vpop.xlane.xlu0 %3204
        %v3206 = vsel %vm1988, %v3198, 0.0
        %3207 = vadd.xlane.f32.xlu0 %v3206
        %v3208 = vpop.xlane.xlu0 %3207
        %v3209 = vsel %vm1988, %v3199, 0.0
        %3210 = vadd.xlane.f32.xlu0 %v3209
        %v3211 = vpop.xlane.xlu0 %3210
        %v3212 = vmul.f32 %v3202, %v3187
        %v3213 = vmul.f32 %v3205, %v3187
        %v3214 = vmul.f32 %v3208, %v3187
        %v3215 = vmul.f32 %v3211, %v3187
        %v3216 = vadd.f32 %v3212, 1e-05
        %v3217 = vadd.f32 %v3213, 1e-05
        %v3218 = vadd.f32 %v3214, 1e-05
        %v3219 = vadd.f32 %v3215, 1e-05
        %v3220 = vrsqrt.pop %v3216
        %v3221 = vrsqrt.pop %v3217
        %v3222 = vrsqrt.pop %v3218
        %v3223 = vrsqrt.pop %v3219
        %v3224 = vmul.f32 %v3192, %v3220
        %v3225 = vmul.f32 %v3193, %v3221
        %v3226 = vmul.f32 %v3194, %v3222
        %v3227 = vmul.f32 %v3195, %v3223
        %v3228 = vld [vmem:[%s1044] sm:$0x1]
        %v3230 = vlaneseq
        %v3231 = vshrl.u32 %v3230, 7
        %v3232 = vsub.s32 0, %v3231
        %v3233 = vrot.slane %v3228, %v3232
        %v3235 = vmul.f32 %v3224, %v3233
        %v3236 = vmul.f32 %v3225, %v3233
        %v3237 = vmul.f32 %v3226, %v3233
        %v3238 = vmul.f32 %v3227, %v3233
        %v3239 = vld [vmem:[%s1047] sm:$0x1]
        %v3241 = vlaneseq
        %v3242 = vshrl.u32 %v3241, 7
        %v3243 = vsub.s32 0, %v3242
        %v3244 = vrot.slane %v3239, %v3243
        %v3246 = vadd.f32 %v3235, %v3244
        %v3247 = vadd.f32 %v3236, %v3244
        %v3248 = vadd.f32 %v3237, %v3244
        %v3249 = vadd.f32 %v3238, %v3244
        %v3250 = vpack.c.bf16 %v3247, %v3246
        %v3251 = vpack.c.bf16 %v3249, %v3248
        %v3252 = vld [vmem:[%s1052] sm:$0xf]
        %v3253 = vld [vmem:[%s1052 + $0x4] sm:$0xf]
        %v3254 = vld [vmem:[%s1052 + $0x8] sm:$0xf]
        %v3255 = vld [vmem:[%s1052 + $0xc] sm:$0xf]
        %v3256 = vld [vmem:[%s1055] sm:$0x1]
        %v3258 = vlaneseq
        %v3259 = vshrl.u32 %v3258, 7
        %v3260 = vsub.s32 0, %v3259
        %v3261 = vrot.slane %v3256, %v3260
        %v3267 = vunpack.c.l.b16 %v3252
        %v3268 = vunpack.c.l.b16 %v3253
        %v3269 = vunpack.c.l.b16 %v3254
        %v3270 = vunpack.c.l.b16 %v3255
        %v3271 = vpack.c.b16 %v3268, %v3267
        %v3272 = vpack.c.b16 %v3270, %v3269
        %v3276 = vsel %vm1988, %v3250, 0
        %v3279 = vsel %vm1988, %v3251, 0
        %3281 = vmatprep.subr.bf16.mxu0 0
        %3282 = vmatpush1.bf16.msra.mxu0 0
        %3283 = vmatprep.subr.bf16.mxu0 0
        %3284 = vmatpush1.bf16.msra.mxu0 0
        %3285 = vmatprep.subr.bf16.mxu0 0
        %3286 = vmatpush1.bf16.msra.mxu0 0
        %3287 = vmatprep.subr.bf16.mxu0 0
        %3288 = vmatpush1.bf16.msra.mxu0 0
        %3289 = vmatprep.subr.bf16.mxu0 0
        %3290 = vmatpush1.bf16.msra.mxu0 0
        %3291 = vmatprep.subr.bf16.mxu0 0
        %3292 = vmatpush1.bf16.msra.mxu0 0
        %3293 = vmatprep.subr.bf16.mxu0 0
        %3294 = vmatpush1.bf16.msra.mxu0 %v3272
        %3295 = vmatprep.subr.bf16.mxu0 0
        %3296 = vmatpush1.bf16.msra.mxu0 %v3271
        %3297 = vmatprep.subr.bf16.mxu0 0
        %3298 = vmatpush2.bf16.msra.mxu0 0
        %3299 = vmatprep.subr.bf16.mxu0 0
        %3300 = vmatpush2.bf16.msra.mxu0 0
        %3301 = vmatprep.subr.bf16.mxu0 0
        %3302 = vmatpush2.bf16.msra.mxu0 0
        %3303 = vmatprep.subr.bf16.mxu0 0
        %3304 = vmatpush2.bf16.msra.mxu0 0
        %3305 = vmatprep.subr.bf16.mxu0 0
        %3306 = vmatpush2.bf16.msra.mxu0 0
        %3307 = vmatprep.subr.bf16.mxu0 0
        %3308 = vmatpush2.bf16.msra.mxu0 0
        %3309 = vmatprep.subr.bf16.mxu0 0
        %3310 = vmatpush2.bf16.msra.mxu0 0
        %3311 = vmatprep.subr.bf16.mxu0 0
        %3312 = vmatpush2.bf16.msra.mxu0 0
        %3313 = vmatprep.mubr.bf16.mxu0 0
        %3314 = vmatmul.mubr.bf16.gmra.mxu0 %v3276
        %v3315 = vpop.f32.mrf.mxu0
        %v3316 = vadd.f32 %v3261, %v3315
        %v3317 = vpop.f32.mrf.mxu0
        %v3318 = vpop.f32.mrf.mxu0
        %v3319 = vadd.f32 %v3261, %v3318
        %v3320 = vpop.f32.mrf.mxu0
        %3321 = vmatprep.mubr.bf16.mxu0 0
        %3322 = vmatmul.mubr.bf16.gmra.mxu0 %v3279
        %v3323 = vpop.f32.mrf.mxu0
        %v3324 = vadd.f32 %v3261, %v3323
        %v3325 = vpop.f32.mrf.mxu0
        %v3326 = vpop.f32.mrf.mxu0
        %v3327 = vadd.f32 %v3261, %v3326
        %v3328 = vpop.f32.mrf.mxu0
        %3329 = vdwg.mxu0
        %v3330 = vmax.f32 %v3316, 0.0
        %v3331 = vmax.f32 %v3319, 0.0
        %v3332 = vmax.f32 %v3324, 0.0
        %v3333 = vmax.f32 %v3327, 0.0
        %v3334 = vpack.c.bf16 %v3331, %v3330
        %v3335 = vpack.c.bf16 %v3333, %v3332
        %v3336 = vld [vmem:[%s1060] sm:$0xf]
        %v3337 = vld [vmem:[%s1060 + $0x4] sm:$0xf]
        %v3338 = vld [vmem:[%s1060 + $0x8] sm:$0xf]
        %v3339 = vld [vmem:[%s1060 + $0xc] sm:$0xf]
        %v3340 = vld [vmem:[%s1060 + $0x10] sm:$0xf]
        %v3341 = vld [vmem:[%s1060 + $0x14] sm:$0xf]
        %v3342 = vld [vmem:[%s1060 + $0x18] sm:$0xf]
        %v3343 = vld [vmem:[%s1060 + $0x1c] sm:$0xf]
        %v3344 = vld [vmem:[%s1063] sm:$0x1]
        %v3346 = vlaneseq
        %v3347 = vshrl.u32 %v3346, 7
        %v3348 = vsub.s32 0, %v3347
        %v3349 = vrot.slane %v3344, %v3348
        %v3359 = vunpack.c.l.b16 %v3336
        %v3360 = vunpack.c.l.b16 %v3337
        %v3361 = vunpack.c.l.b16 %v3338
        %v3362 = vunpack.c.l.b16 %v3339
        %v3363 = vunpack.c.l.b16 %v3340
        %v3364 = vunpack.c.l.b16 %v3341
        %v3365 = vunpack.c.l.b16 %v3342
        %v3366 = vunpack.c.l.b16 %v3343
        %v3367 = vpack.c.b16 %v3360, %v3359
        %v3368 = vpack.c.b16 %v3362, %v3361
        %v3369 = vpack.c.b16 %v3364, %v3363
        %v3370 = vpack.c.b16 %v3366, %v3365
        %vm3375 = vcmask 523264
        %v3377 = vsel %vm3375, %v3334, 0
        %v3380 = vsel %vm3375, %v3335, 0
        %3382 = vmatprep.subr.bf16.mxu0 0
        %3383 = vmatpush1.bf16.msra.mxu0 0
        %3384 = vmatprep.subr.bf16.mxu0 0
        %3385 = vmatpush1.bf16.msra.mxu0 0
        %3386 = vmatprep.subr.bf16.mxu0 0
        %3387 = vmatpush1.bf16.msra.mxu0 0
        %3388 = vmatprep.subr.bf16.mxu0 0
        %3389 = vmatpush1.bf16.msra.mxu0 0
        %3390 = vmatprep.subr.bf16.mxu0 0
        %3391 = vmatpush1.bf16.msra.mxu0 %v3370
        %3392 = vmatprep.subr.bf16.mxu0 0
        %3393 = vmatpush1.bf16.msra.mxu0 %v3369
        %3394 = vmatprep.subr.bf16.mxu0 0
        %3395 = vmatpush1.bf16.msra.mxu0 %v3368
        %3396 = vmatprep.subr.bf16.mxu0 0
        %3397 = vmatpush1.bf16.msra.mxu0 %v3367
        %3398 = vmatprep.subr.bf16.mxu0 0
        %3399 = vmatpush2.bf16.msra.mxu0 0
        %3400 = vmatprep.subr.bf16.mxu0 0
        %3401 = vmatpush2.bf16.msra.mxu0 0
        %3402 = vmatprep.subr.bf16.mxu0 0
        %3403 = vmatpush2.bf16.msra.mxu0 0
        %3404 = vmatprep.subr.bf16.mxu0 0
        %3405 = vmatpush2.bf16.msra.mxu0 0
        %3406 = vmatprep.subr.bf16.mxu0 0
        %3407 = vmatpush2.bf16.msra.mxu0 0
        %3408 = vmatprep.subr.bf16.mxu0 0
        %3409 = vmatpush2.bf16.msra.mxu0 0
        %3410 = vmatprep.subr.bf16.mxu0 0
        %3411 = vmatpush2.bf16.msra.mxu0 0
        %3412 = vmatprep.subr.bf16.mxu0 0
        %3413 = vmatpush2.bf16.msra.mxu0 0
        %3414 = vmatprep.mubr.bf16.mxu0 0
        %3415 = vmatmul.mubr.bf16.gmra.mxu0 %v3377
        %v3416 = vpop.f32.mrf.mxu0
        %v3417 = vadd.f32 %v3349, %v3416
        %v3418 = vpop.f32.mrf.mxu0
        %v3419 = vpop.f32.mrf.mxu0
        %v3420 = vadd.f32 %v3349, %v3419
        %v3421 = vpop.f32.mrf.mxu0
        %3422 = vmatprep.mubr.bf16.mxu0 0
        %3423 = vmatmul.mubr.bf16.gmra.mxu0 %v3380
        %v3424 = vpop.f32.mrf.mxu0
        %v3425 = vadd.f32 %v3349, %v3424
        %v3426 = vpop.f32.mrf.mxu0
        %v3427 = vpop.f32.mrf.mxu0
        %v3428 = vadd.f32 %v3349, %v3427
        %v3429 = vpop.f32.mrf.mxu0
        %3430 = vdwg.mxu0
        %v3431 = vadd.f32 %v3246, %v3417
        %v3432 = vadd.f32 %v3247, %v3420
        %v3433 = vadd.f32 %v3248, %v3425
        %v3434 = vadd.f32 %v3249, %v3428
        %v3435 = vsel %vm1988, %v3431, 0.0
        %3436 = vadd.xlane.f32.xlu0 %v3435
        %v3437 = vpop.xlane.xlu0 %3436
        %v3438 = vsel %vm1988, %v3432, 0.0
        %3439 = vadd.xlane.f32.xlu0 %v3438
        %v3440 = vpop.xlane.xlu0 %3439
        %v3441 = vsel %vm1988, %v3433, 0.0
        %3442 = vadd.xlane.f32.xlu0 %v3441
        %v3443 = vpop.xlane.xlu0 %3442
        %v3444 = vsel %vm1988, %v3434, 0.0
        %3445 = vadd.xlane.f32.xlu0 %v3444
        %v3446 = vpop.xlane.xlu0 %3445
        %v3447 = vmul.f32 %v3437, %v3187
        %v3448 = vmul.f32 %v3440, %v3187
        %v3449 = vmul.f32 %v3443, %v3187
        %v3450 = vmul.f32 %v3446, %v3187
        %v3451 = vsub.f32 %v3431, %v3447
        %v3452 = vsub.f32 %v3432, %v3448
        %v3453 = vsub.f32 %v3433, %v3449
        %v3454 = vsub.f32 %v3434, %v3450
        %v3455 = vmul.f32 %v3451, %v3451
        %v3456 = vmul.f32 %v3452, %v3452
        %v3457 = vmul.f32 %v3453, %v3453
        %v3458 = vmul.f32 %v3454, %v3454
        %v3459 = vsel %vm1988, %v3455, 0.0
        %3460 = vadd.xlane.f32.xlu0 %v3459
        %v3461 = vpop.xlane.xlu0 %3460
        %v3462 = vsel %vm1988, %v3456, 0.0
        %3463 = vadd.xlane.f32.xlu0 %v3462
        %v3464 = vpop.xlane.xlu0 %3463
        %v3465 = vsel %vm1988, %v3457, 0.0
        %3466 = vadd.xlane.f32.xlu0 %v3465
        %v3467 = vpop.xlane.xlu0 %3466
        %v3468 = vsel %vm1988, %v3458, 0.0
        %3469 = vadd.xlane.f32.xlu0 %v3468
        %v3470 = vpop.xlane.xlu0 %3469
        %v3471 = vmul.f32 %v3461, %v3187
        %v3472 = vmul.f32 %v3464, %v3187
        %v3473 = vmul.f32 %v3467, %v3187
        %v3474 = vmul.f32 %v3470, %v3187
        %v3475 = vadd.f32 %v3471, 1e-05
        %v3476 = vadd.f32 %v3472, 1e-05
        %v3477 = vadd.f32 %v3473, 1e-05
        %v3478 = vadd.f32 %v3474, 1e-05
        %v3479 = vrsqrt.pop %v3475
        %v3480 = vrsqrt.pop %v3476
        %v3481 = vrsqrt.pop %v3477
        %v3482 = vrsqrt.pop %v3478
        %v3483 = vmul.f32 %v3451, %v3479
        %v3484 = vmul.f32 %v3452, %v3480
        %v3485 = vmul.f32 %v3453, %v3481
        %v3486 = vmul.f32 %v3454, %v3482
        %v3487 = vld [vmem:[%s1066] sm:$0x1]
        %v3489 = vlaneseq
        %v3490 = vshrl.u32 %v3489, 7
        %v3491 = vsub.s32 0, %v3490
        %v3492 = vrot.slane %v3487, %v3491
        %v3494 = vmul.f32 %v3483, %v3492
        %v3495 = vmul.f32 %v3484, %v3492
        %v3496 = vmul.f32 %v3485, %v3492
        %v3497 = vmul.f32 %v3486, %v3492
        %v3498 = vld [vmem:[%s1069] sm:$0x1]
        %v3500 = vlaneseq
        %v3501 = vshrl.u32 %v3500, 7
        %v3502 = vsub.s32 0, %v3501
        %v3503 = vrot.slane %v3498, %v3502
        %v3505 = vadd.f32 %v3494, %v3503
        %v3506 = vadd.f32 %v3495, %v3503
        %v3507 = vadd.f32 %v3496, %v3503
        %v3508 = vadd.f32 %v3497, %v3503
        %3509 = vst.msk [vmem:[#allocation2] sm:$0xff] %vm1988, %v3505
        %3510 = vst.msk [vmem:[#allocation2 + $0x8] sm:$0xff] %vm1988, %v3506
        %3511 = vst.msk [vmem:[#allocation2 + $0x10] sm:$0xff] %vm1988, %v3507
        %3512 = vst.msk [vmem:[#allocation2 + $0x18] sm:$0xff] %vm1988, %v3508
        %p3513 = scmp.eq.s32.totalorder %s47, 1
        // Predicated region
        $region157: #{tpu_custom_call.1} parent=119 // pred_check
          %p3514 = pneg %p3513
        $region158: #{tpu_custom_call.1} parent=119 // pred_check_branch
          %3516 = sbr.rel (%p3514) target = $region160
        $region159: #{tpu_custom_call.1} parent=119 // pred_region
          %v3517 = vsel %vm1988, %v3505, 0.0
          %v3518 = vsel %vm1988, %v3506, 0.0
          %v3519 = vadd.f32 %v3517, %v3518
          %v3520 = vrot.slane %v3519, 4
          %v3521 = vadd.f32 %v3519, %v3520
          %v3522 = vrot.slane %v3521, 2
          %v3523 = vadd.f32 %v3521, %v3522
          %v3524 = vrot.slane %v3523, 1
          %v3525 = vadd.f32 %v3523, %v3524
          %v3526 = vsel %vm1988, %v3507, 0.0
          %v3527 = vsel %vm1988, %v3508, 0.0
          %v3528 = vadd.f32 %v3526, %v3527
          %v3529 = vrot.slane %v3528, 4
          %v3530 = vadd.f32 %v3528, %v3529
          %v3531 = vrot.slane %v3530, 2
          %v3532 = vadd.f32 %v3530, %v3531
          %v3533 = vrot.slane %v3532, 1
          %v3534 = vadd.f32 %v3532, %v3533
          %v3535 = vrcp.pop 16.0
          %v3536 = vmul.f32 %v3525, %v3535
          %v3537 = vmul.f32 %v3534, %v3535
          %v3538 = vpack.c.bf16 %v3536, %v3536
          %v3539 = vpack.c.bf16 %v3537, %v3537
          %v3540 = vld [vmem:[%s23] sm:$0xf]
          %v3541 = vld [vmem:[%s23 + $0x4] sm:$0xf]
          %v3542 = vld [vmem:[%s23 + $0x8] sm:$0xf]
          %v3543 = vld [vmem:[%s23 + $0xc] sm:$0xf]
          %v3544 = vld [vmem:[%s24] sm:$0x1]
          %v3546 = vlaneseq
          %v3547 = vshrl.u32 %v3546, 7
          %v3548 = vsub.s32 0, %v3547
          %v3549 = vrot.slane %v3544, %v3548
          %v3553 = vunpack.c.l.b16 %v3538
          %v3554 = vunpack.c.l.b16 %v3539
          %vm3555 = vcmask 1041409
          %v3556 = vsel %vm3555, %v3554, %v3553
          %v3557 = vpack.c.b16 %v3556, %v3556
          %v3562 = vunpack.c.l.b16 %v3540
          %v3563 = vunpack.c.l.b16 %v3541
          %v3564 = vunpack.c.l.b16 %v3542
          %v3565 = vunpack.c.l.b16 %v3543
          %v3566 = vpack.c.b16 %v3563, %v3562
          %v3567 = vpack.c.b16 %v3565, %v3564
          %v3571 = vsel %vm1988, %v3557, 0
          %3573 = vmatprep.subr.bf16.mxu0 0
          %3574 = vmatpush1.bf16.msra.mxu0 0
          %3575 = vmatprep.subr.bf16.mxu0 0
          %3576 = vmatpush1.bf16.msra.mxu0 0
          %3577 = vmatprep.subr.bf16.mxu0 0
          %3578 = vmatpush1.bf16.msra.mxu0 0
          %3579 = vmatprep.subr.bf16.mxu0 0
          %3580 = vmatpush1.bf16.msra.mxu0 0
          %3581 = vmatprep.subr.bf16.mxu0 0
          %3582 = vmatpush1.bf16.msra.mxu0 0
          %3583 = vmatprep.subr.bf16.mxu0 0
          %3584 = vmatpush1.bf16.msra.mxu0 0
          %3585 = vmatprep.subr.bf16.mxu0 0
          %3586 = vmatpush1.bf16.msra.mxu0 %v3567
          %3587 = vmatprep.subr.bf16.mxu0 0
          %3588 = vmatpush1.bf16.msra.mxu0 %v3566
          %3589 = vmatprep.subr.bf16.mxu0 0
          %3590 = vmatpush2.bf16.msra.mxu0 0
          %3591 = vmatprep.subr.bf16.mxu0 0
          %3592 = vmatpush2.bf16.msra.mxu0 0
          %3593 = vmatprep.subr.bf16.mxu0 0
          %3594 = vmatpush2.bf16.msra.mxu0 0
          %3595 = vmatprep.subr.bf16.mxu0 0
          %3596 = vmatpush2.bf16.msra.mxu0 0
          %3597 = vmatprep.subr.bf16.mxu0 0
          %3598 = vmatpush2.bf16.msra.mxu0 0
          %3599 = vmatprep.subr.bf16.mxu0 0
          %3600 = vmatpush2.bf16.msra.mxu0 0
          %3601 = vmatprep.subr.bf16.mxu0 0
          %3602 = vmatpush2.bf16.msra.mxu0 0
          %3603 = vmatprep.subr.bf16.mxu0 0
          %3604 = vmatpush2.bf16.msra.mxu0 0
          %3605 = vmatprep.mubr.bf16.mxu0 0
          %3606 = vmatmul.mubr.bf16.gmra.mxu0 %v3571
          %v3607 = vpop.f32.mrf.mxu0
          %v3608 = vadd.f32 %v3549, %v3607
          %v3609 = vpop.f32.mrf.mxu0
          %v3610 = vpop.f32.mrf.mxu0
          %v3611 = vpop.f32.mrf.mxu0
          %3612 = vdwg.mxu0
          %vm3613 = vcmask 33792
          %3614 = vst.msk [vmem:[#allocation17] sm:$0x3] %vm3613, %v3608
        $region160: #{tpu_custom_call.1} parent=119 // pred_fallthru
          _
        // Predicated region
        $region161: #{tpu_custom_call.1} parent=119 // pred_check
          %p3615 = pneg %p662
        $region162: #{tpu_custom_call.1} parent=119 // pred_check_branch
          %3617 = sbr.rel (%p3615) target = $region164
        $region163: #{tpu_custom_call.1} parent=119 // pred_region
          %s3619 = ssub.s32 32, 32
          %3620 = vsyncadd [#allocation5], %s3619
          %s3621 = smul.addr %s46, 32
          %s3622 = scalar_lea.hbm %s25, %s3621
          %s3624 = sshll.u32 [#allocation17], 4
          %s3625 = int_to_ptr.vmem [resolvable:$true] %s3624
          %3627 = dma.vmem_to_hbm [thread:$0]  %s3625, 32, %s3622, [#allocation5]
        $region164: #{tpu_custom_call.1} parent=119 // pred_fallthru
          _
        // Predicated region
        $region165: #{tpu_custom_call.1} parent=119 // pred_check
          %p3628 = pneg %p662
        $region166: #{tpu_custom_call.1} parent=119 // pred_check_branch
          %3630 = sbr.rel (%p3628) target = $region168
        $region167: #{tpu_custom_call.1} parent=119 // pred_region
          %3631 = dma.done [#allocation5], 32
        $region168: #{tpu_custom_call.1} parent=119 // pred_fallthru
          _
      $region120: #{tpu_custom_call.1} parent=5 // pred_fallthru
        _
      %p3632 = scmp.le.s32.totalorder 2, %s37
      // Predicated region
      $region169: #{tpu_custom_call.1} parent=5 // pred_check
        %p3633 = pneg %p3632
      $region170: #{tpu_custom_call.1} parent=5 // pred_check_branch
        %3635 = sbr.rel (%p3633) target = $region172
      $region171: #{tpu_custom_call.1} parent=5 // pred_region
        %s3636 = ssub.s32 %s37, 2
      $region172: #{tpu_custom_call.1} parent=5 // pred_fallthru
        _
    $region6: #{tpu_custom_call.1} parent=1 // loop_footer
      %s41 = sadd.s32 1, %s37
    $region7: #{tpu_custom_call.1} parent=1 // loop_footer_branch
      %36 = sbr.rel target = $region3
    $region8: #{tpu_custom_call.1} parent=1 // loop_exit
      _
    %3637 = vsyncpa [#allocation4], 1
    %s3638 = scalar_lea.sflag [#allocation4], 1
    %3639 = vsyncpa %s3638, 1
    %3640 = vsyncpa [#allocation7], 1
    %3641 = vsyncpa [#allocation10], 1
    %3642 = vsyncpa [#allocation13], 1
    %3643 = vsyncpa [#allocation16], 1
    %3644 = vsyncpa [#allocation5], 1
    %s3645 = scalar_lea.sflag [#allocation5], 1
    %3646 = vsyncpa %s3645, 1

</llo_original>
